<compile_context>
chip_gen: v5e
topology: v5e:2x2
jax: 0.10.0
libtpu: 0.0.40
codegen_flags: <defaults>
</compile_context>

<pallas_src>
import functools
import math

import jax
import jax.numpy as jnp
from jax.experimental import pallas as pl
from jax.experimental.pallas import tpu as pltpu

NHEAD = 2   # nn.TransformerDecoderLayer(d_model=2H, nhead=2)
S_DEC = 6   # decoder sequence = 6 stacked utterance codes


# ----------------------------------------------------------------------------
# Fused MIF-tail kernel (single pallas_call, everything resident in VMEM)
# ----------------------------------------------------------------------------

def _mif_kernel(
        # inputs (already flattened to (B*L, F) in the wrapper)
        text_ref, video_ref, audio_ref,
        # modality encoder stand-ins (t, v, a): LN + priv/shared projections
        ln_t_g, ln_t_b, pw_t, pb_t, sw_t, sb_t,
        ln_v_g, ln_v_b, pw_v, pb_v, sw_v, sb_v,
        ln_a_g, ln_a_b, pw_a, pb_a, sw_a, sb_a,
        # sp_discriminator / reconstruct (weights lane-padded to 128)
        spd_w, spd_b, rec_w, rec_b,
        # transformer decoder layer (post-norm, relu FFN)
        sa_wq, sa_bq, sa_wk, sa_bk, sa_wv, sa_bv, sa_wo, sa_bo,
        ca_wq, ca_bq, ca_wk, ca_bk, ca_wv, ca_bv, ca_wo, ca_bo,
        ln1_g, ln1_b, ln2_g, ln2_b, ln3_g, ln3_b,
        ff_w1_hbm, ff_b1, ff_w2_hbm, ff_b2,
        # fusion MLP (fu1 per-slot, fu2 lane-padded to 128)
        fu1_w, fu1_b, fu2_w, fu2_b,
        # single packed output slab (8B, 128)
        out_ref,
        # scratch: manual double-use VMEM buffers + DMA semaphores
        ff1_buf, ff2_buf, dma_sem,
        *, B, lens, nhead):
    D = sa_wq.shape[0]             # d_model = 2 * hidden_size
    S = S_DEC
    SB = S * B
    DH = D // nhead
    bf16 = jnp.bfloat16

    # ---- start the dominant weight DMAs so they overlap early compute -------
    cp_w1 = pltpu.make_async_copy(ff_w1_hbm, ff1_buf, dma_sem.at[0])
    cp_w2 = pltpu.make_async_copy(ff_w2_hbm, ff2_buf, dma_sem.at[1])
    cp_w1.start()
    cp_w2.start()

    def layer_norm(x, g, b):
        mu = jnp.mean(x, axis=-1, keepdims=True)
        var = jnp.mean(jnp.square(x - mu), axis=-1, keepdims=True)
        return (x - mu) * jax.lax.rsqrt(var + 1e-5) * g + b

    # ---- modality encoders (stand-in, see module-level TODO) ---------------
    def encode(x_ref, L, g, b, pw, pb, sw, sb):
        x = x_ref[...].astype(jnp.float32)
        xn = layer_norm(x, g[...], b[...])
        BL = B * L
        # per-batch mean pool as a block-diagonal averaging matmul (MXU)
        r = jax.lax.broadcasted_iota(jnp.int32, (B, BL), 1)
        bi = jax.lax.broadcasted_iota(jnp.int32, (B, BL), 0)
        pool = jnp.where((r >= bi * L) & (r < (bi + 1) * L), 1.0 / L, 0.0)
        pooled = jnp.dot(pool, xn,
                         preferred_element_type=jnp.float32).astype(bf16)  # (B, F)
        priv = jnp.dot(pooled, pw[...],
                       preferred_element_type=jnp.float32) + pb[...]
        shared = jnp.dot(pooled, sw[...],
                         preferred_element_type=jnp.float32) + sb[...]
        return priv, shared                                                # (B, D) x2

    priv_t, shared_t = encode(text_ref, lens[0], ln_t_g, ln_t_b, pw_t, pb_t, sw_t, sb_t)
    priv_v, shared_v = encode(video_ref, lens[1], ln_v_g, ln_v_b, pw_v, pb_v, sw_v, sb_v)
    priv_a, shared_a = encode(audio_ref, lens[2], ln_a_g, ln_a_b, pw_a, pb_a, sw_a, sb_a)

    # ---- sp_discriminator: 4 heads fused into one lane-dense matmul ---------
    sp_in = jnp.concatenate(
        [priv_t, priv_v, priv_a, (shared_t + shared_v + shared_a) / 3.0], axis=0)
    sp_out = jnp.dot(sp_in.astype(bf16), spd_w[...],
                     preferred_element_type=jnp.float32) + spd_b[...]      # (4B, 128)

    # ---- reconstruct(): three small lane-dense matmuls ----------------------
    utt = (priv_t + shared_t, priv_v + shared_v, priv_a + shared_a)
    rec_out = jnp.concatenate(
        [jnp.dot(utt[i].astype(bf16), rec_w[i],
                 preferred_element_type=jnp.float32) + rec_b[i]
         for i in range(3)], axis=0)                                       # (3B, 128)

    # ---- 1-layer transformer decoder (post-norm, nhead heads) ---------------
    # PyTorch h is (S, B, D); flatten S-major -> row r = si*B + bi.
    x0 = jnp.concatenate([priv_t, priv_v, priv_a,
                          shared_t, shared_v, shared_a], axis=0)           # (SB, D)

    # Additive block-diagonal batch mask: (r - c) divisible by B, built from
    # exact integer equality checks (no mod / float-floor).
    r = jax.lax.broadcasted_iota(jnp.int32, (SB, SB), 0)
    c = jax.lax.broadcasted_iota(jnp.int32, (SB, SB), 1)
    d = r - c
    same = d == 0
    for k in range(1, S):
        same = jnp.logical_or(same,
                              jnp.logical_or(d == k * B, d == -k * B))
    attn_bias = jnp.where(same, 0.0, -1e30)        # f32; scores stay f32

    def mha(xq, xkv, wq, bq, wk, bk, wv, bv, wo, bo):
        xq_b = xq.astype(bf16)
        xkv_b = xkv.astype(bf16)
        # 1/sqrt(DH) is folded into wq (and bq) at init time.
        q = jnp.dot(xq_b, wq[...], preferred_element_type=jnp.float32) + bq[...]
        k = jnp.dot(xkv_b, wk[...], preferred_element_type=jnp.float32) + bk[...]
        v = jnp.dot(xkv_b, wv[...], preferred_element_type=jnp.float32) + bv[...]
        out = bo[...]
        for hh in range(nhead):                    # static, nhead == 2
            qs = q[:, hh * DH:(hh + 1) * DH]
            ks = k[:, hh * DH:(hh + 1) * DH]
            vs = v[:, hh * DH:(hh + 1) * DH]
            sc = jax.lax.dot_general(qs, ks, (((1,), (1,)), ((), ())),
                                     preferred_element_type=jnp.float32)
            sc = sc + attn_bias                    # kill cross-batch attention
            sc = sc - jnp.max(sc, axis=-1, keepdims=True)
            e = jnp.exp(sc)
            p = e * pl.reciprocal(jnp.sum(e, axis=-1, keepdims=True), approx=True)
            ctx = jnp.dot(p, vs, preferred_element_type=jnp.float32)
            # per-head out-proj summed (wo stored (nhead, DH, D)) -> no concat
            out = out + jnp.dot(ctx.astype(bf16), wo[hh],
                                preferred_element_type=jnp.float32)
        return out                                 # (SB, D)

    # self-attention + residual + norm1
    sa = mha(x0, x0, sa_wq, sa_bq, sa_wk, sa_bk, sa_wv, sa_bv, sa_wo, sa_bo)
    x1 = layer_norm(x0 + sa, ln1_g[...], ln1_b[...])
    # cross-attention against original memory (= x0, single decoder layer)
    ca = mha(x1, x0, ca_wq, ca_bq, ca_wk, ca_bk, ca_wv, ca_bv, ca_wo, ca_bo)
    x2 = layer_norm(x1 + ca, ln2_g[...], ln2_b[...])

    # FFN (bf16 weights arriving via the overlapped manual DMA)
    cp_w1.wait()
    ff = jnp.dot(x2.astype(bf16), ff1_buf[...],
                 preferred_element_type=jnp.float32) + ff_b1[...]
    ff = jnp.maximum(ff, 0.0)
    cp_w2.wait()
    ff = jnp.dot(ff.astype(bf16), ff2_buf[...],
                 preferred_element_type=jnp.float32) + ff_b2[...]
    x3 = layer_norm(x2 + ff, ln3_g[...], ln3_b[...])

    # fusion MLP: the (B, 6D) concat never materializes -- fu1_w is stored as
    # (S, D, 3D) and the per-slot matmuls are summed.
    fused = fu1_b[...]
    for si in range(S):
        fused = fused + jnp.dot(x3[si * B:(si + 1) * B, :].astype(bf16),
                                fu1_w[si], preferred_element_type=jnp.float32)
    fused = jnp.maximum(fused, 0.0)                # Dropout = identity (eval)
    m_out = jnp.dot(fused.astype(bf16), fu2_w[...],
                    preferred_element_type=jnp.float32) + fu2_b[...]       # (B, 128)

    # ---- single lane-dense packed output store ------------------------------
    out_ref[...] = jnp.concatenate([sp_out, rec_out, m_out],
                                   axis=0).astype(out_ref.dtype)


_PARAM_ORDER = [
    "ln_t_g", "ln_t_b", "pw_t", "pb_t", "sw_t", "sb_t",
    "ln_v_g", "ln_v_b", "pw_v", "pb_v", "sw_v", "sb_v",
    "ln_a_g", "ln_a_b", "pw_a", "pb_a", "sw_a", "sb_a",
    "spd_w", "spd_b", "rec_w", "rec_b",
    "sa_wq", "sa_bq", "sa_wk", "sa_bk", "sa_wv", "sa_bv", "sa_wo", "sa_bo",
    "ca_wq", "ca_bq", "ca_wk", "ca_bk", "ca_wv", "ca_bv", "ca_wo", "ca_bo",
    "ln1_g", "ln1_b", "ln2_g", "ln2_b", "ln3_g", "ln3_b",
    "ff_w1", "ff_b1", "ff_w2", "ff_b2",
    "fu1_w", "fu1_b", "fu2_w", "fu2_b",
]


def mif_forward(params, text, audio, video, cfg):
    """Fused MIF forward tail.  text/audio/video: (B, L, F)."""
    B = text.shape[0]
    H = cfg["hidden_size"]
    D = 2 * H
    out_sz = cfg["output_size"]
    Lt, Lv, La = text.shape[1], video.shape[1], audio.shape[1]
    Ft, Fv, Fa = text.shape[2], video.shape[2], audio.shape[2]
    FF = params["ff_b1"].shape[1]

    # flatten to (B*L, F) so the kernel works purely in 2D
    text2 = text.reshape(B * Lt, Ft)
    video2 = video.reshape(B * Lv, Fv)
    audio2 = audio.reshape(B * La, Fa)

    args = [text2, video2, audio2] + [params[k] for k in _PARAM_ORDER]

    rows = 8 * B                                   # 4B sp + 3B rec + B M
    out_shape = jax.ShapeDtypeStruct((rows, 128), jnp.float32)

    vmem = pl.BlockSpec(memory_space=pltpu.MemorySpace.VMEM)
    hbm = pl.BlockSpec(memory_space=pl.ANY)        # FFN weights: manual DMA
    in_specs = [vmem] * 3 + [hbm if k in ("ff_w1", "ff_w2") else vmem
                             for k in _PARAM_ORDER]

    # advisory cost estimate so XLA can overlap this small call with neighbours
    SB = S_DEC * B
    flops = 2 * (
        B * B * (Lt * Ft + Lv * Fv + La * Fa)          # pooling matmuls
        + 2 * B * (Ft + Fv + Fa) * D                   # priv/shared projections
        + 4 * B * D * 128 + 3 * B * D * 128            # sp + recon (lane-padded)
        + 2 * 4 * SB * D * D                           # sa+ca q/k/v/o
        + 2 * NHEAD * 2 * SB * SB * (D // NHEAD)       # scores + pv
        + 2 * SB * D * FF                              # FFN
        + B * (6 * D) * (3 * D) + B * (3 * D) * 128)   # fusion
    transcendentals = 2 * NHEAD * SB * SB + 16 * SB
    bytes_accessed = int(sum(a.size * a.dtype.itemsize for a in args)
                         + rows * 128 * 4)

    # TODO(synk): on v7x with larger B, add a grid over B with
    # dimension_semantics=("parallel",) to shard across both TensorCores.
    slab = pl.pallas_call(
        functools.partial(_mif_kernel, B=B, lens=(Lt, Lv, La), nhead=NHEAD),
        out_shape=out_shape,
        in_specs=in_specs,
        out_specs=vmem,
        scratch_shapes=[
            pltpu.VMEM((D, FF), jnp.bfloat16),         # ff_w1 landing buffer
            pltpu.VMEM((FF, D), jnp.bfloat16),         # ff_w2 landing buffer
            pltpu.SemaphoreType.DMA((2,)),
        ],
        cost_estimate=pl.CostEstimate(
            flops=int(flops), transcendentals=int(transcendentals),
            bytes_accessed=bytes_accessed),
    )(*args)

    sp = slab[0:4 * B, 0:4]                        # sp_{t,v,a,s} stacked
    rec = slab[4 * B:7 * B, 0:H]                   # recon_{t,v,a} stacked
    m = slab[7 * B:8 * B, 0:out_sz]                # M

    aux = (sp[0:B], sp[B:2 * B], sp[2 * B:3 * B], sp[3 * B:],
           rec[0:B], rec[B:2 * B], rec[2 * B:])
    return {"M": m}, aux


# ----------------------------------------------------------------------------
# Parameter initialization (deterministic, synthetic)
# ----------------------------------------------------------------------------

def _w(key, shape, scale=0.05):
    return (scale * jax.random.normal(key, shape)).astype(jnp.float32)


def _pad_lanes(x, width=128):
    pad = [(0, 0)] * (x.ndim - 1) + [(0, width - x.shape[-1])]
    return jnp.pad(x, pad)


def init_params(key, cfg):
    H = cfg["hidden_size"]
    D = 2 * H                      # decoder d_model = hidden_size * 2
    DH = D // NHEAD
    FF = 2048                      # nn.TransformerDecoderLayer default
    out = cfg["output_size"]
    bf16 = jnp.bfloat16
    ks = iter(jax.random.split(key, 64))
    p = {}

    # TODO(synk): stand-ins for the external BertTextEncoder / wav2vec2 / LSTM
    # feature extractors and the undefined UniModal/CrossModal attention.
    for mod, f in (("t", cfg["text_feat"]), ("v", cfg["video_feat"]),
                   ("a", cfg["audio_feat"])):
        p[f"ln_{mod}_g"] = jnp.ones((1, f), jnp.float32)
        p[f"ln_{mod}_b"] = jnp.zeros((1, f), jnp.float32)
        p[f"pw_{mod}"] = _w(next(ks), (f, D)).astype(bf16)     # private proj
        p[f"pb_{mod}"] = jnp.zeros((1, D), jnp.float32)
        p[f"sw_{mod}"] = _w(next(ks), (f, D)).astype(bf16)     # shared proj
        p[f"sb_{mod}"] = jnp.zeros((1, D), jnp.float32)

    # sp_discriminator: Linear(2H -> 4), lane-padded to 128 for the dense slab
    p["spd_w"] = _pad_lanes(_w(next(ks), (D, 4))).astype(bf16)
    p["spd_b"] = jnp.zeros((1, 128), jnp.float32)
    # recon_{t,v,a}: Linear(2H -> H), stacked & lane-padded to 128
    p["rec_w"] = _pad_lanes(_w(next(ks), (3, D, H))).astype(bf16)
    p["rec_b"] = jnp.zeros((3, 1, 128), jnp.float32)

    # transformer decoder layer (nhead=2, post-norm, relu FFN).
    # 1/sqrt(DH) attention scale folded into wq / bq at init time.
    scale = 1.0 / math.sqrt(DH)
    for pre in ("sa", "ca"):
        p[f"{pre}_wq"] = (_w(next(ks), (D, D)) * scale).astype(bf16)
        p[f"{pre}_bq"] = jnp.zeros((1, D), jnp.float32)        # (scaled; zeros)
        p[f"{pre}_wk"] = _w(next(ks), (D, D)).astype(bf16)
        p[f"{pre}_bk"] = jnp.zeros((1, D), jnp.float32)
        p[f"{pre}_wv"] = _w(next(ks), (D, D)).astype(bf16)
        p[f"{pre}_bv"] = jnp.zeros((1, D), jnp.float32)
        # out-proj stored per-head (nhead, DH, D): heads summed, never concat'd
        p[f"{pre}_wo"] = _w(next(ks), (D, D)).reshape(NHEAD, DH, D).astype(bf16)
        p[f"{pre}_bo"] = jnp.zeros((1, D), jnp.float32)
    for i in (1, 2, 3):
        p[f"ln{i}_g"] = jnp.ones((1, D), jnp.float32)
        p[f"ln{i}_b"] = jnp.zeros((1, D), jnp.float32)
    # large FFN weights in bf16 (f32 accumulation in-kernel, manual DMA)
    p["ff_w1"] = _w(next(ks), (D, FF)).astype(bf16)
    p["ff_b1"] = jnp.zeros((1, FF), jnp.float32)
    p["ff_w2"] = _w(next(ks), (FF, D)).astype(bf16)
    p["ff_b2"] = jnp.zeros((1, D), jnp.float32)

    # fusion: Linear(12H -> 6H) + ReLU + Linear(6H -> output).
    # fu1 stored per decoder slot (S, D, 3D) so h_cat never materializes;
    # fu2 lane-padded to 128 for the dense output slab.
    p["fu1_w"] = _w(next(ks), (6 * D, 3 * D)).reshape(S_DEC, D, 3 * D).astype(bf16)
    p["fu1_b"] = jnp.zeros((1, 3 * D), jnp.float32)
    p["fu2_w"] = _pad_lanes(_w(next(ks), (3 * D, out))).astype(bf16)
    p["fu2_b"] = jnp.zeros((1, 128), jnp.float32)
    return p


# ----------------------------------------------------------------------------

if __name__ == "__main__":
    cfg = dict(
        hidden_size=32,          # -> decoder d_model = 64
        output_size=1,           # regression head
        text_feat=48,            # stand-in modality feature dims (synthetic)
        audio_feat=48,
        video_feat=32,
    )
    key = jax.random.PRNGKey(0)
    k_par, k_t, k_a, k_v = jax.random.split(key, 4)
    params = init_params(k_par, cfg)

    B = 2
    text = jax.random.normal(k_t, (B, 8, cfg["text_feat"]), jnp.float32)
    audio = jax.random.normal(k_a, (B, 8, cfg["audio_feat"]), jnp.float32)
    video = jax.random.normal(k_v, (B, 4, cfg["video_feat"]), jnp.float32)

    fwd = jax.jit(lambda p, t, a, v: mif_forward(p, t, a, v, cfg))
    out, aux = fwd(params, text, audio, video)
    jax.block_until_ready((out["M"], aux))
    assert out["M"].shape == (B, cfg["output_size"])
    assert aux[0].shape == (B, 4) and aux[4].shape == (B, cfg["hidden_size"])
    print("KERNEL_OK")
</pallas_src>

<mosaic_0001>
module attributes {stable_mosaic.version = 11 : i64} {
  func.func @_mif_kernel(%arg0: memref<16x48xf32, #tpu.memory_space<vmem>>, %arg1: memref<8x32xf32, #tpu.memory_space<vmem>>, %arg2: memref<16x48xf32, #tpu.memory_space<vmem>>, %arg3: memref<1x48xf32, #tpu.memory_space<vmem>>, %arg4: memref<1x48xf32, #tpu.memory_space<vmem>>, %arg5: memref<48x64xbf16, #tpu.memory_space<vmem>>, %arg6: memref<1x64xf32, #tpu.memory_space<vmem>>, %arg7: memref<48x64xbf16, #tpu.memory_space<vmem>>, %arg8: memref<1x64xf32, #tpu.memory_space<vmem>>, %arg9: memref<1x32xf32, #tpu.memory_space<vmem>>, %arg10: memref<1x32xf32, #tpu.memory_space<vmem>>, %arg11: memref<32x64xbf16, #tpu.memory_space<vmem>>, %arg12: memref<1x64xf32, #tpu.memory_space<vmem>>, %arg13: memref<32x64xbf16, #tpu.memory_space<vmem>>, %arg14: memref<1x64xf32, #tpu.memory_space<vmem>>, %arg15: memref<1x48xf32, #tpu.memory_space<vmem>>, %arg16: memref<1x48xf32, #tpu.memory_space<vmem>>, %arg17: memref<48x64xbf16, #tpu.memory_space<vmem>>, %arg18: memref<1x64xf32, #tpu.memory_space<vmem>>, %arg19: memref<48x64xbf16, #tpu.memory_space<vmem>>, %arg20: memref<1x64xf32, #tpu.memory_space<vmem>>, %arg21: memref<64x128xbf16, #tpu.memory_space<vmem>>, %arg22: memref<1x128xf32, #tpu.memory_space<vmem>>, %arg23: memref<3x64x128xbf16, #tpu.memory_space<vmem>>, %arg24: memref<3x1x128xf32, #tpu.memory_space<vmem>>, %arg25: memref<64x64xbf16, #tpu.memory_space<vmem>>, %arg26: memref<1x64xf32, #tpu.memory_space<vmem>>, %arg27: memref<64x64xbf16, #tpu.memory_space<vmem>>, %arg28: memref<1x64xf32, #tpu.memory_space<vmem>>, %arg29: memref<64x64xbf16, #tpu.memory_space<vmem>>, %arg30: memref<1x64xf32, #tpu.memory_space<vmem>>, %arg31: memref<2x32x64xbf16, #tpu.memory_space<vmem>>, %arg32: memref<1x64xf32, #tpu.memory_space<vmem>>, %arg33: memref<64x64xbf16, #tpu.memory_space<vmem>>, %arg34: memref<1x64xf32, #tpu.memory_space<vmem>>, %arg35: memref<64x64xbf16, #tpu.memory_space<vmem>>, %arg36: memref<1x64xf32, #tpu.memory_space<vmem>>, %arg37: memref<64x64xbf16, #tpu.memory_space<vmem>>, %arg38: memref<1x64xf32, #tpu.memory_space<vmem>>, %arg39: memref<2x32x64xbf16, #tpu.memory_space<vmem>>, %arg40: memref<1x64xf32, #tpu.memory_space<vmem>>, %arg41: memref<1x64xf32, #tpu.memory_space<vmem>>, %arg42: memref<1x64xf32, #tpu.memory_space<vmem>>, %arg43: memref<1x64xf32, #tpu.memory_space<vmem>>, %arg44: memref<1x64xf32, #tpu.memory_space<vmem>>, %arg45: memref<1x64xf32, #tpu.memory_space<vmem>>, %arg46: memref<1x64xf32, #tpu.memory_space<vmem>>, %arg47: memref<64x2048xbf16, #tpu.memory_space<any>>, %arg48: memref<1x2048xf32, #tpu.memory_space<vmem>>, %arg49: memref<2048x64xbf16, #tpu.memory_space<any>>, %arg50: memref<1x64xf32, #tpu.memory_space<vmem>>, %arg51: memref<6x64x192xbf16, #tpu.memory_space<vmem>>, %arg52: memref<1x192xf32, #tpu.memory_space<vmem>>, %arg53: memref<192x128xbf16, #tpu.memory_space<vmem>>, %arg54: memref<1x128xf32, #tpu.memory_space<vmem>>, %arg55: memref<16x128xf32, #tpu.memory_space<vmem>>, %arg56: memref<64x2048xbf16, #tpu.memory_space<vmem>>, %arg57: memref<2048x64xbf16, #tpu.memory_space<vmem>>, %arg58: memref<2x!tpu.dma_semaphore, #tpu.memory_space<semaphore_mem>>) attributes {dimension_semantics = [], scalar_prefetch = 0 : i64, scratch_operands = 3 : i64, tpu.core_type = #tpu.core_type<tc>} {
    %c0_i32 = arith.constant 0 : i32
    %0 = tpu.memref_slice %arg58[%c0_i32] : memref<2x!tpu.dma_semaphore, #tpu.memory_space<semaphore_mem>> -> memref<1x!tpu.dma_semaphore, #tpu.memory_space<semaphore_mem>>
    %1 = tpu.memref_squeeze %0 : memref<1x!tpu.dma_semaphore, #tpu.memory_space<semaphore_mem>> -> memref<!tpu.dma_semaphore, #tpu.memory_space<semaphore_mem>>
    tpu.enqueue_dma source(%arg47 : memref<64x2048xbf16, #tpu.memory_space<any>>) target(%arg56 : memref<64x2048xbf16, #tpu.memory_space<vmem>>) target_semaphore(%1 : memref<!tpu.dma_semaphore, #tpu.memory_space<semaphore_mem>>)
    %c1_i32 = arith.constant 1 : i32
    %2 = tpu.memref_slice %arg58[%c1_i32] : memref<2x!tpu.dma_semaphore, #tpu.memory_space<semaphore_mem>> -> memref<1x!tpu.dma_semaphore, #tpu.memory_space<semaphore_mem>>
    %3 = tpu.memref_squeeze %2 : memref<1x!tpu.dma_semaphore, #tpu.memory_space<semaphore_mem>> -> memref<!tpu.dma_semaphore, #tpu.memory_space<semaphore_mem>>
    tpu.enqueue_dma source(%arg49 : memref<2048x64xbf16, #tpu.memory_space<any>>) target(%arg57 : memref<2048x64xbf16, #tpu.memory_space<vmem>>) target_semaphore(%3 : memref<!tpu.dma_semaphore, #tpu.memory_space<semaphore_mem>>)
    %c0 = arith.constant 0 : index
    %c0_0 = arith.constant 0 : index
    %4 = vector.load %arg0[%c0, %c0_0] : memref<16x48xf32, #tpu.memory_space<vmem>>, vector<16x48xf32>
    %c0_1 = arith.constant 0 : index
    %c0_2 = arith.constant 0 : index
    %5 = vector.load %arg3[%c0_1, %c0_2] : memref<1x48xf32, #tpu.memory_space<vmem>>, vector<1x48xf32>
    %c0_3 = arith.constant 0 : index
    %c0_4 = arith.constant 0 : index
    %6 = vector.load %arg4[%c0_3, %c0_4] : memref<1x48xf32, #tpu.memory_space<vmem>>, vector<1x48xf32>
    %cst = arith.constant dense<0.000000e+00> : vector<16xf32>
    %7 = vector.multi_reduction <add>, %4, %cst [1] : vector<16x48xf32> to vector<16xf32>
    %8 = vector.shape_cast %7 : vector<16xf32> to vector<16x1xf32>
    %cst_5 = arith.constant 4.800000e+01 : f32
    %9 = vector.broadcast %cst_5 : f32 to vector<16x1xf32>
    %10 = arith.divf %8, %9 : vector<16x1xf32>
    %11 = vector.broadcast %10 : vector<16x1xf32> to vector<16x48xf32>
    %12 = arith.subf %4, %11 : vector<16x48xf32>
    %13 = arith.mulf %12, %12 : vector<16x48xf32>
    %cst_6 = arith.constant dense<0.000000e+00> : vector<16xf32>
    %14 = vector.multi_reduction <add>, %13, %cst_6 [1] : vector<16x48xf32> to vector<16xf32>
    %15 = vector.shape_cast %14 : vector<16xf32> to vector<16x1xf32>
    %cst_7 = arith.constant 4.800000e+01 : f32
    %16 = vector.broadcast %cst_7 : f32 to vector<16x1xf32>
    %17 = arith.divf %15, %16 : vector<16x1xf32>
    %18 = vector.broadcast %10 : vector<16x1xf32> to vector<16x48xf32>
    %19 = arith.subf %4, %18 : vector<16x48xf32>
    %cst_8 = arith.constant 9.99999974E-6 : f32
    %20 = vector.broadcast %cst_8 : f32 to vector<16x1xf32>
    %21 = arith.addf %17, %20 : vector<16x1xf32>
    %22 = math.rsqrt %21 : vector<16x1xf32>
    %23 = vector.broadcast %22 : vector<16x1xf32> to vector<16x48xf32>
    %24 = arith.mulf %19, %23 : vector<16x48xf32>
    %25 = vector.broadcast %5 : vector<1x48xf32> to vector<16x48xf32>
    %26 = arith.mulf %24, %25 : vector<16x48xf32>
    %27 = vector.broadcast %6 : vector<1x48xf32> to vector<16x48xf32>
    %28 = arith.addf %26, %27 : vector<16x48xf32>
    %29 = tpu.iota {dimensions = array<i32: 1>} : vector<2x16xi32>
    %30 = tpu.iota {dimensions = array<i32: 0>} : vector<2x16xi32>
    %c8_i32 = arith.constant 8 : i32
    %31 = vector.broadcast %c8_i32 : i32 to vector<2x16xi32>
    %32 = arith.muli %30, %31 : vector<2x16xi32>
    %33 = arith.cmpi sge, %29, %32 : vector<2x16xi32>
    %c1_i32_9 = arith.constant 1 : i32
    %34 = vector.broadcast %c1_i32_9 : i32 to vector<2x16xi32>
    %35 = arith.addi %30, %34 : vector<2x16xi32>
    %c8_i32_10 = arith.constant 8 : i32
    %36 = vector.broadcast %c8_i32_10 : i32 to vector<2x16xi32>
    %37 = arith.muli %35, %36 : vector<2x16xi32>
    %38 = arith.cmpi slt, %29, %37 : vector<2x16xi32>
    %39 = arith.andi %33, %38 : vector<2x16xi1>
    %cst_11 = arith.constant 1.250000e-01 : f32
    %cst_12 = arith.constant 0.000000e+00 : f32
    %40 = vector.broadcast %cst_11 : f32 to vector<2x16xf32>
    %41 = vector.broadcast %cst_12 : f32 to vector<2x16xf32>
    %42 = arith.select %39, %40, %41 : vector<2x16xi1>, vector<2x16xf32>
    %cst_13 = arith.constant dense<0.000000e+00> : vector<2x48xf32>
    %43 = tpu.matmul %42, %28, %cst_13 {dimension_numbers = #tpu.dot_dimension_numbers<[1], [0], [0], [1], [0, 0, 1, 1], [], []>} : vector<2x16xf32>, vector<16x48xf32>, vector<2x48xf32> -> vector<2x48xf32>
    %44 = arith.truncf %43 : vector<2x48xf32> to vector<2x48xbf16>
    %c0_14 = arith.constant 0 : index
    %c0_15 = arith.constant 0 : index
    %45 = vector.load %arg5[%c0_14, %c0_15] : memref<48x64xbf16, #tpu.memory_space<vmem>>, vector<48x64xbf16>
    %cst_16 = arith.constant dense<0.000000e+00> : vector<2x64xf32>
    %46 = tpu.matmul %44, %45, %cst_16 {dimension_numbers = #tpu.dot_dimension_numbers<[1], [0], [0], [1], [0, 0, 1, 1], [], []>} : vector<2x48xbf16>, vector<48x64xbf16>, vector<2x64xf32> -> vector<2x64xf32>
    %c0_17 = arith.constant 0 : index
    %c0_18 = arith.constant 0 : index
    %47 = vector.load %arg6[%c0_17, %c0_18] : memref<1x64xf32, #tpu.memory_space<vmem>>, vector<1x64xf32>
    %48 = vector.broadcast %47 : vector<1x64xf32> to vector<2x64xf32>
    %49 = arith.addf %46, %48 : vector<2x64xf32>
    %c0_19 = arith.constant 0 : index
    %c0_20 = arith.constant 0 : index
    %50 = vector.load %arg7[%c0_19, %c0_20] : memref<48x64xbf16, #tpu.memory_space<vmem>>, vector<48x64xbf16>
    %cst_21 = arith.constant dense<0.000000e+00> : vector<2x64xf32>
    %51 = tpu.matmul %44, %50, %cst_21 {dimension_numbers = #tpu.dot_dimension_numbers<[1], [0], [0], [1], [0, 0, 1, 1], [], []>} : vector<2x48xbf16>, vector<48x64xbf16>, vector<2x64xf32> -> vector<2x64xf32>
    %c0_22 = arith.constant 0 : index
    %c0_23 = arith.constant 0 : index
    %52 = vector.load %arg8[%c0_22, %c0_23] : memref<1x64xf32, #tpu.memory_space<vmem>>, vector<1x64xf32>
    %53 = vector.broadcast %52 : vector<1x64xf32> to vector<2x64xf32>
    %54 = arith.addf %51, %53 : vector<2x64xf32>
    %c0_24 = arith.constant 0 : index
    %c0_25 = arith.constant 0 : index
    %55 = vector.load %arg1[%c0_24, %c0_25] : memref<8x32xf32, #tpu.memory_space<vmem>>, vector<8x32xf32>
    %c0_26 = arith.constant 0 : index
    %c0_27 = arith.constant 0 : index
    %56 = vector.load %arg9[%c0_26, %c0_27] : memref<1x32xf32, #tpu.memory_space<vmem>>, vector<1x32xf32>
    %c0_28 = arith.constant 0 : index
    %c0_29 = arith.constant 0 : index
    %57 = vector.load %arg10[%c0_28, %c0_29] : memref<1x32xf32, #tpu.memory_space<vmem>>, vector<1x32xf32>
    %cst_30 = arith.constant dense<0.000000e+00> : vector<8xf32>
    %58 = vector.multi_reduction <add>, %55, %cst_30 [1] : vector<8x32xf32> to vector<8xf32>
    %59 = vector.shape_cast %58 : vector<8xf32> to vector<8x1xf32>
    %cst_31 = arith.constant 3.200000e+01 : f32
    %60 = vector.broadcast %cst_31 : f32 to vector<8x1xf32>
    %61 = arith.divf %59, %60 : vector<8x1xf32>
    %62 = vector.broadcast %61 : vector<8x1xf32> to vector<8x32xf32>
    %63 = arith.subf %55, %62 : vector<8x32xf32>
    %64 = arith.mulf %63, %63 : vector<8x32xf32>
    %cst_32 = arith.constant dense<0.000000e+00> : vector<8xf32>
    %65 = vector.multi_reduction <add>, %64, %cst_32 [1] : vector<8x32xf32> to vector<8xf32>
    %66 = vector.shape_cast %65 : vector<8xf32> to vector<8x1xf32>
    %cst_33 = arith.constant 3.200000e+01 : f32
    %67 = vector.broadcast %cst_33 : f32 to vector<8x1xf32>
    %68 = arith.divf %66, %67 : vector<8x1xf32>
    %69 = vector.broadcast %61 : vector<8x1xf32> to vector<8x32xf32>
    %70 = arith.subf %55, %69 : vector<8x32xf32>
    %cst_34 = arith.constant 9.99999974E-6 : f32
    %71 = vector.broadcast %cst_34 : f32 to vector<8x1xf32>
    %72 = arith.addf %68, %71 : vector<8x1xf32>
    %73 = math.rsqrt %72 : vector<8x1xf32>
    %74 = vector.broadcast %73 : vector<8x1xf32> to vector<8x32xf32>
    %75 = arith.mulf %70, %74 : vector<8x32xf32>
    %76 = vector.broadcast %56 : vector<1x32xf32> to vector<8x32xf32>
    %77 = arith.mulf %75, %76 : vector<8x32xf32>
    %78 = vector.broadcast %57 : vector<1x32xf32> to vector<8x32xf32>
    %79 = arith.addf %77, %78 : vector<8x32xf32>
    %80 = tpu.iota {dimensions = array<i32: 1>} : vector<2x8xi32>
    %81 = tpu.iota {dimensions = array<i32: 0>} : vector<2x8xi32>
    %c4_i32 = arith.constant 4 : i32
    %82 = vector.broadcast %c4_i32 : i32 to vector<2x8xi32>
    %83 = arith.muli %81, %82 : vector<2x8xi32>
    %84 = arith.cmpi sge, %80, %83 : vector<2x8xi32>
    %c1_i32_35 = arith.constant 1 : i32
    %85 = vector.broadcast %c1_i32_35 : i32 to vector<2x8xi32>
    %86 = arith.addi %81, %85 : vector<2x8xi32>
    %c4_i32_36 = arith.constant 4 : i32
    %87 = vector.broadcast %c4_i32_36 : i32 to vector<2x8xi32>
    %88 = arith.muli %86, %87 : vector<2x8xi32>
    %89 = arith.cmpi slt, %80, %88 : vector<2x8xi32>
    %90 = arith.andi %84, %89 : vector<2x8xi1>
    %cst_37 = arith.constant 2.500000e-01 : f32
    %cst_38 = arith.constant 0.000000e+00 : f32
    %91 = vector.broadcast %cst_37 : f32 to vector<2x8xf32>
    %92 = vector.broadcast %cst_38 : f32 to vector<2x8xf32>
    %93 = arith.select %90, %91, %92 : vector<2x8xi1>, vector<2x8xf32>
    %cst_39 = arith.constant dense<0.000000e+00> : vector<2x32xf32>
    %94 = tpu.matmul %93, %79, %cst_39 {dimension_numbers = #tpu.dot_dimension_numbers<[1], [0], [0], [1], [0, 0, 1, 1], [], []>} : vector<2x8xf32>, vector<8x32xf32>, vector<2x32xf32> -> vector<2x32xf32>
    %95 = arith.truncf %94 : vector<2x32xf32> to vector<2x32xbf16>
    %c0_40 = arith.constant 0 : index
    %c0_41 = arith.constant 0 : index
    %96 = vector.load %arg11[%c0_40, %c0_41] : memref<32x64xbf16, #tpu.memory_space<vmem>>, vector<32x64xbf16>
    %cst_42 = arith.constant dense<0.000000e+00> : vector<2x64xf32>
    %97 = tpu.matmul %95, %96, %cst_42 {dimension_numbers = #tpu.dot_dimension_numbers<[1], [0], [0], [1], [0, 0, 1, 1], [], []>} : vector<2x32xbf16>, vector<32x64xbf16>, vector<2x64xf32> -> vector<2x64xf32>
    %c0_43 = arith.constant 0 : index
    %c0_44 = arith.constant 0 : index
    %98 = vector.load %arg12[%c0_43, %c0_44] : memref<1x64xf32, #tpu.memory_space<vmem>>, vector<1x64xf32>
    %99 = vector.broadcast %98 : vector<1x64xf32> to vector<2x64xf32>
    %100 = arith.addf %97, %99 : vector<2x64xf32>
    %c0_45 = arith.constant 0 : index
    %c0_46 = arith.constant 0 : index
    %101 = vector.load %arg13[%c0_45, %c0_46] : memref<32x64xbf16, #tpu.memory_space<vmem>>, vector<32x64xbf16>
    %cst_47 = arith.constant dense<0.000000e+00> : vector<2x64xf32>
    %102 = tpu.matmul %95, %101, %cst_47 {dimension_numbers = #tpu.dot_dimension_numbers<[1], [0], [0], [1], [0, 0, 1, 1], [], []>} : vector<2x32xbf16>, vector<32x64xbf16>, vector<2x64xf32> -> vector<2x64xf32>
    %c0_48 = arith.constant 0 : index
    %c0_49 = arith.constant 0 : index
    %103 = vector.load %arg14[%c0_48, %c0_49] : memref<1x64xf32, #tpu.memory_space<vmem>>, vector<1x64xf32>
    %104 = vector.broadcast %103 : vector<1x64xf32> to vector<2x64xf32>
    %105 = arith.addf %102, %104 : vector<2x64xf32>
    %c0_50 = arith.constant 0 : index
    %c0_51 = arith.constant 0 : index
    %106 = vector.load %arg2[%c0_50, %c0_51] : memref<16x48xf32, #tpu.memory_space<vmem>>, vector<16x48xf32>
    %c0_52 = arith.constant 0 : index
    %c0_53 = arith.constant 0 : index
    %107 = vector.load %arg15[%c0_52, %c0_53] : memref<1x48xf32, #tpu.memory_space<vmem>>, vector<1x48xf32>
    %c0_54 = arith.constant 0 : index
    %c0_55 = arith.constant 0 : index
    %108 = vector.load %arg16[%c0_54, %c0_55] : memref<1x48xf32, #tpu.memory_space<vmem>>, vector<1x48xf32>
    %cst_56 = arith.constant dense<0.000000e+00> : vector<16xf32>
    %109 = vector.multi_reduction <add>, %106, %cst_56 [1] : vector<16x48xf32> to vector<16xf32>
    %110 = vector.shape_cast %109 : vector<16xf32> to vector<16x1xf32>
    %cst_57 = arith.constant 4.800000e+01 : f32
    %111 = vector.broadcast %cst_57 : f32 to vector<16x1xf32>
    %112 = arith.divf %110, %111 : vector<16x1xf32>
    %113 = vector.broadcast %112 : vector<16x1xf32> to vector<16x48xf32>
    %114 = arith.subf %106, %113 : vector<16x48xf32>
    %115 = arith.mulf %114, %114 : vector<16x48xf32>
    %cst_58 = arith.constant dense<0.000000e+00> : vector<16xf32>
    %116 = vector.multi_reduction <add>, %115, %cst_58 [1] : vector<16x48xf32> to vector<16xf32>
    %117 = vector.shape_cast %116 : vector<16xf32> to vector<16x1xf32>
    %cst_59 = arith.constant 4.800000e+01 : f32
    %118 = vector.broadcast %cst_59 : f32 to vector<16x1xf32>
    %119 = arith.divf %117, %118 : vector<16x1xf32>
    %120 = vector.broadcast %112 : vector<16x1xf32> to vector<16x48xf32>
    %121 = arith.subf %106, %120 : vector<16x48xf32>
    %cst_60 = arith.constant 9.99999974E-6 : f32
    %122 = vector.broadcast %cst_60 : f32 to vector<16x1xf32>
    %123 = arith.addf %119, %122 : vector<16x1xf32>
    %124 = math.rsqrt %123 : vector<16x1xf32>
    %125 = vector.broadcast %124 : vector<16x1xf32> to vector<16x48xf32>
    %126 = arith.mulf %121, %125 : vector<16x48xf32>
    %127 = vector.broadcast %107 : vector<1x48xf32> to vector<16x48xf32>
    %128 = arith.mulf %126, %127 : vector<16x48xf32>
    %129 = vector.broadcast %108 : vector<1x48xf32> to vector<16x48xf32>
    %130 = arith.addf %128, %129 : vector<16x48xf32>
    %131 = tpu.iota {dimensions = array<i32: 1>} : vector<2x16xi32>
    %132 = tpu.iota {dimensions = array<i32: 0>} : vector<2x16xi32>
    %c8_i32_61 = arith.constant 8 : i32
    %133 = vector.broadcast %c8_i32_61 : i32 to vector<2x16xi32>
    %134 = arith.muli %132, %133 : vector<2x16xi32>
    %135 = arith.cmpi sge, %131, %134 : vector<2x16xi32>
    %c1_i32_62 = arith.constant 1 : i32
    %136 = vector.broadcast %c1_i32_62 : i32 to vector<2x16xi32>
    %137 = arith.addi %132, %136 : vector<2x16xi32>
    %c8_i32_63 = arith.constant 8 : i32
    %138 = vector.broadcast %c8_i32_63 : i32 to vector<2x16xi32>
    %139 = arith.muli %137, %138 : vector<2x16xi32>
    %140 = arith.cmpi slt, %131, %139 : vector<2x16xi32>
    %141 = arith.andi %135, %140 : vector<2x16xi1>
    %cst_64 = arith.constant 1.250000e-01 : f32
    %cst_65 = arith.constant 0.000000e+00 : f32
    %142 = vector.broadcast %cst_64 : f32 to vector<2x16xf32>
    %143 = vector.broadcast %cst_65 : f32 to vector<2x16xf32>
    %144 = arith.select %141, %142, %143 : vector<2x16xi1>, vector<2x16xf32>
    %cst_66 = arith.constant dense<0.000000e+00> : vector<2x48xf32>
    %145 = tpu.matmul %144, %130, %cst_66 {dimension_numbers = #tpu.dot_dimension_numbers<[1], [0], [0], [1], [0, 0, 1, 1], [], []>} : vector<2x16xf32>, vector<16x48xf32>, vector<2x48xf32> -> vector<2x48xf32>
    %146 = arith.truncf %145 : vector<2x48xf32> to vector<2x48xbf16>
    %c0_67 = arith.constant 0 : index
    %c0_68 = arith.constant 0 : index
    %147 = vector.load %arg17[%c0_67, %c0_68] : memref<48x64xbf16, #tpu.memory_space<vmem>>, vector<48x64xbf16>
    %cst_69 = arith.constant dense<0.000000e+00> : vector<2x64xf32>
    %148 = tpu.matmul %146, %147, %cst_69 {dimension_numbers = #tpu.dot_dimension_numbers<[1], [0], [0], [1], [0, 0, 1, 1], [], []>} : vector<2x48xbf16>, vector<48x64xbf16>, vector<2x64xf32> -> vector<2x64xf32>
    %c0_70 = arith.constant 0 : index
    %c0_71 = arith.constant 0 : index
    %149 = vector.load %arg18[%c0_70, %c0_71] : memref<1x64xf32, #tpu.memory_space<vmem>>, vector<1x64xf32>
    %150 = vector.broadcast %149 : vector<1x64xf32> to vector<2x64xf32>
    %151 = arith.addf %148, %150 : vector<2x64xf32>
    %c0_72 = arith.constant 0 : index
    %c0_73 = arith.constant 0 : index
    %152 = vector.load %arg19[%c0_72, %c0_73] : memref<48x64xbf16, #tpu.memory_space<vmem>>, vector<48x64xbf16>
    %cst_74 = arith.constant dense<0.000000e+00> : vector<2x64xf32>
    %153 = tpu.matmul %146, %152, %cst_74 {dimension_numbers = #tpu.dot_dimension_numbers<[1], [0], [0], [1], [0, 0, 1, 1], [], []>} : vector<2x48xbf16>, vector<48x64xbf16>, vector<2x64xf32> -> vector<2x64xf32>
    %c0_75 = arith.constant 0 : index
    %c0_76 = arith.constant 0 : index
    %154 = vector.load %arg20[%c0_75, %c0_76] : memref<1x64xf32, #tpu.memory_space<vmem>>, vector<1x64xf32>
    %155 = vector.broadcast %154 : vector<1x64xf32> to vector<2x64xf32>
    %156 = arith.addf %153, %155 : vector<2x64xf32>
    %157 = arith.addf %54, %105 : vector<2x64xf32>
    %158 = arith.addf %157, %156 : vector<2x64xf32>
    %cst_77 = arith.constant 3.000000e+00 : f32
    %159 = vector.broadcast %cst_77 : f32 to vector<2x64xf32>
    %160 = arith.divf %158, %159 : vector<2x64xf32>
    %161 = tpu.concatenate %49, %100, %151, %160 in 0 : vector<2x64xf32>, vector<2x64xf32>, vector<2x64xf32>, vector<2x64xf32> -> vector<8x64xf32>
    %162 = arith.truncf %161 : vector<8x64xf32> to vector<8x64xbf16>
    %c0_78 = arith.constant 0 : index
    %c0_79 = arith.constant 0 : index
    %163 = vector.load %arg21[%c0_78, %c0_79] : memref<64x128xbf16, #tpu.memory_space<vmem>>, vector<64x128xbf16>
    %cst_80 = arith.constant dense<0.000000e+00> : vector<8x128xf32>
    %164 = tpu.matmul %162, %163, %cst_80 {dimension_numbers = #tpu.dot_dimension_numbers<[1], [0], [0], [1], [0, 0, 1, 1], [], []>} : vector<8x64xbf16>, vector<64x128xbf16>, vector<8x128xf32> -> vector<8x128xf32>
    %c0_81 = arith.constant 0 : index
    %c0_82 = arith.constant 0 : index
    %165 = vector.load %arg22[%c0_81, %c0_82] : memref<1x128xf32, #tpu.memory_space<vmem>>, vector<1x128xf32>
    %166 = vector.broadcast %165 : vector<1x128xf32> to vector<8x128xf32>
    %167 = arith.addf %164, %166 : vector<8x128xf32>
    %168 = arith.addf %49, %54 : vector<2x64xf32>
    %169 = arith.addf %100, %105 : vector<2x64xf32>
    %170 = arith.addf %151, %156 : vector<2x64xf32>
    %171 = arith.truncf %168 : vector<2x64xf32> to vector<2x64xbf16>
    %c0_83 = arith.constant 0 : index
    %c0_84 = arith.constant 0 : index
    %c0_85 = arith.constant 0 : index
    %172 = vector.load %arg23[%c0_83, %c0_84, %c0_85] : memref<3x64x128xbf16, #tpu.memory_space<vmem>>, vector<1x64x128xbf16>
    %173 = vector.shape_cast %172 : vector<1x64x128xbf16> to vector<64x128xbf16>
    %cst_86 = arith.constant dense<0.000000e+00> : vector<2x128xf32>
    %174 = tpu.matmul %171, %173, %cst_86 {dimension_numbers = #tpu.dot_dimension_numbers<[1], [0], [0], [1], [0, 0, 1, 1], [], []>} : vector<2x64xbf16>, vector<64x128xbf16>, vector<2x128xf32> -> vector<2x128xf32>
    %c0_87 = arith.constant 0 : index
    %c0_88 = arith.constant 0 : index
    %c0_89 = arith.constant 0 : index
    %175 = vector.load %arg24[%c0_87, %c0_88, %c0_89] : memref<3x1x128xf32, #tpu.memory_space<vmem>>, vector<1x1x128xf32>
    %176 = vector.shape_cast %175 : vector<1x1x128xf32> to vector<1x128xf32>
    %177 = vector.broadcast %176 : vector<1x128xf32> to vector<2x128xf32>
    %178 = arith.addf %174, %177 : vector<2x128xf32>
    %179 = arith.truncf %169 : vector<2x64xf32> to vector<2x64xbf16>
    %c1 = arith.constant 1 : index
    %c0_90 = arith.constant 0 : index
    %c0_91 = arith.constant 0 : index
    %180 = vector.load %arg23[%c1, %c0_90, %c0_91] : memref<3x64x128xbf16, #tpu.memory_space<vmem>>, vector<1x64x128xbf16>
    %181 = vector.shape_cast %180 : vector<1x64x128xbf16> to vector<64x128xbf16>
    %cst_92 = arith.constant dense<0.000000e+00> : vector<2x128xf32>
    %182 = tpu.matmul %179, %181, %cst_92 {dimension_numbers = #tpu.dot_dimension_numbers<[1], [0], [0], [1], [0, 0, 1, 1], [], []>} : vector<2x64xbf16>, vector<64x128xbf16>, vector<2x128xf32> -> vector<2x128xf32>
    %c1_93 = arith.constant 1 : index
    %c0_94 = arith.constant 0 : index
    %c0_95 = arith.constant 0 : index
    %183 = vector.load %arg24[%c1_93, %c0_94, %c0_95] : memref<3x1x128xf32, #tpu.memory_space<vmem>>, vector<1x1x128xf32>
    %184 = vector.shape_cast %183 : vector<1x1x128xf32> to vector<1x128xf32>
    %185 = vector.broadcast %184 : vector<1x128xf32> to vector<2x128xf32>
    %186 = arith.addf %182, %185 : vector<2x128xf32>
    %187 = arith.truncf %170 : vector<2x64xf32> to vector<2x64xbf16>
    %c2 = arith.constant 2 : index
    %c0_96 = arith.constant 0 : index
    %c0_97 = arith.constant 0 : index
    %188 = vector.load %arg23[%c2, %c0_96, %c0_97] : memref<3x64x128xbf16, #tpu.memory_space<vmem>>, vector<1x64x128xbf16>
    %189 = vector.shape_cast %188 : vector<1x64x128xbf16> to vector<64x128xbf16>
    %cst_98 = arith.constant dense<0.000000e+00> : vector<2x128xf32>
    %190 = tpu.matmul %187, %189, %cst_98 {dimension_numbers = #tpu.dot_dimension_numbers<[1], [0], [0], [1], [0, 0, 1, 1], [], []>} : vector<2x64xbf16>, vector<64x128xbf16>, vector<2x128xf32> -> vector<2x128xf32>
    %c2_99 = arith.constant 2 : index
    %c0_100 = arith.constant 0 : index
    %c0_101 = arith.constant 0 : index
    %191 = vector.load %arg24[%c2_99, %c0_100, %c0_101] : memref<3x1x128xf32, #tpu.memory_space<vmem>>, vector<1x1x128xf32>
    %192 = vector.shape_cast %191 : vector<1x1x128xf32> to vector<1x128xf32>
    %193 = vector.broadcast %192 : vector<1x128xf32> to vector<2x128xf32>
    %194 = arith.addf %190, %193 : vector<2x128xf32>
    %195 = tpu.concatenate %178, %186, %194 in 0 : vector<2x128xf32>, vector<2x128xf32>, vector<2x128xf32> -> vector<6x128xf32>
    %196 = tpu.concatenate %49, %100, %151, %54, %105, %156 in 0 : vector<2x64xf32>, vector<2x64xf32>, vector<2x64xf32>, vector<2x64xf32>, vector<2x64xf32>, vector<2x64xf32> -> vector<12x64xf32>
    %197 = tpu.iota {dimensions = array<i32: 0>} : vector<12x12xi32>
    %198 = tpu.iota {dimensions = array<i32: 1>} : vector<12x12xi32>
    %199 = arith.subi %197, %198 : vector<12x12xi32>
    %c0_i32_102 = arith.constant 0 : i32
    %200 = vector.broadcast %c0_i32_102 : i32 to vector<12x12xi32>
    %201 = arith.cmpi eq, %199, %200 : vector<12x12xi32>
    %c2_i32 = arith.constant 2 : i32
    %202 = vector.broadcast %c2_i32 : i32 to vector<12x12xi32>
    %203 = arith.cmpi eq, %199, %202 : vector<12x12xi32>
    %c-2_i32 = arith.constant -2 : i32
    %204 = vector.broadcast %c-2_i32 : i32 to vector<12x12xi32>
    %205 = arith.cmpi eq, %199, %204 : vector<12x12xi32>
    %206 = arith.ori %203, %205 : vector<12x12xi1>
    %207 = arith.ori %201, %206 : vector<12x12xi1>
    %c4_i32_103 = arith.constant 4 : i32
    %208 = vector.broadcast %c4_i32_103 : i32 to vector<12x12xi32>
    %209 = arith.cmpi eq, %199, %208 : vector<12x12xi32>
    %c-4_i32 = arith.constant -4 : i32
    %210 = vector.broadcast %c-4_i32 : i32 to vector<12x12xi32>
    %211 = arith.cmpi eq, %199, %210 : vector<12x12xi32>
    %212 = arith.ori %209, %211 : vector<12x12xi1>
    %213 = arith.ori %207, %212 : vector<12x12xi1>
    %c6_i32 = arith.constant 6 : i32
    %214 = vector.broadcast %c6_i32 : i32 to vector<12x12xi32>
    %215 = arith.cmpi eq, %199, %214 : vector<12x12xi32>
    %c-6_i32 = arith.constant -6 : i32
    %216 = vector.broadcast %c-6_i32 : i32 to vector<12x12xi32>
    %217 = arith.cmpi eq, %199, %216 : vector<12x12xi32>
    %218 = arith.ori %215, %217 : vector<12x12xi1>
    %219 = arith.ori %213, %218 : vector<12x12xi1>
    %c8_i32_104 = arith.constant 8 : i32
    %220 = vector.broadcast %c8_i32_104 : i32 to vector<12x12xi32>
    %221 = arith.cmpi eq, %199, %220 : vector<12x12xi32>
    %c-8_i32 = arith.constant -8 : i32
    %222 = vector.broadcast %c-8_i32 : i32 to vector<12x12xi32>
    %223 = arith.cmpi eq, %199, %222 : vector<12x12xi32>
    %224 = arith.ori %221, %223 : vector<12x12xi1>
    %225 = arith.ori %219, %224 : vector<12x12xi1>
    %c10_i32 = arith.constant 10 : i32
    %226 = vector.broadcast %c10_i32 : i32 to vector<12x12xi32>
    %227 = arith.cmpi eq, %199, %226 : vector<12x12xi32>
    %c-10_i32 = arith.constant -10 : i32
    %228 = vector.broadcast %c-10_i32 : i32 to vector<12x12xi32>
    %229 = arith.cmpi eq, %199, %228 : vector<12x12xi32>
    %230 = arith.ori %227, %229 : vector<12x12xi1>
    %231 = arith.ori %225, %230 : vector<12x12xi1>
    %cst_105 = arith.constant 0.000000e+00 : f32
    %cst_106 = arith.constant -1.000000e+30 : f32
    %232 = vector.broadcast %cst_105 : f32 to vector<12x12xf32>
    %233 = vector.broadcast %cst_106 : f32 to vector<12x12xf32>
    %234 = arith.select %231, %232, %233 : vector<12x12xi1>, vector<12x12xf32>
    %235 = arith.truncf %196 : vector<12x64xf32> to vector<12x64xbf16>
    %236 = arith.truncf %196 : vector<12x64xf32> to vector<12x64xbf16>
    %c0_107 = arith.constant 0 : index
    %c0_108 = arith.constant 0 : index
    %237 = vector.load %arg25[%c0_107, %c0_108] : memref<64x64xbf16, #tpu.memory_space<vmem>>, vector<64x64xbf16>
    %cst_109 = arith.constant dense<0.000000e+00> : vector<12x64xf32>
    %238 = tpu.matmul %235, %237, %cst_109 {dimension_numbers = #tpu.dot_dimension_numbers<[1], [0], [0], [1], [0, 0, 1, 1], [], []>} : vector<12x64xbf16>, vector<64x64xbf16>, vector<12x64xf32> -> vector<12x64xf32>
    %c0_110 = arith.constant 0 : index
    %c0_111 = arith.constant 0 : index
    %239 = vector.load %arg26[%c0_110, %c0_111] : memref<1x64xf32, #tpu.memory_space<vmem>>, vector<1x64xf32>
    %240 = vector.broadcast %239 : vector<1x64xf32> to vector<12x64xf32>
    %241 = arith.addf %238, %240 : vector<12x64xf32>
    %c0_112 = arith.constant 0 : index
    %c0_113 = arith.constant 0 : index
    %242 = vector.load %arg27[%c0_112, %c0_113] : memref<64x64xbf16, #tpu.memory_space<vmem>>, vector<64x64xbf16>
    %cst_114 = arith.constant dense<0.000000e+00> : vector<12x64xf32>
    %243 = tpu.matmul %236, %242, %cst_114 {dimension_numbers = #tpu.dot_dimension_numbers<[1], [0], [0], [1], [0, 0, 1, 1], [], []>} : vector<12x64xbf16>, vector<64x64xbf16>, vector<12x64xf32> -> vector<12x64xf32>
    %c0_115 = arith.constant 0 : index
    %c0_116 = arith.constant 0 : index
    %244 = vector.load %arg28[%c0_115, %c0_116] : memref<1x64xf32, #tpu.memory_space<vmem>>, vector<1x64xf32>
    %245 = vector.broadcast %244 : vector<1x64xf32> to vector<12x64xf32>
    %246 = arith.addf %243, %245 : vector<12x64xf32>
    %c0_117 = arith.constant 0 : index
    %c0_118 = arith.constant 0 : index
    %247 = vector.load %arg29[%c0_117, %c0_118] : memref<64x64xbf16, #tpu.memory_space<vmem>>, vector<64x64xbf16>
    %cst_119 = arith.constant dense<0.000000e+00> : vector<12x64xf32>
    %248 = tpu.matmul %236, %247, %cst_119 {dimension_numbers = #tpu.dot_dimension_numbers<[1], [0], [0], [1], [0, 0, 1, 1], [], []>} : vector<12x64xbf16>, vector<64x64xbf16>, vector<12x64xf32> -> vector<12x64xf32>
    %c0_120 = arith.constant 0 : index
    %c0_121 = arith.constant 0 : index
    %249 = vector.load %arg30[%c0_120, %c0_121] : memref<1x64xf32, #tpu.memory_space<vmem>>, vector<1x64xf32>
    %250 = vector.broadcast %249 : vector<1x64xf32> to vector<12x64xf32>
    %251 = arith.addf %248, %250 : vector<12x64xf32>
    %c0_122 = arith.constant 0 : index
    %c0_123 = arith.constant 0 : index
    %252 = vector.load %arg32[%c0_122, %c0_123] : memref<1x64xf32, #tpu.memory_space<vmem>>, vector<1x64xf32>
    %253 = vector.extract_strided_slice %241 {offsets = [0, 0], sizes = [12, 32], strides = [1, 1]} : vector<12x64xf32> to vector<12x32xf32>
    %254 = vector.extract_strided_slice %246 {offsets = [0, 0], sizes = [12, 32], strides = [1, 1]} : vector<12x64xf32> to vector<12x32xf32>
    %255 = vector.extract_strided_slice %251 {offsets = [0, 0], sizes = [12, 32], strides = [1, 1]} : vector<12x64xf32> to vector<12x32xf32>
    %cst_124 = arith.constant dense<0.000000e+00> : vector<12x12xf32>
    %256 = tpu.matmul %253, %254, %cst_124 {dimension_numbers = #tpu.dot_dimension_numbers<[1], [1], [0], [0], [0, 0, 1, 0], [], []>} : vector<12x32xf32>, vector<12x32xf32>, vector<12x12xf32> -> vector<12x12xf32>
    %257 = arith.addf %256, %234 : vector<12x12xf32>
    %cst_125 = arith.constant dense<0xFF800000> : vector<12xf32>
    %258 = vector.multi_reduction <maximumf>, %257, %cst_125 [1] : vector<12x12xf32> to vector<12xf32>
    %259 = vector.shape_cast %258 : vector<12xf32> to vector<12x1xf32>
    %260 = vector.broadcast %259 : vector<12x1xf32> to vector<12x12xf32>
    %261 = arith.subf %257, %260 : vector<12x12xf32>
    %262 = math.exp %261 : vector<12x12xf32>
    %cst_126 = arith.constant dense<0.000000e+00> : vector<12xf32>
    %263 = vector.multi_reduction <add>, %262, %cst_126 [1] : vector<12x12xf32> to vector<12xf32>
    %264 = vector.shape_cast %263 : vector<12xf32> to vector<12x1xf32>
    %265 = tpu.reciprocal %264 {approx = true} : vector<12x1xf32> -> vector<12x1xf32>
    %266 = vector.broadcast %265 : vector<12x1xf32> to vector<12x12xf32>
    %267 = arith.mulf %262, %266 : vector<12x12xf32>
    %cst_127 = arith.constant dense<0.000000e+00> : vector<12x32xf32>
    %268 = tpu.matmul %267, %255, %cst_127 {dimension_numbers = #tpu.dot_dimension_numbers<[1], [0], [0], [1], [0, 0, 1, 1], [], []>} : vector<12x12xf32>, vector<12x32xf32>, vector<12x32xf32> -> vector<12x32xf32>
    %269 = arith.truncf %268 : vector<12x32xf32> to vector<12x32xbf16>
    %c0_128 = arith.constant 0 : index
    %c0_129 = arith.constant 0 : index
    %c0_130 = arith.constant 0 : index
    %270 = vector.load %arg31[%c0_128, %c0_129, %c0_130] : memref<2x32x64xbf16, #tpu.memory_space<vmem>>, vector<1x32x64xbf16>
    %271 = vector.shape_cast %270 : vector<1x32x64xbf16> to vector<32x64xbf16>
    %cst_131 = arith.constant dense<0.000000e+00> : vector<12x64xf32>
    %272 = tpu.matmul %269, %271, %cst_131 {dimension_numbers = #tpu.dot_dimension_numbers<[1], [0], [0], [1], [0, 0, 1, 1], [], []>} : vector<12x32xbf16>, vector<32x64xbf16>, vector<12x64xf32> -> vector<12x64xf32>
    %273 = vector.broadcast %252 : vector<1x64xf32> to vector<12x64xf32>
    %274 = arith.addf %273, %272 : vector<12x64xf32>
    %275 = vector.extract_strided_slice %241 {offsets = [0, 32], sizes = [12, 32], strides = [1, 1]} : vector<12x64xf32> to vector<12x32xf32>
    %276 = vector.extract_strided_slice %246 {offsets = [0, 32], sizes = [12, 32], strides = [1, 1]} : vector<12x64xf32> to vector<12x32xf32>
    %277 = vector.extract_strided_slice %251 {offsets = [0, 32], sizes = [12, 32], strides = [1, 1]} : vector<12x64xf32> to vector<12x32xf32>
    %cst_132 = arith.constant dense<0.000000e+00> : vector<12x12xf32>
    %278 = tpu.matmul %275, %276, %cst_132 {dimension_numbers = #tpu.dot_dimension_numbers<[1], [1], [0], [0], [0, 0, 1, 0], [], []>} : vector<12x32xf32>, vector<12x32xf32>, vector<12x12xf32> -> vector<12x12xf32>
    %279 = arith.addf %278, %234 : vector<12x12xf32>
    %cst_133 = arith.constant dense<0xFF800000> : vector<12xf32>
    %280 = vector.multi_reduction <maximumf>, %279, %cst_133 [1] : vector<12x12xf32> to vector<12xf32>
    %281 = vector.shape_cast %280 : vector<12xf32> to vector<12x1xf32>
    %282 = vector.broadcast %281 : vector<12x1xf32> to vector<12x12xf32>
    %283 = arith.subf %279, %282 : vector<12x12xf32>
    %284 = math.exp %283 : vector<12x12xf32>
    %cst_134 = arith.constant dense<0.000000e+00> : vector<12xf32>
    %285 = vector.multi_reduction <add>, %284, %cst_134 [1] : vector<12x12xf32> to vector<12xf32>
    %286 = vector.shape_cast %285 : vector<12xf32> to vector<12x1xf32>
    %287 = tpu.reciprocal %286 {approx = true} : vector<12x1xf32> -> vector<12x1xf32>
    %288 = vector.broadcast %287 : vector<12x1xf32> to vector<12x12xf32>
    %289 = arith.mulf %284, %288 : vector<12x12xf32>
    %cst_135 = arith.constant dense<0.000000e+00> : vector<12x32xf32>
    %290 = tpu.matmul %289, %277, %cst_135 {dimension_numbers = #tpu.dot_dimension_numbers<[1], [0], [0], [1], [0, 0, 1, 1], [], []>} : vector<12x12xf32>, vector<12x32xf32>, vector<12x32xf32> -> vector<12x32xf32>
    %291 = arith.truncf %290 : vector<12x32xf32> to vector<12x32xbf16>
    %c1_136 = arith.constant 1 : index
    %c0_137 = arith.constant 0 : index
    %c0_138 = arith.constant 0 : index
    %292 = vector.load %arg31[%c1_136, %c0_137, %c0_138] : memref<2x32x64xbf16, #tpu.memory_space<vmem>>, vector<1x32x64xbf16>
    %293 = vector.shape_cast %292 : vector<1x32x64xbf16> to vector<32x64xbf16>
    %cst_139 = arith.constant dense<0.000000e+00> : vector<12x64xf32>
    %294 = tpu.matmul %291, %293, %cst_139 {dimension_numbers = #tpu.dot_dimension_numbers<[1], [0], [0], [1], [0, 0, 1, 1], [], []>} : vector<12x32xbf16>, vector<32x64xbf16>, vector<12x64xf32> -> vector<12x64xf32>
    %295 = arith.addf %274, %294 : vector<12x64xf32>
    %296 = arith.addf %196, %295 : vector<12x64xf32>
    %c0_140 = arith.constant 0 : index
    %c0_141 = arith.constant 0 : index
    %297 = vector.load %arg41[%c0_140, %c0_141] : memref<1x64xf32, #tpu.memory_space<vmem>>, vector<1x64xf32>
    %c0_142 = arith.constant 0 : index
    %c0_143 = arith.constant 0 : index
    %298 = vector.load %arg42[%c0_142, %c0_143] : memref<1x64xf32, #tpu.memory_space<vmem>>, vector<1x64xf32>
    %cst_144 = arith.constant dense<0.000000e+00> : vector<12xf32>
    %299 = vector.multi_reduction <add>, %296, %cst_144 [1] : vector<12x64xf32> to vector<12xf32>
    %300 = vector.shape_cast %299 : vector<12xf32> to vector<12x1xf32>
    %cst_145 = arith.constant 6.400000e+01 : f32
    %301 = vector.broadcast %cst_145 : f32 to vector<12x1xf32>
    %302 = arith.divf %300, %301 : vector<12x1xf32>
    %303 = vector.broadcast %302 : vector<12x1xf32> to vector<12x64xf32>
    %304 = arith.subf %296, %303 : vector<12x64xf32>
    %305 = arith.mulf %304, %304 : vector<12x64xf32>
    %cst_146 = arith.constant dense<0.000000e+00> : vector<12xf32>
    %306 = vector.multi_reduction <add>, %305, %cst_146 [1] : vector<12x64xf32> to vector<12xf32>
    %307 = vector.shape_cast %306 : vector<12xf32> to vector<12x1xf32>
    %cst_147 = arith.constant 6.400000e+01 : f32
    %308 = vector.broadcast %cst_147 : f32 to vector<12x1xf32>
    %309 = arith.divf %307, %308 : vector<12x1xf32>
    %310 = vector.broadcast %302 : vector<12x1xf32> to vector<12x64xf32>
    %311 = arith.subf %296, %310 : vector<12x64xf32>
    %cst_148 = arith.constant 9.99999974E-6 : f32
    %312 = vector.broadcast %cst_148 : f32 to vector<12x1xf32>
    %313 = arith.addf %309, %312 : vector<12x1xf32>
    %314 = math.rsqrt %313 : vector<12x1xf32>
    %315 = vector.broadcast %314 : vector<12x1xf32> to vector<12x64xf32>
    %316 = arith.mulf %311, %315 : vector<12x64xf32>
    %317 = vector.broadcast %297 : vector<1x64xf32> to vector<12x64xf32>
    %318 = arith.mulf %316, %317 : vector<12x64xf32>
    %319 = vector.broadcast %298 : vector<1x64xf32> to vector<12x64xf32>
    %320 = arith.addf %318, %319 : vector<12x64xf32>
    %321 = arith.truncf %320 : vector<12x64xf32> to vector<12x64xbf16>
    %322 = arith.truncf %196 : vector<12x64xf32> to vector<12x64xbf16>
    %c0_149 = arith.constant 0 : index
    %c0_150 = arith.constant 0 : index
    %323 = vector.load %arg33[%c0_149, %c0_150] : memref<64x64xbf16, #tpu.memory_space<vmem>>, vector<64x64xbf16>
    %cst_151 = arith.constant dense<0.000000e+00> : vector<12x64xf32>
    %324 = tpu.matmul %321, %323, %cst_151 {dimension_numbers = #tpu.dot_dimension_numbers<[1], [0], [0], [1], [0, 0, 1, 1], [], []>} : vector<12x64xbf16>, vector<64x64xbf16>, vector<12x64xf32> -> vector<12x64xf32>
    %c0_152 = arith.constant 0 : index
    %c0_153 = arith.constant 0 : index
    %325 = vector.load %arg34[%c0_152, %c0_153] : memref<1x64xf32, #tpu.memory_space<vmem>>, vector<1x64xf32>
    %326 = vector.broadcast %325 : vector<1x64xf32> to vector<12x64xf32>
    %327 = arith.addf %324, %326 : vector<12x64xf32>
    %c0_154 = arith.constant 0 : index
    %c0_155 = arith.constant 0 : index
    %328 = vector.load %arg35[%c0_154, %c0_155] : memref<64x64xbf16, #tpu.memory_space<vmem>>, vector<64x64xbf16>
    %cst_156 = arith.constant dense<0.000000e+00> : vector<12x64xf32>
    %329 = tpu.matmul %322, %328, %cst_156 {dimension_numbers = #tpu.dot_dimension_numbers<[1], [0], [0], [1], [0, 0, 1, 1], [], []>} : vector<12x64xbf16>, vector<64x64xbf16>, vector<12x64xf32> -> vector<12x64xf32>
    %c0_157 = arith.constant 0 : index
    %c0_158 = arith.constant 0 : index
    %330 = vector.load %arg36[%c0_157, %c0_158] : memref<1x64xf32, #tpu.memory_space<vmem>>, vector<1x64xf32>
    %331 = vector.broadcast %330 : vector<1x64xf32> to vector<12x64xf32>
    %332 = arith.addf %329, %331 : vector<12x64xf32>
    %c0_159 = arith.constant 0 : index
    %c0_160 = arith.constant 0 : index
    %333 = vector.load %arg37[%c0_159, %c0_160] : memref<64x64xbf16, #tpu.memory_space<vmem>>, vector<64x64xbf16>
    %cst_161 = arith.constant dense<0.000000e+00> : vector<12x64xf32>
    %334 = tpu.matmul %322, %333, %cst_161 {dimension_numbers = #tpu.dot_dimension_numbers<[1], [0], [0], [1], [0, 0, 1, 1], [], []>} : vector<12x64xbf16>, vector<64x64xbf16>, vector<12x64xf32> -> vector<12x64xf32>
    %c0_162 = arith.constant 0 : index
    %c0_163 = arith.constant 0 : index
    %335 = vector.load %arg38[%c0_162, %c0_163] : memref<1x64xf32, #tpu.memory_space<vmem>>, vector<1x64xf32>
    %336 = vector.broadcast %335 : vector<1x64xf32> to vector<12x64xf32>
    %337 = arith.addf %334, %336 : vector<12x64xf32>
    %c0_164 = arith.constant 0 : index
    %c0_165 = arith.constant 0 : index
    %338 = vector.load %arg40[%c0_164, %c0_165] : memref<1x64xf32, #tpu.memory_space<vmem>>, vector<1x64xf32>
    %339 = vector.extract_strided_slice %327 {offsets = [0, 0], sizes = [12, 32], strides = [1, 1]} : vector<12x64xf32> to vector<12x32xf32>
    %340 = vector.extract_strided_slice %332 {offsets = [0, 0], sizes = [12, 32], strides = [1, 1]} : vector<12x64xf32> to vector<12x32xf32>
    %341 = vector.extract_strided_slice %337 {offsets = [0, 0], sizes = [12, 32], strides = [1, 1]} : vector<12x64xf32> to vector<12x32xf32>
    %cst_166 = arith.constant dense<0.000000e+00> : vector<12x12xf32>
    %342 = tpu.matmul %339, %340, %cst_166 {dimension_numbers = #tpu.dot_dimension_numbers<[1], [1], [0], [0], [0, 0, 1, 0], [], []>} : vector<12x32xf32>, vector<12x32xf32>, vector<12x12xf32> -> vector<12x12xf32>
    %343 = arith.addf %342, %234 : vector<12x12xf32>
    %cst_167 = arith.constant dense<0xFF800000> : vector<12xf32>
    %344 = vector.multi_reduction <maximumf>, %343, %cst_167 [1] : vector<12x12xf32> to vector<12xf32>
    %345 = vector.shape_cast %344 : vector<12xf32> to vector<12x1xf32>
    %346 = vector.broadcast %345 : vector<12x1xf32> to vector<12x12xf32>
    %347 = arith.subf %343, %346 : vector<12x12xf32>
    %348 = math.exp %347 : vector<12x12xf32>
    %cst_168 = arith.constant dense<0.000000e+00> : vector<12xf32>
    %349 = vector.multi_reduction <add>, %348, %cst_168 [1] : vector<12x12xf32> to vector<12xf32>
    %350 = vector.shape_cast %349 : vector<12xf32> to vector<12x1xf32>
    %351 = tpu.reciprocal %350 {approx = true} : vector<12x1xf32> -> vector<12x1xf32>
    %352 = vector.broadcast %351 : vector<12x1xf32> to vector<12x12xf32>
    %353 = arith.mulf %348, %352 : vector<12x12xf32>
    %cst_169 = arith.constant dense<0.000000e+00> : vector<12x32xf32>
    %354 = tpu.matmul %353, %341, %cst_169 {dimension_numbers = #tpu.dot_dimension_numbers<[1], [0], [0], [1], [0, 0, 1, 1], [], []>} : vector<12x12xf32>, vector<12x32xf32>, vector<12x32xf32> -> vector<12x32xf32>
    %355 = arith.truncf %354 : vector<12x32xf32> to vector<12x32xbf16>
    %c0_170 = arith.constant 0 : index
    %c0_171 = arith.constant 0 : index
    %c0_172 = arith.constant 0 : index
    %356 = vector.load %arg39[%c0_170, %c0_171, %c0_172] : memref<2x32x64xbf16, #tpu.memory_space<vmem>>, vector<1x32x64xbf16>
    %357 = vector.shape_cast %356 : vector<1x32x64xbf16> to vector<32x64xbf16>
    %cst_173 = arith.constant dense<0.000000e+00> : vector<12x64xf32>
    %358 = tpu.matmul %355, %357, %cst_173 {dimension_numbers = #tpu.dot_dimension_numbers<[1], [0], [0], [1], [0, 0, 1, 1], [], []>} : vector<12x32xbf16>, vector<32x64xbf16>, vector<12x64xf32> -> vector<12x64xf32>
    %359 = vector.broadcast %338 : vector<1x64xf32> to vector<12x64xf32>
    %360 = arith.addf %359, %358 : vector<12x64xf32>
    %361 = vector.extract_strided_slice %327 {offsets = [0, 32], sizes = [12, 32], strides = [1, 1]} : vector<12x64xf32> to vector<12x32xf32>
    %362 = vector.extract_strided_slice %332 {offsets = [0, 32], sizes = [12, 32], strides = [1, 1]} : vector<12x64xf32> to vector<12x32xf32>
    %363 = vector.extract_strided_slice %337 {offsets = [0, 32], sizes = [12, 32], strides = [1, 1]} : vector<12x64xf32> to vector<12x32xf32>
    %cst_174 = arith.constant dense<0.000000e+00> : vector<12x12xf32>
    %364 = tpu.matmul %361, %362, %cst_174 {dimension_numbers = #tpu.dot_dimension_numbers<[1], [1], [0], [0], [0, 0, 1, 0], [], []>} : vector<12x32xf32>, vector<12x32xf32>, vector<12x12xf32> -> vector<12x12xf32>
    %365 = arith.addf %364, %234 : vector<12x12xf32>
    %cst_175 = arith.constant dense<0xFF800000> : vector<12xf32>
    %366 = vector.multi_reduction <maximumf>, %365, %cst_175 [1] : vector<12x12xf32> to vector<12xf32>
    %367 = vector.shape_cast %366 : vector<12xf32> to vector<12x1xf32>
    %368 = vector.broadcast %367 : vector<12x1xf32> to vector<12x12xf32>
    %369 = arith.subf %365, %368 : vector<12x12xf32>
    %370 = math.exp %369 : vector<12x12xf32>
    %cst_176 = arith.constant dense<0.000000e+00> : vector<12xf32>
    %371 = vector.multi_reduction <add>, %370, %cst_176 [1] : vector<12x12xf32> to vector<12xf32>
    %372 = vector.shape_cast %371 : vector<12xf32> to vector<12x1xf32>
    %373 = tpu.reciprocal %372 {approx = true} : vector<12x1xf32> -> vector<12x1xf32>
    %374 = vector.broadcast %373 : vector<12x1xf32> to vector<12x12xf32>
    %375 = arith.mulf %370, %374 : vector<12x12xf32>
    %cst_177 = arith.constant dense<0.000000e+00> : vector<12x32xf32>
    %376 = tpu.matmul %375, %363, %cst_177 {dimension_numbers = #tpu.dot_dimension_numbers<[1], [0], [0], [1], [0, 0, 1, 1], [], []>} : vector<12x12xf32>, vector<12x32xf32>, vector<12x32xf32> -> vector<12x32xf32>
    %377 = arith.truncf %376 : vector<12x32xf32> to vector<12x32xbf16>
    %c1_178 = arith.constant 1 : index
    %c0_179 = arith.constant 0 : index
    %c0_180 = arith.constant 0 : index
    %378 = vector.load %arg39[%c1_178, %c0_179, %c0_180] : memref<2x32x64xbf16, #tpu.memory_space<vmem>>, vector<1x32x64xbf16>
    %379 = vector.shape_cast %378 : vector<1x32x64xbf16> to vector<32x64xbf16>
    %cst_181 = arith.constant dense<0.000000e+00> : vector<12x64xf32>
    %380 = tpu.matmul %377, %379, %cst_181 {dimension_numbers = #tpu.dot_dimension_numbers<[1], [0], [0], [1], [0, 0, 1, 1], [], []>} : vector<12x32xbf16>, vector<32x64xbf16>, vector<12x64xf32> -> vector<12x64xf32>
    %381 = arith.addf %360, %380 : vector<12x64xf32>
    %382 = arith.addf %320, %381 : vector<12x64xf32>
    %c0_182 = arith.constant 0 : index
    %c0_183 = arith.constant 0 : index
    %383 = vector.load %arg43[%c0_182, %c0_183] : memref<1x64xf32, #tpu.memory_space<vmem>>, vector<1x64xf32>
    %c0_184 = arith.constant 0 : index
    %c0_185 = arith.constant 0 : index
    %384 = vector.load %arg44[%c0_184, %c0_185] : memref<1x64xf32, #tpu.memory_space<vmem>>, vector<1x64xf32>
    %cst_186 = arith.constant dense<0.000000e+00> : vector<12xf32>
    %385 = vector.multi_reduction <add>, %382, %cst_186 [1] : vector<12x64xf32> to vector<12xf32>
    %386 = vector.shape_cast %385 : vector<12xf32> to vector<12x1xf32>
    %cst_187 = arith.constant 6.400000e+01 : f32
    %387 = vector.broadcast %cst_187 : f32 to vector<12x1xf32>
    %388 = arith.divf %386, %387 : vector<12x1xf32>
    %389 = vector.broadcast %388 : vector<12x1xf32> to vector<12x64xf32>
    %390 = arith.subf %382, %389 : vector<12x64xf32>
    %391 = arith.mulf %390, %390 : vector<12x64xf32>
    %cst_188 = arith.constant dense<0.000000e+00> : vector<12xf32>
    %392 = vector.multi_reduction <add>, %391, %cst_188 [1] : vector<12x64xf32> to vector<12xf32>
    %393 = vector.shape_cast %392 : vector<12xf32> to vector<12x1xf32>
    %cst_189 = arith.constant 6.400000e+01 : f32
    %394 = vector.broadcast %cst_189 : f32 to vector<12x1xf32>
    %395 = arith.divf %393, %394 : vector<12x1xf32>
    %396 = vector.broadcast %388 : vector<12x1xf32> to vector<12x64xf32>
    %397 = arith.subf %382, %396 : vector<12x64xf32>
    %cst_190 = arith.constant 9.99999974E-6 : f32
    %398 = vector.broadcast %cst_190 : f32 to vector<12x1xf32>
    %399 = arith.addf %395, %398 : vector<12x1xf32>
    %400 = math.rsqrt %399 : vector<12x1xf32>
    %401 = vector.broadcast %400 : vector<12x1xf32> to vector<12x64xf32>
    %402 = arith.mulf %397, %401 : vector<12x64xf32>
    %403 = vector.broadcast %383 : vector<1x64xf32> to vector<12x64xf32>
    %404 = arith.mulf %402, %403 : vector<12x64xf32>
    %405 = vector.broadcast %384 : vector<1x64xf32> to vector<12x64xf32>
    %406 = arith.addf %404, %405 : vector<12x64xf32>
    %c0_i32_191 = arith.constant 0 : i32
    %407 = tpu.memref_slice %arg58[%c0_i32_191] : memref<2x!tpu.dma_semaphore, #tpu.memory_space<semaphore_mem>> -> memref<1x!tpu.dma_semaphore, #tpu.memory_space<semaphore_mem>>
    %408 = tpu.memref_squeeze %407 : memref<1x!tpu.dma_semaphore, #tpu.memory_space<semaphore_mem>> -> memref<!tpu.dma_semaphore, #tpu.memory_space<semaphore_mem>>
    tpu.wait_dma2 semaphore(%408 : memref<!tpu.dma_semaphore, #tpu.memory_space<semaphore_mem>>) src(%arg47 : memref<64x2048xbf16, #tpu.memory_space<any>>) dst(%arg56 : memref<64x2048xbf16, #tpu.memory_space<vmem>>)
    %409 = arith.truncf %406 : vector<12x64xf32> to vector<12x64xbf16>
    %c0_192 = arith.constant 0 : index
    %c0_193 = arith.constant 0 : index
    %410 = vector.load %arg56[%c0_192, %c0_193] : memref<64x2048xbf16, #tpu.memory_space<vmem>>, vector<64x2048xbf16>
    %cst_194 = arith.constant dense<0.000000e+00> : vector<12x2048xf32>
    %411 = tpu.matmul %409, %410, %cst_194 {dimension_numbers = #tpu.dot_dimension_numbers<[1], [0], [0], [1], [0, 0, 1, 1], [], []>} : vector<12x64xbf16>, vector<64x2048xbf16>, vector<12x2048xf32> -> vector<12x2048xf32>
    %c0_195 = arith.constant 0 : index
    %c0_196 = arith.constant 0 : index
    %412 = vector.load %arg48[%c0_195, %c0_196] : memref<1x2048xf32, #tpu.memory_space<vmem>>, vector<1x2048xf32>
    %413 = vector.broadcast %412 : vector<1x2048xf32> to vector<12x2048xf32>
    %414 = arith.addf %411, %413 : vector<12x2048xf32>
    %cst_197 = arith.constant 0.000000e+00 : f32
    %415 = vector.broadcast %cst_197 : f32 to vector<12x2048xf32>
    %416 = arith.maximumf %414, %415 : vector<12x2048xf32>
    %c1_i32_198 = arith.constant 1 : i32
    %417 = tpu.memref_slice %arg58[%c1_i32_198] : memref<2x!tpu.dma_semaphore, #tpu.memory_space<semaphore_mem>> -> memref<1x!tpu.dma_semaphore, #tpu.memory_space<semaphore_mem>>
    %418 = tpu.memref_squeeze %417 : memref<1x!tpu.dma_semaphore, #tpu.memory_space<semaphore_mem>> -> memref<!tpu.dma_semaphore, #tpu.memory_space<semaphore_mem>>
    tpu.wait_dma2 semaphore(%418 : memref<!tpu.dma_semaphore, #tpu.memory_space<semaphore_mem>>) src(%arg49 : memref<2048x64xbf16, #tpu.memory_space<any>>) dst(%arg57 : memref<2048x64xbf16, #tpu.memory_space<vmem>>)
    %419 = arith.truncf %416 : vector<12x2048xf32> to vector<12x2048xbf16>
    %c0_199 = arith.constant 0 : index
    %c0_200 = arith.constant 0 : index
    %420 = vector.load %arg57[%c0_199, %c0_200] : memref<2048x64xbf16, #tpu.memory_space<vmem>>, vector<2048x64xbf16>
    %cst_201 = arith.constant dense<0.000000e+00> : vector<12x64xf32>
    %421 = tpu.matmul %419, %420, %cst_201 {dimension_numbers = #tpu.dot_dimension_numbers<[1], [0], [0], [1], [0, 0, 1, 1], [], []>} : vector<12x2048xbf16>, vector<2048x64xbf16>, vector<12x64xf32> -> vector<12x64xf32>
    %c0_202 = arith.constant 0 : index
    %c0_203 = arith.constant 0 : index
    %422 = vector.load %arg50[%c0_202, %c0_203] : memref<1x64xf32, #tpu.memory_space<vmem>>, vector<1x64xf32>
    %423 = vector.broadcast %422 : vector<1x64xf32> to vector<12x64xf32>
    %424 = arith.addf %421, %423 : vector<12x64xf32>
    %425 = arith.addf %406, %424 : vector<12x64xf32>
    %c0_204 = arith.constant 0 : index
    %c0_205 = arith.constant 0 : index
    %426 = vector.load %arg45[%c0_204, %c0_205] : memref<1x64xf32, #tpu.memory_space<vmem>>, vector<1x64xf32>
    %c0_206 = arith.constant 0 : index
    %c0_207 = arith.constant 0 : index
    %427 = vector.load %arg46[%c0_206, %c0_207] : memref<1x64xf32, #tpu.memory_space<vmem>>, vector<1x64xf32>
    %cst_208 = arith.constant dense<0.000000e+00> : vector<12xf32>
    %428 = vector.multi_reduction <add>, %425, %cst_208 [1] : vector<12x64xf32> to vector<12xf32>
    %429 = vector.shape_cast %428 : vector<12xf32> to vector<12x1xf32>
    %cst_209 = arith.constant 6.400000e+01 : f32
    %430 = vector.broadcast %cst_209 : f32 to vector<12x1xf32>
    %431 = arith.divf %429, %430 : vector<12x1xf32>
    %432 = vector.broadcast %431 : vector<12x1xf32> to vector<12x64xf32>
    %433 = arith.subf %425, %432 : vector<12x64xf32>
    %434 = arith.mulf %433, %433 : vector<12x64xf32>
    %cst_210 = arith.constant dense<0.000000e+00> : vector<12xf32>
    %435 = vector.multi_reduction <add>, %434, %cst_210 [1] : vector<12x64xf32> to vector<12xf32>
    %436 = vector.shape_cast %435 : vector<12xf32> to vector<12x1xf32>
    %cst_211 = arith.constant 6.400000e+01 : f32
    %437 = vector.broadcast %cst_211 : f32 to vector<12x1xf32>
    %438 = arith.divf %436, %437 : vector<12x1xf32>
    %439 = vector.broadcast %431 : vector<12x1xf32> to vector<12x64xf32>
    %440 = arith.subf %425, %439 : vector<12x64xf32>
    %cst_212 = arith.constant 9.99999974E-6 : f32
    %441 = vector.broadcast %cst_212 : f32 to vector<12x1xf32>
    %442 = arith.addf %438, %441 : vector<12x1xf32>
    %443 = math.rsqrt %442 : vector<12x1xf32>
    %444 = vector.broadcast %443 : vector<12x1xf32> to vector<12x64xf32>
    %445 = arith.mulf %440, %444 : vector<12x64xf32>
    %446 = vector.broadcast %426 : vector<1x64xf32> to vector<12x64xf32>
    %447 = arith.mulf %445, %446 : vector<12x64xf32>
    %448 = vector.broadcast %427 : vector<1x64xf32> to vector<12x64xf32>
    %449 = arith.addf %447, %448 : vector<12x64xf32>
    %c0_213 = arith.constant 0 : index
    %c0_214 = arith.constant 0 : index
    %450 = vector.load %arg52[%c0_213, %c0_214] : memref<1x192xf32, #tpu.memory_space<vmem>>, vector<1x192xf32>
    %451 = vector.extract_strided_slice %449 {offsets = [0, 0], sizes = [2, 64], strides = [1, 1]} : vector<12x64xf32> to vector<2x64xf32>
    %452 = arith.truncf %451 : vector<2x64xf32> to vector<2x64xbf16>
    %c0_215 = arith.constant 0 : index
    %c0_216 = arith.constant 0 : index
    %c0_217 = arith.constant 0 : index
    %453 = vector.load %arg51[%c0_215, %c0_216, %c0_217] : memref<6x64x192xbf16, #tpu.memory_space<vmem>>, vector<1x64x192xbf16>
    %454 = vector.shape_cast %453 : vector<1x64x192xbf16> to vector<64x192xbf16>
    %cst_218 = arith.constant dense<0.000000e+00> : vector<2x192xf32>
    %455 = tpu.matmul %452, %454, %cst_218 {dimension_numbers = #tpu.dot_dimension_numbers<[1], [0], [0], [1], [0, 0, 1, 1], [], []>} : vector<2x64xbf16>, vector<64x192xbf16>, vector<2x192xf32> -> vector<2x192xf32>
    %456 = vector.broadcast %450 : vector<1x192xf32> to vector<2x192xf32>
    %457 = arith.addf %456, %455 : vector<2x192xf32>
    %458 = vector.extract_strided_slice %449 {offsets = [2, 0], sizes = [2, 64], strides = [1, 1]} : vector<12x64xf32> to vector<2x64xf32>
    %459 = arith.truncf %458 : vector<2x64xf32> to vector<2x64xbf16>
    %c1_219 = arith.constant 1 : index
    %c0_220 = arith.constant 0 : index
    %c0_221 = arith.constant 0 : index
    %460 = vector.load %arg51[%c1_219, %c0_220, %c0_221] : memref<6x64x192xbf16, #tpu.memory_space<vmem>>, vector<1x64x192xbf16>
    %461 = vector.shape_cast %460 : vector<1x64x192xbf16> to vector<64x192xbf16>
    %cst_222 = arith.constant dense<0.000000e+00> : vector<2x192xf32>
    %462 = tpu.matmul %459, %461, %cst_222 {dimension_numbers = #tpu.dot_dimension_numbers<[1], [0], [0], [1], [0, 0, 1, 1], [], []>} : vector<2x64xbf16>, vector<64x192xbf16>, vector<2x192xf32> -> vector<2x192xf32>
    %463 = arith.addf %457, %462 : vector<2x192xf32>
    %464 = vector.extract_strided_slice %449 {offsets = [4, 0], sizes = [2, 64], strides = [1, 1]} : vector<12x64xf32> to vector<2x64xf32>
    %465 = arith.truncf %464 : vector<2x64xf32> to vector<2x64xbf16>
    %c2_223 = arith.constant 2 : index
    %c0_224 = arith.constant 0 : index
    %c0_225 = arith.constant 0 : index
    %466 = vector.load %arg51[%c2_223, %c0_224, %c0_225] : memref<6x64x192xbf16, #tpu.memory_space<vmem>>, vector<1x64x192xbf16>
    %467 = vector.shape_cast %466 : vector<1x64x192xbf16> to vector<64x192xbf16>
    %cst_226 = arith.constant dense<0.000000e+00> : vector<2x192xf32>
    %468 = tpu.matmul %465, %467, %cst_226 {dimension_numbers = #tpu.dot_dimension_numbers<[1], [0], [0], [1], [0, 0, 1, 1], [], []>} : vector<2x64xbf16>, vector<64x192xbf16>, vector<2x192xf32> -> vector<2x192xf32>
    %469 = arith.addf %463, %468 : vector<2x192xf32>
    %470 = vector.extract_strided_slice %449 {offsets = [6, 0], sizes = [2, 64], strides = [1, 1]} : vector<12x64xf32> to vector<2x64xf32>
    %471 = arith.truncf %470 : vector<2x64xf32> to vector<2x64xbf16>
    %c3 = arith.constant 3 : index
    %c0_227 = arith.constant 0 : index
    %c0_228 = arith.constant 0 : index
    %472 = vector.load %arg51[%c3, %c0_227, %c0_228] : memref<6x64x192xbf16, #tpu.memory_space<vmem>>, vector<1x64x192xbf16>
    %473 = vector.shape_cast %472 : vector<1x64x192xbf16> to vector<64x192xbf16>
    %cst_229 = arith.constant dense<0.000000e+00> : vector<2x192xf32>
    %474 = tpu.matmul %471, %473, %cst_229 {dimension_numbers = #tpu.dot_dimension_numbers<[1], [0], [0], [1], [0, 0, 1, 1], [], []>} : vector<2x64xbf16>, vector<64x192xbf16>, vector<2x192xf32> -> vector<2x192xf32>
    %475 = arith.addf %469, %474 : vector<2x192xf32>
    %476 = vector.extract_strided_slice %449 {offsets = [8, 0], sizes = [2, 64], strides = [1, 1]} : vector<12x64xf32> to vector<2x64xf32>
    %477 = arith.truncf %476 : vector<2x64xf32> to vector<2x64xbf16>
    %c4 = arith.constant 4 : index
    %c0_230 = arith.constant 0 : index
    %c0_231 = arith.constant 0 : index
    %478 = vector.load %arg51[%c4, %c0_230, %c0_231] : memref<6x64x192xbf16, #tpu.memory_space<vmem>>, vector<1x64x192xbf16>
    %479 = vector.shape_cast %478 : vector<1x64x192xbf16> to vector<64x192xbf16>
    %cst_232 = arith.constant dense<0.000000e+00> : vector<2x192xf32>
    %480 = tpu.matmul %477, %479, %cst_232 {dimension_numbers = #tpu.dot_dimension_numbers<[1], [0], [0], [1], [0, 0, 1, 1], [], []>} : vector<2x64xbf16>, vector<64x192xbf16>, vector<2x192xf32> -> vector<2x192xf32>
    %481 = arith.addf %475, %480 : vector<2x192xf32>
    %482 = vector.extract_strided_slice %449 {offsets = [10, 0], sizes = [2, 64], strides = [1, 1]} : vector<12x64xf32> to vector<2x64xf32>
    %483 = arith.truncf %482 : vector<2x64xf32> to vector<2x64xbf16>
    %c5 = arith.constant 5 : index
    %c0_233 = arith.constant 0 : index
    %c0_234 = arith.constant 0 : index
    %484 = vector.load %arg51[%c5, %c0_233, %c0_234] : memref<6x64x192xbf16, #tpu.memory_space<vmem>>, vector<1x64x192xbf16>
    %485 = vector.shape_cast %484 : vector<1x64x192xbf16> to vector<64x192xbf16>
    %cst_235 = arith.constant dense<0.000000e+00> : vector<2x192xf32>
    %486 = tpu.matmul %483, %485, %cst_235 {dimension_numbers = #tpu.dot_dimension_numbers<[1], [0], [0], [1], [0, 0, 1, 1], [], []>} : vector<2x64xbf16>, vector<64x192xbf16>, vector<2x192xf32> -> vector<2x192xf32>
    %487 = arith.addf %481, %486 : vector<2x192xf32>
    %cst_236 = arith.constant 0.000000e+00 : f32
    %488 = vector.broadcast %cst_236 : f32 to vector<2x192xf32>
    %489 = arith.maximumf %487, %488 : vector<2x192xf32>
    %490 = arith.truncf %489 : vector<2x192xf32> to vector<2x192xbf16>
    %c0_237 = arith.constant 0 : index
    %c0_238 = arith.constant 0 : index
    %491 = vector.load %arg53[%c0_237, %c0_238] : memref<192x128xbf16, #tpu.memory_space<vmem>>, vector<192x128xbf16>
    %cst_239 = arith.constant dense<0.000000e+00> : vector<2x128xf32>
    %492 = tpu.matmul %490, %491, %cst_239 {dimension_numbers = #tpu.dot_dimension_numbers<[1], [0], [0], [1], [0, 0, 1, 1], [], []>} : vector<2x192xbf16>, vector<192x128xbf16>, vector<2x128xf32> -> vector<2x128xf32>
    %c0_240 = arith.constant 0 : index
    %c0_241 = arith.constant 0 : index
    %493 = vector.load %arg54[%c0_240, %c0_241] : memref<1x128xf32, #tpu.memory_space<vmem>>, vector<1x128xf32>
    %494 = vector.broadcast %493 : vector<1x128xf32> to vector<2x128xf32>
    %495 = arith.addf %492, %494 : vector<2x128xf32>
    %496 = tpu.concatenate %167, %195, %495 in 0 : vector<8x128xf32>, vector<6x128xf32>, vector<2x128xf32> -> vector<16x128xf32>
    %c0_242 = arith.constant 0 : index
    %c0_243 = arith.constant 0 : index
    %497 = vector.load %arg55[%c0_242, %c0_243] : memref<16x128xf32, #tpu.memory_space<vmem>>, vector<16x128xf32>
    tpu.vector_store %arg55[%c0_242, %c0_243], %496 {strides = array<i32>} : memref<16x128xf32, #tpu.memory_space<vmem>>, vector<16x128xf32>,
    return
  }
}

</mosaic_0001>

<llo_original>
// kernel: _lambda_.1
$region0: #{_lambda_.1}
  #allocation0 [shape = 'u32[]', space=smem, size = 0x4, offset = 0x4, fixed_abs, tag = 'smem constant byte address 0x4 - core index']
  #allocation1 [shape = 'u32[72,128]{1,0:T(1,128)}', space=vmem, size = 0x9000, scoped, tag = 'internal scratch']
  #allocation2 [shape = 'bf16[64,2048]{1,0:T(8,128)(2,1)}', space=vmem, size = 0x40000, scoped, tag = 'scratch operand']
  #allocation3 [shape = 'bf16[2048,64]{1,0:T(8,128)(2,1)}', space=vmem, size = 0x80000, scoped, tag = 'scratch operand']
  #allocation4 [shape = 's32[2]{0}', space=sflag, size = 0x8, scoped, tag = 'scratch operand']
  #allocation34 [shape = 's32[]', space=sflag, size = 0x4, offset = 0, fixed_abs, tag = 'sflag constant byte address 0x0 - dummy sync flag']
  #allocation35 [shape = 's32[]', space=sflag, size = 0x4, offset = 0, fixed_abs, tag = 'sflag constant byte address 0x0 - dummy sync flag']
  %s0 = inlined_call_operand.smem [shape: u32[56], index: -1, kind: input, shape index: {}]
  %s1 = sld [smem:[%s0]]
  %s2 = scalar_lea.smem %s0, 1
  %s3 = sld [smem:[%s2]]
  %s4 = scalar_lea.smem %s0, 2
  %s5 = sld [smem:[%s4]]
  %s6 = scalar_lea.smem %s0, 3
  %s7 = sld [smem:[%s6]]
  %s8 = scalar_lea.smem %s0, 4
  %s9 = sld [smem:[%s8]]
  %s10 = scalar_lea.smem %s0, 5
  %s11 = sld [smem:[%s10]]
  %s12 = scalar_lea.smem %s0, 6
  %s13 = sld [smem:[%s12]]
  %s14 = scalar_lea.smem %s0, 7
  %s15 = sld [smem:[%s14]]
  %s16 = scalar_lea.smem %s0, 8
  %s17 = sld [smem:[%s16]]
  %s18 = scalar_lea.smem %s0, 9
  %s19 = sld [smem:[%s18]]
  %s20 = scalar_lea.smem %s0, 10
  %s21 = sld [smem:[%s20]]
  %s22 = scalar_lea.smem %s0, 11
  %s23 = sld [smem:[%s22]]
  %s24 = scalar_lea.smem %s0, 12
  %s25 = sld [smem:[%s24]]
  %s26 = scalar_lea.smem %s0, 13
  %s27 = sld [smem:[%s26]]
  %s28 = scalar_lea.smem %s0, 14
  %s29 = sld [smem:[%s28]]
  %s30 = scalar_lea.smem %s0, 15
  %s31 = sld [smem:[%s30]]
  %s32 = scalar_lea.smem %s0, 16
  %s33 = sld [smem:[%s32]]
  %s34 = scalar_lea.smem %s0, 17
  %s35 = sld [smem:[%s34]]
  %s36 = scalar_lea.smem %s0, 18
  %s37 = sld [smem:[%s36]]
  %s38 = scalar_lea.smem %s0, 19
  %s39 = sld [smem:[%s38]]
  %s40 = scalar_lea.smem %s0, 20
  %s41 = sld [smem:[%s40]]
  %s42 = scalar_lea.smem %s0, 21
  %s43 = sld [smem:[%s42]]
  %s44 = scalar_lea.smem %s0, 22
  %s45 = sld [smem:[%s44]]
  %s46 = scalar_lea.smem %s0, 23
  %s47 = sld [smem:[%s46]]
  %s48 = scalar_lea.smem %s0, 24
  %s49 = sld [smem:[%s48]]
  %s50 = scalar_lea.smem %s0, 25
  %s51 = sld [smem:[%s50]]
  %s52 = scalar_lea.smem %s0, 26
  %s53 = sld [smem:[%s52]]
  %s54 = scalar_lea.smem %s0, 27
  %s55 = sld [smem:[%s54]]
  %s56 = scalar_lea.smem %s0, 28
  %s57 = sld [smem:[%s56]]
  %s58 = scalar_lea.smem %s0, 29
  %s59 = sld [smem:[%s58]]
  %s60 = scalar_lea.smem %s0, 30
  %s61 = sld [smem:[%s60]]
  %s62 = scalar_lea.smem %s0, 31
  %s63 = sld [smem:[%s62]]
  %s64 = scalar_lea.smem %s0, 32
  %s65 = sld [smem:[%s64]]
  %s66 = scalar_lea.smem %s0, 33
  %s67 = sld [smem:[%s66]]
  %s68 = scalar_lea.smem %s0, 34
  %s69 = sld [smem:[%s68]]
  %s70 = scalar_lea.smem %s0, 35
  %s71 = sld [smem:[%s70]]
  %s72 = scalar_lea.smem %s0, 36
  %s73 = sld [smem:[%s72]]
  %s74 = scalar_lea.smem %s0, 37
  %s75 = sld [smem:[%s74]]
  %s76 = scalar_lea.smem %s0, 38
  %s77 = sld [smem:[%s76]]
  %s78 = scalar_lea.smem %s0, 39
  %s79 = sld [smem:[%s78]]
  %s80 = scalar_lea.smem %s0, 40
  %s81 = sld [smem:[%s80]]
  %s82 = scalar_lea.smem %s0, 41
  %s83 = sld [smem:[%s82]]
  %s84 = scalar_lea.smem %s0, 42
  %s85 = sld [smem:[%s84]]
  %s86 = scalar_lea.smem %s0, 43
  %s87 = sld [smem:[%s86]]
  %s88 = scalar_lea.smem %s0, 44
  %s89 = sld [smem:[%s88]]
  %s90 = scalar_lea.smem %s0, 45
  %s91 = sld [smem:[%s90]]
  %s92 = scalar_lea.smem %s0, 46
  %s93 = sld [smem:[%s92]]
  %s94 = scalar_lea.smem %s0, 47
  %s95 = sld [smem:[%s94]]
  %s96 = scalar_lea.smem %s0, 48
  %s97 = sld [smem:[%s96]]
  %s98 = scalar_lea.smem %s0, 49
  %s99 = sld [smem:[%s98]]
  %s100 = scalar_lea.smem %s0, 50
  %s101 = sld [smem:[%s100]]
  %s102 = scalar_lea.smem %s0, 51
  %s103 = sld [smem:[%s102]]
  %s104 = scalar_lea.smem %s0, 52
  %s105 = sld [smem:[%s104]]
  %s106 = scalar_lea.smem %s0, 53
  %s107 = sld [smem:[%s106]]
  %s108 = scalar_lea.smem %s0, 54
  %s109 = sld [smem:[%s108]]
  %s110 = scalar_lea.smem %s0, 55
  %s111 = sld [smem:[%s110]]
  %s112 = sld [smem:[#allocation0]]
  $region336: #{_lambda_.1} parent=0
    _
  %s114 = ssub.s32 1, %s112
  %s115 = scalar_select 0, %s114, %s112
  $region1: #{_lambda_.1} parent=0
    #allocation5 [shape = 'u8[512]{0}', space=vmem, size = 0x400, scoped, tag = 'input window, operand 10, single buffered']
    #allocation6 [shape = 's32[1]{0}', space=sflag, size = 0x4, scoped, tag = 'scoped memory for _lambda_.1']
    #allocation7 [shape = 'u8[512]{0}', space=vmem, size = 0x400, scoped, tag = 'input window, operand 12, single buffered']
    #allocation8 [shape = 's32[1]{0}', space=sflag, size = 0x4, scoped, tag = 'scoped memory for _lambda_.1']
    #allocation9 [shape = 'u8[512]{0}', space=vmem, size = 0x400, scoped, tag = 'input window, operand 15, single buffered']
    #allocation10 [shape = 'u8[512]{0}', space=vmem, size = 0x400, scoped, tag = 'input window, operand 16, single buffered']
    #allocation11 [shape = 's32[1]{0}', space=sflag, size = 0x4, scoped, tag = 'scoped memory for _lambda_.1']
    #allocation12 [shape = 'u8[512]{0}', space=vmem, size = 0x400, scoped, tag = 'input window, operand 18, single buffered']
    #allocation13 [shape = 'u8[512]{0}', space=vmem, size = 0x400, scoped, tag = 'input window, operand 34, single buffered']
    #allocation14 [shape = 's32[1]{0}', space=sflag, size = 0x4, scoped, tag = 'scoped memory for _lambda_.1']
    #allocation15 [shape = 'u8[512]{0}', space=vmem, size = 0x400, scoped, tag = 'input window, operand 36, single buffered']
    #allocation16 [shape = 'u8[512]{0}', space=vmem, size = 0x400, scoped, tag = 'input window, operand 38, single buffered']
    #allocation17 [shape = 's32[1]{0}', space=sflag, size = 0x4, scoped, tag = 'scoped memory for _lambda_.1']
    #allocation18 [shape = 'u8[512]{0}', space=vmem, size = 0x400, scoped, tag = 'input window, operand 40, single buffered']
    #allocation19 [shape = 'u8[512]{0}', space=vmem, size = 0x400, scoped, tag = 'input window, operand 41, single buffered']
    #allocation20 [shape = 's32[1]{0}', space=sflag, size = 0x4, scoped, tag = 'scoped memory for _lambda_.1']
    #allocation21 [shape = 'u8[512]{0}', space=vmem, size = 0x400, scoped, tag = 'input window, operand 42, single buffered']
    #allocation22 [shape = 'u8[512]{0}', space=vmem, size = 0x400, scoped, tag = 'input window, operand 43, single buffered']
    #allocation23 [shape = 's32[1]{0}', space=sflag, size = 0x4, scoped, tag = 'scoped memory for _lambda_.1']
    #allocation24 [shape = 'u8[512]{0}', space=vmem, size = 0x400, scoped, tag = 'input window, operand 44, single buffered']
    #allocation25 [shape = 'u8[512]{0}', space=vmem, size = 0x400, scoped, tag = 'input window, operand 45, single buffered']
    #allocation26 [shape = 's32[1]{0}', space=sflag, size = 0x4, scoped, tag = 'scoped memory for _lambda_.1']
    #allocation27 [shape = 'u8[512]{0}', space=vmem, size = 0x400, scoped, tag = 'input window, operand 46, single buffered']
    #allocation28 [shape = 'u8[8192]{0}', space=vmem, size = 0x2000, scoped, tag = 'input window, operand 48, single buffered']
    #allocation29 [shape = 's32[1]{0}', space=sflag, size = 0x4, scoped, tag = 'scoped memory for _lambda_.1']
    #allocation30 [shape = 'u8[512]{0}', space=vmem, size = 0x400, scoped, tag = 'input window, operand 50, single buffered']
    #allocation31 [shape = 'u8[1024]{0}', space=vmem, size = 0x400, scoped, tag = 'input window, operand 52, single buffered']
    #allocation32 [shape = 's32[1]{0}', space=sflag, size = 0x4, scoped, tag = 'scoped memory for _lambda_.1']
    #allocation33 [shape = 'u8[512]{0}', space=vmem, size = 0x400, scoped, tag = 'input window, operand 54, single buffered']
    %116 = vsyncpa [#allocation6], 0
    %117 = vsyncpa [#allocation8], 0
    %118 = vsyncpa [#allocation11], 0
    %119 = vsyncpa [#allocation14], 0
    %120 = vsyncpa [#allocation17], 0
    %121 = vsyncpa [#allocation20], 0
    %122 = vsyncpa [#allocation23], 0
    %123 = vsyncpa [#allocation26], 0
    %124 = vsyncpa [#allocation29], 0
    %125 = vsyncpa [#allocation32], 0
    // Predicated region
    $region2: #{_lambda_.1} parent=1 // pred_check
      _
    $region3: #{_lambda_.1} parent=1 // pred_check_branch
      %127 = sbr.rel (0) target = $region5
    $region4: #{_lambda_.1} parent=1 // pred_region
      _
    $region5: #{_lambda_.1} parent=1 // pred_fallthru
      _
    // Predicated region
    $region6: #{_lambda_.1} parent=1 // pred_check
      _
    $region7: #{_lambda_.1} parent=1 // pred_check_branch
      %129 = sbr.rel (0) target = $region9
    $region8: #{_lambda_.1} parent=1 // pred_region
      _
    $region9: #{_lambda_.1} parent=1 // pred_fallthru
      _
    // Predicated region
    $region10: #{_lambda_.1} parent=1 // pred_check
      _
    $region11: #{_lambda_.1} parent=1 // pred_check_branch
      %131 = sbr.rel (0) target = $region13
    $region12: #{_lambda_.1} parent=1 // pred_region
      _
    $region13: #{_lambda_.1} parent=1 // pred_fallthru
      _
    // Predicated region
    $region14: #{_lambda_.1} parent=1 // pred_check
      _
    $region15: #{_lambda_.1} parent=1 // pred_check_branch
      %133 = sbr.rel (0) target = $region17
    $region16: #{_lambda_.1} parent=1 // pred_region
      _
    $region17: #{_lambda_.1} parent=1 // pred_fallthru
      _
    // Predicated region
    $region18: #{_lambda_.1} parent=1 // pred_check
      _
    $region19: #{_lambda_.1} parent=1 // pred_check_branch
      %135 = sbr.rel (0) target = $region21
    $region20: #{_lambda_.1} parent=1 // pred_region
      _
    $region21: #{_lambda_.1} parent=1 // pred_fallthru
      _
    // Predicated region
    $region22: #{_lambda_.1} parent=1 // pred_check
      _
    $region23: #{_lambda_.1} parent=1 // pred_check_branch
      %137 = sbr.rel (0) target = $region25
    $region24: #{_lambda_.1} parent=1 // pred_region
      _
    $region25: #{_lambda_.1} parent=1 // pred_fallthru
      _
    // Predicated region
    $region26: #{_lambda_.1} parent=1 // pred_check
      _
    $region27: #{_lambda_.1} parent=1 // pred_check_branch
      %139 = sbr.rel (0) target = $region29
    $region28: #{_lambda_.1} parent=1 // pred_region
      _
    $region29: #{_lambda_.1} parent=1 // pred_fallthru
      _
    // Predicated region
    $region30: #{_lambda_.1} parent=1 // pred_check
      _
    $region31: #{_lambda_.1} parent=1 // pred_check_branch
      %141 = sbr.rel (0) target = $region33
    $region32: #{_lambda_.1} parent=1 // pred_region
      _
    $region33: #{_lambda_.1} parent=1 // pred_fallthru
      _
    // Predicated region
    $region34: #{_lambda_.1} parent=1 // pred_check
      _
    $region35: #{_lambda_.1} parent=1 // pred_check_branch
      %143 = sbr.rel (0) target = $region37
    $region36: #{_lambda_.1} parent=1 // pred_region
      _
    $region37: #{_lambda_.1} parent=1 // pred_fallthru
      _
    // Predicated region
    $region38: #{_lambda_.1} parent=1 // pred_check
      _
    $region39: #{_lambda_.1} parent=1 // pred_check_branch
      %145 = sbr.rel (0) target = $region41
    $region40: #{_lambda_.1} parent=1 // pred_region
      _
    $region41: #{_lambda_.1} parent=1 // pred_fallthru
      _
    // Predicated region
    $region42: #{_lambda_.1} parent=1 // pred_check
      _
    $region43: #{_lambda_.1} parent=1 // pred_check_branch
      %147 = sbr.rel (0) target = $region45
    $region44: #{_lambda_.1} parent=1 // pred_region
      %149 = vsyncadd [#allocation6], 0
      %s151 = sshll.u32 %s21, 4
      %s152 = int_to_ptr.hbm [resolvable:$true] %s151
      %s153 = sshll.u32 [#allocation5], 4
      %s154 = int_to_ptr.vmem [resolvable:$true] %s153
      %156 = dma.hbm_to_vmem [thread:$0]  %s152, 16, %s154, [#allocation6]
    $region45: #{_lambda_.1} parent=1 // pred_fallthru
      _
    // Predicated region
    $region46: #{_lambda_.1} parent=1 // pred_check
      _
    $region47: #{_lambda_.1} parent=1 // pred_check_branch
      %158 = sbr.rel (0) target = $region49
    $region48: #{_lambda_.1} parent=1 // pred_region
      _
    $region49: #{_lambda_.1} parent=1 // pred_fallthru
      _
    // Predicated region
    $region50: #{_lambda_.1} parent=1 // pred_check
      _
    $region51: #{_lambda_.1} parent=1 // pred_check_branch
      %160 = sbr.rel (0) target = $region53
    $region52: #{_lambda_.1} parent=1 // pred_region
      %162 = vsyncadd [#allocation8], 0
      %s164 = sshll.u32 %s25, 4
      %s165 = int_to_ptr.hbm [resolvable:$true] %s164
      %s166 = sshll.u32 [#allocation7], 4
      %s167 = int_to_ptr.vmem [resolvable:$true] %s166
      %169 = dma.hbm_to_vmem [thread:$0]  %s165, 16, %s167, [#allocation8]
    $region53: #{_lambda_.1} parent=1 // pred_fallthru
      _
    // Predicated region
    $region54: #{_lambda_.1} parent=1 // pred_check
      _
    $region55: #{_lambda_.1} parent=1 // pred_check_branch
      %171 = sbr.rel (0) target = $region57
    $region56: #{_lambda_.1} parent=1 // pred_region
      _
    $region57: #{_lambda_.1} parent=1 // pred_fallthru
      _
    // Predicated region
    $region58: #{_lambda_.1} parent=1 // pred_check
      _
    $region59: #{_lambda_.1} parent=1 // pred_check_branch
      %173 = sbr.rel (0) target = $region61
    $region60: #{_lambda_.1} parent=1 // pred_region
      _
    $region61: #{_lambda_.1} parent=1 // pred_fallthru
      _
    // Predicated region
    $region62: #{_lambda_.1} parent=1 // pred_check
      _
    $region63: #{_lambda_.1} parent=1 // pred_check_branch
      %175 = sbr.rel (0) target = $region65
    $region64: #{_lambda_.1} parent=1 // pred_region
      %177 = vsyncadd [#allocation8], 0
      %s179 = sshll.u32 %s31, 4
      %s180 = int_to_ptr.hbm [resolvable:$true] %s179
      %s181 = sshll.u32 [#allocation9], 4
      %s182 = int_to_ptr.vmem [resolvable:$true] %s181
      %184 = dma.hbm_to_vmem [thread:$0]  %s180, 16, %s182, [#allocation8]
    $region65: #{_lambda_.1} parent=1 // pred_fallthru
      _
    // Predicated region
    $region66: #{_lambda_.1} parent=1 // pred_check
      _
    $region67: #{_lambda_.1} parent=1 // pred_check_branch
      %186 = sbr.rel (0) target = $region69
    $region68: #{_lambda_.1} parent=1 // pred_region
      %188 = vsyncadd [#allocation11], 0
      %s190 = sshll.u32 %s33, 4
      %s191 = int_to_ptr.hbm [resolvable:$true] %s190
      %s192 = sshll.u32 [#allocation10], 4
      %s193 = int_to_ptr.vmem [resolvable:$true] %s192
      %195 = dma.hbm_to_vmem [thread:$0]  %s191, 16, %s193, [#allocation11]
    $region69: #{_lambda_.1} parent=1 // pred_fallthru
      _
    // Predicated region
    $region70: #{_lambda_.1} parent=1 // pred_check
      _
    $region71: #{_lambda_.1} parent=1 // pred_check_branch
      %197 = sbr.rel (0) target = $region73
    $region72: #{_lambda_.1} parent=1 // pred_region
      _
    $region73: #{_lambda_.1} parent=1 // pred_fallthru
      _
    // Predicated region
    $region74: #{_lambda_.1} parent=1 // pred_check
      _
    $region75: #{_lambda_.1} parent=1 // pred_check_branch
      %199 = sbr.rel (0) target = $region77
    $region76: #{_lambda_.1} parent=1 // pred_region
      %201 = vsyncadd [#allocation11], 0
      %s203 = sshll.u32 %s37, 4
      %s204 = int_to_ptr.hbm [resolvable:$true] %s203
      %s205 = sshll.u32 [#allocation12], 4
      %s206 = int_to_ptr.vmem [resolvable:$true] %s205
      %208 = dma.hbm_to_vmem [thread:$0]  %s204, 16, %s206, [#allocation11]
    $region77: #{_lambda_.1} parent=1 // pred_fallthru
      _
    // Predicated region
    $region78: #{_lambda_.1} parent=1 // pred_check
      _
    $region79: #{_lambda_.1} parent=1 // pred_check_branch
      %210 = sbr.rel (0) target = $region81
    $region80: #{_lambda_.1} parent=1 // pred_region
      _
    $region81: #{_lambda_.1} parent=1 // pred_fallthru
      _
    // Predicated region
    $region82: #{_lambda_.1} parent=1 // pred_check
      _
    $region83: #{_lambda_.1} parent=1 // pred_check_branch
      %212 = sbr.rel (0) target = $region85
    $region84: #{_lambda_.1} parent=1 // pred_region
      _
    $region85: #{_lambda_.1} parent=1 // pred_fallthru
      _
    // Predicated region
    $region86: #{_lambda_.1} parent=1 // pred_check
      _
    $region87: #{_lambda_.1} parent=1 // pred_check_branch
      %214 = sbr.rel (0) target = $region89
    $region88: #{_lambda_.1} parent=1 // pred_region
      _
    $region89: #{_lambda_.1} parent=1 // pred_fallthru
      _
    // Predicated region
    $region90: #{_lambda_.1} parent=1 // pred_check
      _
    $region91: #{_lambda_.1} parent=1 // pred_check_branch
      %216 = sbr.rel (0) target = $region93
    $region92: #{_lambda_.1} parent=1 // pred_region
      _
    $region93: #{_lambda_.1} parent=1 // pred_fallthru
      _
    // Predicated region
    $region94: #{_lambda_.1} parent=1 // pred_check
      _
    $region95: #{_lambda_.1} parent=1 // pred_check_branch
      %218 = sbr.rel (0) target = $region97
    $region96: #{_lambda_.1} parent=1 // pred_region
      _
    $region97: #{_lambda_.1} parent=1 // pred_fallthru
      _
    // Predicated region
    $region98: #{_lambda_.1} parent=1 // pred_check
      _
    $region99: #{_lambda_.1} parent=1 // pred_check_branch
      %220 = sbr.rel (0) target = $region101
    $region100: #{_lambda_.1} parent=1 // pred_region
      _
    $region101: #{_lambda_.1} parent=1 // pred_fallthru
      _
    // Predicated region
    $region102: #{_lambda_.1} parent=1 // pred_check
      _
    $region103: #{_lambda_.1} parent=1 // pred_check_branch
      %222 = sbr.rel (0) target = $region105
    $region104: #{_lambda_.1} parent=1 // pred_region
      _
    $region105: #{_lambda_.1} parent=1 // pred_fallthru
      _
    // Predicated region
    $region106: #{_lambda_.1} parent=1 // pred_check
      _
    $region107: #{_lambda_.1} parent=1 // pred_check_branch
      %224 = sbr.rel (0) target = $region109
    $region108: #{_lambda_.1} parent=1 // pred_region
      _
    $region109: #{_lambda_.1} parent=1 // pred_fallthru
      _
    // Predicated region
    $region110: #{_lambda_.1} parent=1 // pred_check
      _
    $region111: #{_lambda_.1} parent=1 // pred_check_branch
      %226 = sbr.rel (0) target = $region113
    $region112: #{_lambda_.1} parent=1 // pred_region
      _
    $region113: #{_lambda_.1} parent=1 // pred_fallthru
      _
    // Predicated region
    $region114: #{_lambda_.1} parent=1 // pred_check
      _
    $region115: #{_lambda_.1} parent=1 // pred_check_branch
      %228 = sbr.rel (0) target = $region117
    $region116: #{_lambda_.1} parent=1 // pred_region
      _
    $region117: #{_lambda_.1} parent=1 // pred_fallthru
      _
    // Predicated region
    $region118: #{_lambda_.1} parent=1 // pred_check
      _
    $region119: #{_lambda_.1} parent=1 // pred_check_branch
      %230 = sbr.rel (0) target = $region121
    $region120: #{_lambda_.1} parent=1 // pred_region
      _
    $region121: #{_lambda_.1} parent=1 // pred_fallthru
      _
    // Predicated region
    $region122: #{_lambda_.1} parent=1 // pred_check
      _
    $region123: #{_lambda_.1} parent=1 // pred_check_branch
      %232 = sbr.rel (0) target = $region125
    $region124: #{_lambda_.1} parent=1 // pred_region
      _
    $region125: #{_lambda_.1} parent=1 // pred_fallthru
      _
    // Predicated region
    $region126: #{_lambda_.1} parent=1 // pred_check
      _
    $region127: #{_lambda_.1} parent=1 // pred_check_branch
      %234 = sbr.rel (0) target = $region129
    $region128: #{_lambda_.1} parent=1 // pred_region
      _
    $region129: #{_lambda_.1} parent=1 // pred_fallthru
      _
    // Predicated region
    $region130: #{_lambda_.1} parent=1 // pred_check
      _
    $region131: #{_lambda_.1} parent=1 // pred_check_branch
      %236 = sbr.rel (0) target = $region133
    $region132: #{_lambda_.1} parent=1 // pred_region
      _
    $region133: #{_lambda_.1} parent=1 // pred_fallthru
      _
    // Predicated region
    $region134: #{_lambda_.1} parent=1 // pred_check
      _
    $region135: #{_lambda_.1} parent=1 // pred_check_branch
      %238 = sbr.rel (0) target = $region137
    $region136: #{_lambda_.1} parent=1 // pred_region
      _
    $region137: #{_lambda_.1} parent=1 // pred_fallthru
      _
    // Predicated region
    $region138: #{_lambda_.1} parent=1 // pred_check
      _
    $region139: #{_lambda_.1} parent=1 // pred_check_branch
      %240 = sbr.rel (0) target = $region141
    $region140: #{_lambda_.1} parent=1 // pred_region
      %242 = vsyncadd [#allocation14], 0
      %s244 = sshll.u32 %s69, 4
      %s245 = int_to_ptr.hbm [resolvable:$true] %s244
      %s246 = sshll.u32 [#allocation13], 4
      %s247 = int_to_ptr.vmem [resolvable:$true] %s246
      %249 = dma.hbm_to_vmem [thread:$0]  %s245, 16, %s247, [#allocation14]
    $region141: #{_lambda_.1} parent=1 // pred_fallthru
      _
    // Predicated region
    $region142: #{_lambda_.1} parent=1 // pred_check
      _
    $region143: #{_lambda_.1} parent=1 // pred_check_branch
      %251 = sbr.rel (0) target = $region145
    $region144: #{_lambda_.1} parent=1 // pred_region
      _
    $region145: #{_lambda_.1} parent=1 // pred_fallthru
      _
    // Predicated region
    $region146: #{_lambda_.1} parent=1 // pred_check
      _
    $region147: #{_lambda_.1} parent=1 // pred_check_branch
      %253 = sbr.rel (0) target = $region149
    $region148: #{_lambda_.1} parent=1 // pred_region
      %255 = vsyncadd [#allocation14], 0
      %s257 = sshll.u32 %s73, 4
      %s258 = int_to_ptr.hbm [resolvable:$true] %s257
      %s259 = sshll.u32 [#allocation15], 4
      %s260 = int_to_ptr.vmem [resolvable:$true] %s259
      %262 = dma.hbm_to_vmem [thread:$0]  %s258, 16, %s260, [#allocation14]
    $region149: #{_lambda_.1} parent=1 // pred_fallthru
      _
    // Predicated region
    $region150: #{_lambda_.1} parent=1 // pred_check
      _
    $region151: #{_lambda_.1} parent=1 // pred_check_branch
      %264 = sbr.rel (0) target = $region153
    $region152: #{_lambda_.1} parent=1 // pred_region
      _
    $region153: #{_lambda_.1} parent=1 // pred_fallthru
      _
    // Predicated region
    $region154: #{_lambda_.1} parent=1 // pred_check
      _
    $region155: #{_lambda_.1} parent=1 // pred_check_branch
      %266 = sbr.rel (0) target = $region157
    $region156: #{_lambda_.1} parent=1 // pred_region
      %268 = vsyncadd [#allocation17], 0
      %s270 = sshll.u32 %s77, 4
      %s271 = int_to_ptr.hbm [resolvable:$true] %s270
      %s272 = sshll.u32 [#allocation16], 4
      %s273 = int_to_ptr.vmem [resolvable:$true] %s272
      %275 = dma.hbm_to_vmem [thread:$0]  %s271, 16, %s273, [#allocation17]
    $region157: #{_lambda_.1} parent=1 // pred_fallthru
      _
    // Predicated region
    $region158: #{_lambda_.1} parent=1 // pred_check
      _
    $region159: #{_lambda_.1} parent=1 // pred_check_branch
      %277 = sbr.rel (0) target = $region161
    $region160: #{_lambda_.1} parent=1 // pred_region
      _
    $region161: #{_lambda_.1} parent=1 // pred_fallthru
      _
    // Predicated region
    $region162: #{_lambda_.1} parent=1 // pred_check
      _
    $region163: #{_lambda_.1} parent=1 // pred_check_branch
      %279 = sbr.rel (0) target = $region165
    $region164: #{_lambda_.1} parent=1 // pred_region
      %281 = vsyncadd [#allocation17], 0
      %s283 = sshll.u32 %s81, 4
      %s284 = int_to_ptr.hbm [resolvable:$true] %s283
      %s285 = sshll.u32 [#allocation18], 4
      %s286 = int_to_ptr.vmem [resolvable:$true] %s285
      %288 = dma.hbm_to_vmem [thread:$0]  %s284, 16, %s286, [#allocation17]
    $region165: #{_lambda_.1} parent=1 // pred_fallthru
      _
    // Predicated region
    $region166: #{_lambda_.1} parent=1 // pred_check
      _
    $region167: #{_lambda_.1} parent=1 // pred_check_branch
      %290 = sbr.rel (0) target = $region169
    $region168: #{_lambda_.1} parent=1 // pred_region
      %292 = vsyncadd [#allocation20], 0
      %s294 = sshll.u32 %s83, 4
      %s295 = int_to_ptr.hbm [resolvable:$true] %s294
      %s296 = sshll.u32 [#allocation19], 4
      %s297 = int_to_ptr.vmem [resolvable:$true] %s296
      %299 = dma.hbm_to_vmem [thread:$0]  %s295, 16, %s297, [#allocation20]
    $region169: #{_lambda_.1} parent=1 // pred_fallthru
      _
    // Predicated region
    $region170: #{_lambda_.1} parent=1 // pred_check
      _
    $region171: #{_lambda_.1} parent=1 // pred_check_branch
      %301 = sbr.rel (0) target = $region173
    $region172: #{_lambda_.1} parent=1 // pred_region
      %303 = vsyncadd [#allocation20], 0
      %s305 = sshll.u32 %s85, 4
      %s306 = int_to_ptr.hbm [resolvable:$true] %s305
      %s307 = sshll.u32 [#allocation21], 4
      %s308 = int_to_ptr.vmem [resolvable:$true] %s307
      %310 = dma.hbm_to_vmem [thread:$0]  %s306, 16, %s308, [#allocation20]
    $region173: #{_lambda_.1} parent=1 // pred_fallthru
      _
    // Predicated region
    $region174: #{_lambda_.1} parent=1 // pred_check
      _
    $region175: #{_lambda_.1} parent=1 // pred_check_branch
      %312 = sbr.rel (0) target = $region177
    $region176: #{_lambda_.1} parent=1 // pred_region
      %314 = vsyncadd [#allocation23], 0
      %s316 = sshll.u32 %s87, 4
      %s317 = int_to_ptr.hbm [resolvable:$true] %s316
      %s318 = sshll.u32 [#allocation22], 4
      %s319 = int_to_ptr.vmem [resolvable:$true] %s318
      %321 = dma.hbm_to_vmem [thread:$0]  %s317, 16, %s319, [#allocation23]
    $region177: #{_lambda_.1} parent=1 // pred_fallthru
      _
    // Predicated region
    $region178: #{_lambda_.1} parent=1 // pred_check
      _
    $region179: #{_lambda_.1} parent=1 // pred_check_branch
      %323 = sbr.rel (0) target = $region181
    $region180: #{_lambda_.1} parent=1 // pred_region
      %325 = vsyncadd [#allocation23], 0
      %s327 = sshll.u32 %s89, 4
      %s328 = int_to_ptr.hbm [resolvable:$true] %s327
      %s329 = sshll.u32 [#allocation24], 4
      %s330 = int_to_ptr.vmem [resolvable:$true] %s329
      %332 = dma.hbm_to_vmem [thread:$0]  %s328, 16, %s330, [#allocation23]
    $region181: #{_lambda_.1} parent=1 // pred_fallthru
      _
    // Predicated region
    $region182: #{_lambda_.1} parent=1 // pred_check
      _
    $region183: #{_lambda_.1} parent=1 // pred_check_branch
      %334 = sbr.rel (0) target = $region185
    $region184: #{_lambda_.1} parent=1 // pred_region
      %336 = vsyncadd [#allocation26], 0
      %s338 = sshll.u32 %s91, 4
      %s339 = int_to_ptr.hbm [resolvable:$true] %s338
      %s340 = sshll.u32 [#allocation25], 4
      %s341 = int_to_ptr.vmem [resolvable:$true] %s340
      %343 = dma.hbm_to_vmem [thread:$0]  %s339, 16, %s341, [#allocation26]
    $region185: #{_lambda_.1} parent=1 // pred_fallthru
      _
    // Predicated region
    $region186: #{_lambda_.1} parent=1 // pred_check
      _
    $region187: #{_lambda_.1} parent=1 // pred_check_branch
      %345 = sbr.rel (0) target = $region189
    $region188: #{_lambda_.1} parent=1 // pred_region
      %347 = vsyncadd [#allocation26], 0
      %s349 = sshll.u32 %s93, 4
      %s350 = int_to_ptr.hbm [resolvable:$true] %s349
      %s351 = sshll.u32 [#allocation27], 4
      %s352 = int_to_ptr.vmem [resolvable:$true] %s351
      %354 = dma.hbm_to_vmem [thread:$0]  %s350, 16, %s352, [#allocation26]
    $region189: #{_lambda_.1} parent=1 // pred_fallthru
      _
    // Predicated region
    $region190: #{_lambda_.1} parent=1 // pred_check
      _
    $region191: #{_lambda_.1} parent=1 // pred_check_branch
      %356 = sbr.rel (0) target = $region193
    $region192: #{_lambda_.1} parent=1 // pred_region
      %358 = vsyncadd [#allocation29], 0
      %s360 = sshll.u32 %s97, 4
      %s361 = int_to_ptr.hbm [resolvable:$true] %s360
      %s362 = sshll.u32 [#allocation28], 4
      %s363 = int_to_ptr.vmem [resolvable:$true] %s362
      %365 = dma.hbm_to_vmem [thread:$0]  %s361, 256, %s363, [#allocation29]
    $region193: #{_lambda_.1} parent=1 // pred_fallthru
      _
    // Predicated region
    $region194: #{_lambda_.1} parent=1 // pred_check
      _
    $region195: #{_lambda_.1} parent=1 // pred_check_branch
      %367 = sbr.rel (0) target = $region197
    $region196: #{_lambda_.1} parent=1 // pred_region
      %369 = vsyncadd [#allocation29], 0
      %s371 = sshll.u32 %s101, 4
      %s372 = int_to_ptr.hbm [resolvable:$true] %s371
      %s373 = sshll.u32 [#allocation30], 4
      %s374 = int_to_ptr.vmem [resolvable:$true] %s373
      %376 = dma.hbm_to_vmem [thread:$0]  %s372, 16, %s374, [#allocation29]
    $region197: #{_lambda_.1} parent=1 // pred_fallthru
      _
    // Predicated region
    $region198: #{_lambda_.1} parent=1 // pred_check
      _
    $region199: #{_lambda_.1} parent=1 // pred_check_branch
      %378 = sbr.rel (0) target = $region201
    $region200: #{_lambda_.1} parent=1 // pred_region
      _
    $region201: #{_lambda_.1} parent=1 // pred_fallthru
      _
    // Predicated region
    $region202: #{_lambda_.1} parent=1 // pred_check
      _
    $region203: #{_lambda_.1} parent=1 // pred_check_branch
      %380 = sbr.rel (0) target = $region205
    $region204: #{_lambda_.1} parent=1 // pred_region
      %382 = vsyncadd [#allocation32], 0
      %s384 = sshll.u32 %s105, 4
      %s385 = int_to_ptr.hbm [resolvable:$true] %s384
      %s386 = sshll.u32 [#allocation31], 4
      %s387 = int_to_ptr.vmem [resolvable:$true] %s386
      %389 = dma.hbm_to_vmem [thread:$0]  %s385, 32, %s387, [#allocation32]
    $region205: #{_lambda_.1} parent=1 // pred_fallthru
      _
    // Predicated region
    $region206: #{_lambda_.1} parent=1 // pred_check
      _
    $region207: #{_lambda_.1} parent=1 // pred_check_branch
      %391 = sbr.rel (0) target = $region209
    $region208: #{_lambda_.1} parent=1 // pred_region
      _
    $region209: #{_lambda_.1} parent=1 // pred_fallthru
      _
    // Predicated region
    $region210: #{_lambda_.1} parent=1 // pred_check
      _
    $region211: #{_lambda_.1} parent=1 // pred_check_branch
      %393 = sbr.rel (0) target = $region213
    $region212: #{_lambda_.1} parent=1 // pred_region
      %395 = vsyncadd [#allocation32], 0
      %s397 = sshll.u32 %s109, 4
      %s398 = int_to_ptr.hbm [resolvable:$true] %s397
      %s399 = sshll.u32 [#allocation33], 4
      %s400 = int_to_ptr.vmem [resolvable:$true] %s399
      %402 = dma.hbm_to_vmem [thread:$0]  %s398, 16, %s400, [#allocation32]
    $region213: #{_lambda_.1} parent=1 // pred_fallthru
      _
    // Predicated region
    $region214: #{_lambda_.1} parent=1 // pred_check
      _
    $region215: #{_lambda_.1} parent=1 // pred_check_branch
      %404 = sbr.rel (0) target = $region217
    $region216: #{_lambda_.1} parent=1 // pred_region
      %406 = dma.done [#allocation6], 16
    $region217: #{_lambda_.1} parent=1 // pred_fallthru
      _
    // Predicated region
    $region218: #{_lambda_.1} parent=1 // pred_check
      _
    $region219: #{_lambda_.1} parent=1 // pred_check_branch
      %408 = sbr.rel (0) target = $region221
    $region220: #{_lambda_.1} parent=1 // pred_region
      %410 = dma.done [#allocation8], 16
    $region221: #{_lambda_.1} parent=1 // pred_fallthru
      _
    // Predicated region
    $region222: #{_lambda_.1} parent=1 // pred_check
      _
    $region223: #{_lambda_.1} parent=1 // pred_check_branch
      %412 = sbr.rel (0) target = $region225
    $region224: #{_lambda_.1} parent=1 // pred_region
      %414 = dma.done [#allocation8], 16
    $region225: #{_lambda_.1} parent=1 // pred_fallthru
      _
    // Predicated region
    $region226: #{_lambda_.1} parent=1 // pred_check
      _
    $region227: #{_lambda_.1} parent=1 // pred_check_branch
      %416 = sbr.rel (0) target = $region229
    $region228: #{_lambda_.1} parent=1 // pred_region
      %418 = dma.done [#allocation11], 16
    $region229: #{_lambda_.1} parent=1 // pred_fallthru
      _
    // Predicated region
    $region230: #{_lambda_.1} parent=1 // pred_check
      _
    $region231: #{_lambda_.1} parent=1 // pred_check_branch
      %420 = sbr.rel (0) target = $region233
    $region232: #{_lambda_.1} parent=1 // pred_region
      %422 = dma.done [#allocation11], 16
    $region233: #{_lambda_.1} parent=1 // pred_fallthru
      _
    // Predicated region
    $region234: #{_lambda_.1} parent=1 // pred_check
      _
    $region235: #{_lambda_.1} parent=1 // pred_check_branch
      %424 = sbr.rel (0) target = $region237
    $region236: #{_lambda_.1} parent=1 // pred_region
      %426 = dma.done [#allocation14], 16
    $region237: #{_lambda_.1} parent=1 // pred_fallthru
      _
    // Predicated region
    $region238: #{_lambda_.1} parent=1 // pred_check
      _
    $region239: #{_lambda_.1} parent=1 // pred_check_branch
      %428 = sbr.rel (0) target = $region241
    $region240: #{_lambda_.1} parent=1 // pred_region
      %430 = dma.done [#allocation14], 16
    $region241: #{_lambda_.1} parent=1 // pred_fallthru
      _
    // Predicated region
    $region242: #{_lambda_.1} parent=1 // pred_check
      _
    $region243: #{_lambda_.1} parent=1 // pred_check_branch
      %432 = sbr.rel (0) target = $region245
    $region244: #{_lambda_.1} parent=1 // pred_region
      %434 = dma.done [#allocation17], 16
    $region245: #{_lambda_.1} parent=1 // pred_fallthru
      _
    // Predicated region
    $region246: #{_lambda_.1} parent=1 // pred_check
      _
    $region247: #{_lambda_.1} parent=1 // pred_check_branch
      %436 = sbr.rel (0) target = $region249
    $region248: #{_lambda_.1} parent=1 // pred_region
      %438 = dma.done [#allocation17], 16
    $region249: #{_lambda_.1} parent=1 // pred_fallthru
      _
    // Predicated region
    $region250: #{_lambda_.1} parent=1 // pred_check
      _
    $region251: #{_lambda_.1} parent=1 // pred_check_branch
      %440 = sbr.rel (0) target = $region253
    $region252: #{_lambda_.1} parent=1 // pred_region
      %442 = dma.done [#allocation20], 16
    $region253: #{_lambda_.1} parent=1 // pred_fallthru
      _
    // Predicated region
    $region254: #{_lambda_.1} parent=1 // pred_check
      _
    $region255: #{_lambda_.1} parent=1 // pred_check_branch
      %444 = sbr.rel (0) target = $region257
    $region256: #{_lambda_.1} parent=1 // pred_region
      %446 = dma.done [#allocation20], 16
    $region257: #{_lambda_.1} parent=1 // pred_fallthru
      _
    // Predicated region
    $region258: #{_lambda_.1} parent=1 // pred_check
      _
    $region259: #{_lambda_.1} parent=1 // pred_check_branch
      %448 = sbr.rel (0) target = $region261
    $region260: #{_lambda_.1} parent=1 // pred_region
      %450 = dma.done [#allocation23], 16
    $region261: #{_lambda_.1} parent=1 // pred_fallthru
      _
    // Predicated region
    $region262: #{_lambda_.1} parent=1 // pred_check
      _
    $region263: #{_lambda_.1} parent=1 // pred_check_branch
      %452 = sbr.rel (0) target = $region265
    $region264: #{_lambda_.1} parent=1 // pred_region
      %454 = dma.done [#allocation23], 16
    $region265: #{_lambda_.1} parent=1 // pred_fallthru
      _
    // Predicated region
    $region266: #{_lambda_.1} parent=1 // pred_check
      _
    $region267: #{_lambda_.1} parent=1 // pred_check_branch
      %456 = sbr.rel (0) target = $region269
    $region268: #{_lambda_.1} parent=1 // pred_region
      %458 = dma.done [#allocation26], 16
    $region269: #{_lambda_.1} parent=1 // pred_fallthru
      _
    // Predicated region
    $region270: #{_lambda_.1} parent=1 // pred_check
      _
    $region271: #{_lambda_.1} parent=1 // pred_check_branch
      %460 = sbr.rel (0) target = $region273
    $region272: #{_lambda_.1} parent=1 // pred_region
      %462 = dma.done [#allocation26], 16
    $region273: #{_lambda_.1} parent=1 // pred_fallthru
      _
    // Predicated region
    $region274: #{_lambda_.1} parent=1 // pred_check
      _
    $region275: #{_lambda_.1} parent=1 // pred_check_branch
      %464 = sbr.rel (0) target = $region277
    $region276: #{_lambda_.1} parent=1 // pred_region
      %466 = dma.done [#allocation29], 256
    $region277: #{_lambda_.1} parent=1 // pred_fallthru
      _
    // Predicated region
    $region278: #{_lambda_.1} parent=1 // pred_check
      _
    $region279: #{_lambda_.1} parent=1 // pred_check_branch
      %468 = sbr.rel (0) target = $region281
    $region280: #{_lambda_.1} parent=1 // pred_region
      %470 = dma.done [#allocation29], 16
    $region281: #{_lambda_.1} parent=1 // pred_fallthru
      _
    // Predicated region
    $region282: #{_lambda_.1} parent=1 // pred_check
      _
    $region283: #{_lambda_.1} parent=1 // pred_check_branch
      %472 = sbr.rel (0) target = $region285
    $region284: #{_lambda_.1} parent=1 // pred_region
      %474 = dma.done [#allocation32], 32
    $region285: #{_lambda_.1} parent=1 // pred_fallthru
      _
    // Predicated region
    $region286: #{_lambda_.1} parent=1 // pred_check
      _
    $region287: #{_lambda_.1} parent=1 // pred_check_branch
      %476 = sbr.rel (0) target = $region289
    $region288: #{_lambda_.1} parent=1 // pred_region
      %478 = dma.done [#allocation32], 16
    $region289: #{_lambda_.1} parent=1 // pred_fallthru
      _
    // Predicated region
    $region290: #{_lambda_.1} parent=1 // pred_check
      _
    $region291: #{_lambda_.1} parent=1 // pred_check_branch
      %481 = sbr.rel (0) target = $region293
    $region292: #{_lambda_.1} parent=1 // pred_region
      loop: start=0, step=1, limit=1
      $region294: #{_lambda_.1} parent=292 // loop_pre_header
        _
      $region295: #{_lambda_.1} parent=292 // loop_header
        %s483 = sphi 0, %s487
        %p484 = scmp.ge.s32.totalorder %s483, 1
        %s488 = sphi %s95, %s95
        %s489 = sphi [#allocation2], [#allocation2]
      $region296: #{_lambda_.1} parent=292 // loop_header_branch
        %486 = sbr.rel (%p484) target = $region300
      $region297: #{_lambda_.1} parent=292 // loop_body
        %v490 = vld [vmem:[%s488] sm:$0xff]
        %491 = vst [vmem:[%s489] sm:$0xff] %v490
        %v492 = vld [vmem:[%s488 + $0x8] sm:$0xff]
        %493 = vst [vmem:[%s489 + $0x8] sm:$0xff] %v492
        %v494 = vld [vmem:[%s488 + $0x10] sm:$0xff]
        %495 = vst [vmem:[%s489 + $0x10] sm:$0xff] %v494
        %v496 = vld [vmem:[%s488 + $0x18] sm:$0xff]
        %497 = vst [vmem:[%s489 + $0x18] sm:$0xff] %v496
        %v498 = vld [vmem:[%s488 + $0x20] sm:$0xff]
        %499 = vst [vmem:[%s489 + $0x20] sm:$0xff] %v498
        %v500 = vld [vmem:[%s488 + $0x28] sm:$0xff]
        %501 = vst [vmem:[%s489 + $0x28] sm:$0xff] %v500
        %v502 = vld [vmem:[%s488 + $0x30] sm:$0xff]
        %503 = vst [vmem:[%s489 + $0x30] sm:$0xff] %v502
        %v504 = vld [vmem:[%s488 + $0x38] sm:$0xff]
        %505 = vst [vmem:[%s489 + $0x38] sm:$0xff] %v504
        %v506 = vld [vmem:[%s488 + $0x40] sm:$0xff]
        %507 = vst [vmem:[%s489 + $0x40] sm:$0xff] %v506
        %v508 = vld [vmem:[%s488 + $0x48] sm:$0xff]
        %509 = vst [vmem:[%s489 + $0x48] sm:$0xff] %v508
        %v510 = vld [vmem:[%s488 + $0x50] sm:$0xff]
        %511 = vst [vmem:[%s489 + $0x50] sm:$0xff] %v510
        %v512 = vld [vmem:[%s488 + $0x58] sm:$0xff]
        %513 = vst [vmem:[%s489 + $0x58] sm:$0xff] %v512
        %v514 = vld [vmem:[%s488 + $0x60] sm:$0xff]
        %515 = vst [vmem:[%s489 + $0x60] sm:$0xff] %v514
        %v516 = vld [vmem:[%s488 + $0x68] sm:$0xff]
        %517 = vst [vmem:[%s489 + $0x68] sm:$0xff] %v516
        %v518 = vld [vmem:[%s488 + $0x70] sm:$0xff]
        %519 = vst [vmem:[%s489 + $0x70] sm:$0xff] %v518
        %v520 = vld [vmem:[%s488 + $0x78] sm:$0xff]
        %521 = vst [vmem:[%s489 + $0x78] sm:$0xff] %v520
        %v522 = vld [vmem:[%s488 + $0x80] sm:$0xff]
        %523 = vst [vmem:[%s489 + $0x80] sm:$0xff] %v522
        %v524 = vld [vmem:[%s488 + $0x88] sm:$0xff]
        %525 = vst [vmem:[%s489 + $0x88] sm:$0xff] %v524
        %v526 = vld [vmem:[%s488 + $0x90] sm:$0xff]
        %527 = vst [vmem:[%s489 + $0x90] sm:$0xff] %v526
        %v528 = vld [vmem:[%s488 + $0x98] sm:$0xff]
        %529 = vst [vmem:[%s489 + $0x98] sm:$0xff] %v528
        %v530 = vld [vmem:[%s488 + $0xa0] sm:$0xff]
        %531 = vst [vmem:[%s489 + $0xa0] sm:$0xff] %v530
        %v532 = vld [vmem:[%s488 + $0xa8] sm:$0xff]
        %533 = vst [vmem:[%s489 + $0xa8] sm:$0xff] %v532
        %v534 = vld [vmem:[%s488 + $0xb0] sm:$0xff]
        %535 = vst [vmem:[%s489 + $0xb0] sm:$0xff] %v534
        %v536 = vld [vmem:[%s488 + $0xb8] sm:$0xff]
        %537 = vst [vmem:[%s489 + $0xb8] sm:$0xff] %v536
        %v538 = vld [vmem:[%s488 + $0xc0] sm:$0xff]
        %539 = vst [vmem:[%s489 + $0xc0] sm:$0xff] %v538
        %v540 = vld [vmem:[%s488 + $0xc8] sm:$0xff]
        %541 = vst [vmem:[%s489 + $0xc8] sm:$0xff] %v540
        %v542 = vld [vmem:[%s488 + $0xd0] sm:$0xff]
        %543 = vst [vmem:[%s489 + $0xd0] sm:$0xff] %v542
        %v544 = vld [vmem:[%s488 + $0xd8] sm:$0xff]
        %545 = vst [vmem:[%s489 + $0xd8] sm:$0xff] %v544
        %v546 = vld [vmem:[%s488 + $0xe0] sm:$0xff]
        %547 = vst [vmem:[%s489 + $0xe0] sm:$0xff] %v546
        %v548 = vld [vmem:[%s488 + $0xe8] sm:$0xff]
        %549 = vst [vmem:[%s489 + $0xe8] sm:$0xff] %v548
        %v550 = vld [vmem:[%s488 + $0xf0] sm:$0xff]
        %551 = vst [vmem:[%s489 + $0xf0] sm:$0xff] %v550
        %v552 = vld [vmem:[%s488 + $0xf8] sm:$0xff]
        %553 = vst [vmem:[%s489 + $0xf8] sm:$0xff] %v552
        %v554 = vld [vmem:[%s488 + $0x100] sm:$0xff]
        %555 = vst [vmem:[%s489 + $0x100] sm:$0xff] %v554
        %v556 = vld [vmem:[%s488 + $0x108] sm:$0xff]
        %557 = vst [vmem:[%s489 + $0x108] sm:$0xff] %v556
        %v558 = vld [vmem:[%s488 + $0x110] sm:$0xff]
        %559 = vst [vmem:[%s489 + $0x110] sm:$0xff] %v558
        %v560 = vld [vmem:[%s488 + $0x118] sm:$0xff]
        %561 = vst [vmem:[%s489 + $0x118] sm:$0xff] %v560
        %v562 = vld [vmem:[%s488 + $0x120] sm:$0xff]
        %563 = vst [vmem:[%s489 + $0x120] sm:$0xff] %v562
        %v564 = vld [vmem:[%s488 + $0x128] sm:$0xff]
        %565 = vst [vmem:[%s489 + $0x128] sm:$0xff] %v564
        %v566 = vld [vmem:[%s488 + $0x130] sm:$0xff]
        %567 = vst [vmem:[%s489 + $0x130] sm:$0xff] %v566
        %v568 = vld [vmem:[%s488 + $0x138] sm:$0xff]
        %569 = vst [vmem:[%s489 + $0x138] sm:$0xff] %v568
        %v570 = vld [vmem:[%s488 + $0x140] sm:$0xff]
        %571 = vst [vmem:[%s489 + $0x140] sm:$0xff] %v570
        %v572 = vld [vmem:[%s488 + $0x148] sm:$0xff]
        %573 = vst [vmem:[%s489 + $0x148] sm:$0xff] %v572
        %v574 = vld [vmem:[%s488 + $0x150] sm:$0xff]
        %575 = vst [vmem:[%s489 + $0x150] sm:$0xff] %v574
        %v576 = vld [vmem:[%s488 + $0x158] sm:$0xff]
        %577 = vst [vmem:[%s489 + $0x158] sm:$0xff] %v576
        %v578 = vld [vmem:[%s488 + $0x160] sm:$0xff]
        %579 = vst [vmem:[%s489 + $0x160] sm:$0xff] %v578
        %v580 = vld [vmem:[%s488 + $0x168] sm:$0xff]
        %581 = vst [vmem:[%s489 + $0x168] sm:$0xff] %v580
        %v582 = vld [vmem:[%s488 + $0x170] sm:$0xff]
        %583 = vst [vmem:[%s489 + $0x170] sm:$0xff] %v582
        %v584 = vld [vmem:[%s488 + $0x178] sm:$0xff]
        %585 = vst [vmem:[%s489 + $0x178] sm:$0xff] %v584
        %v586 = vld [vmem:[%s488 + $0x180] sm:$0xff]
        %587 = vst [vmem:[%s489 + $0x180] sm:$0xff] %v586
        %v588 = vld [vmem:[%s488 + $0x188] sm:$0xff]
        %589 = vst [vmem:[%s489 + $0x188] sm:$0xff] %v588
        %v590 = vld [vmem:[%s488 + $0x190] sm:$0xff]
        %591 = vst [vmem:[%s489 + $0x190] sm:$0xff] %v590
        %v592 = vld [vmem:[%s488 + $0x198] sm:$0xff]
        %593 = vst [vmem:[%s489 + $0x198] sm:$0xff] %v592
        %v594 = vld [vmem:[%s488 + $0x1a0] sm:$0xff]
        %595 = vst [vmem:[%s489 + $0x1a0] sm:$0xff] %v594
        %v596 = vld [vmem:[%s488 + $0x1a8] sm:$0xff]
        %597 = vst [vmem:[%s489 + $0x1a8] sm:$0xff] %v596
        %v598 = vld [vmem:[%s488 + $0x1b0] sm:$0xff]
        %599 = vst [vmem:[%s489 + $0x1b0] sm:$0xff] %v598
        %v600 = vld [vmem:[%s488 + $0x1b8] sm:$0xff]
        %601 = vst [vmem:[%s489 + $0x1b8] sm:$0xff] %v600
        %v602 = vld [vmem:[%s488 + $0x1c0] sm:$0xff]
        %603 = vst [vmem:[%s489 + $0x1c0] sm:$0xff] %v602
        %v604 = vld [vmem:[%s488 + $0x1c8] sm:$0xff]
        %605 = vst [vmem:[%s489 + $0x1c8] sm:$0xff] %v604
        %v606 = vld [vmem:[%s488 + $0x1d0] sm:$0xff]
        %607 = vst [vmem:[%s489 + $0x1d0] sm:$0xff] %v606
        %v608 = vld [vmem:[%s488 + $0x1d8] sm:$0xff]
        %609 = vst [vmem:[%s489 + $0x1d8] sm:$0xff] %v608
        %v610 = vld [vmem:[%s488 + $0x1e0] sm:$0xff]
        %611 = vst [vmem:[%s489 + $0x1e0] sm:$0xff] %v610
        %v612 = vld [vmem:[%s488 + $0x1e8] sm:$0xff]
        %613 = vst [vmem:[%s489 + $0x1e8] sm:$0xff] %v612
        %v614 = vld [vmem:[%s488 + $0x1f0] sm:$0xff]
        %615 = vst [vmem:[%s489 + $0x1f0] sm:$0xff] %v614
        %v616 = vld [vmem:[%s488 + $0x1f8] sm:$0xff]
        %617 = vst [vmem:[%s489 + $0x1f8] sm:$0xff] %v616
      $region298: #{_lambda_.1} parent=292 // loop_footer
        %s487 = sadd.s32 1, %s483
      $region299: #{_lambda_.1} parent=292 // loop_footer_branch
        %482 = sbr.rel target = $region295
      $region300: #{_lambda_.1} parent=292 // loop_exit
        _
    $region293: #{_lambda_.1} parent=1 // pred_fallthru
      _
    // Predicated region
    $region301: #{_lambda_.1} parent=1 // pred_check
      _
    $region302: #{_lambda_.1} parent=1 // pred_check_branch
      %619 = sbr.rel target = $region304
    $region303: #{_lambda_.1} parent=1 // pred_region
      _
    $region304: #{_lambda_.1} parent=1 // pred_fallthru
      _
    // Predicated region
    $region305: #{_lambda_.1} parent=1 // pred_check
      _
    $region306: #{_lambda_.1} parent=1 // pred_check_branch
      %622 = sbr.rel (0) target = $region308
    $region307: #{_lambda_.1} parent=1 // pred_region
      %623 = vsyncadd [#allocation4], 8192
    $region308: #{_lambda_.1} parent=1 // pred_fallthru
      _
    %s624 = scalar_lea.sflag [#allocation4], 1
    // Predicated region
    $region309: #{_lambda_.1} parent=1 // pred_check
      _
    $region310: #{_lambda_.1} parent=1 // pred_check_branch
      %626 = sbr.rel (0) target = $region312
    $region311: #{_lambda_.1} parent=1 // pred_region
      loop: start=0, step=1, limit=1
      $region313: #{_lambda_.1} parent=311 // loop_pre_header
        _
      $region314: #{_lambda_.1} parent=311 // loop_header
        %s628 = sphi 0, %s632
        %p629 = scmp.ge.s32.totalorder %s628, 1
        %s633 = sphi %s99, %s99
        %s634 = sphi [#allocation3], [#allocation3]
      $region315: #{_lambda_.1} parent=311 // loop_header_branch
        %631 = sbr.rel (%p629) target = $region319
      $region316: #{_lambda_.1} parent=311 // loop_body
        %v635 = vld [vmem:[%s633] sm:$0xff]
        %636 = vst [vmem:[%s634] sm:$0xff] %v635
        %v637 = vld [vmem:[%s633 + $0x8] sm:$0xff]
        %638 = vst [vmem:[%s634 + $0x8] sm:$0xff] %v637
        %v639 = vld [vmem:[%s633 + $0x10] sm:$0xff]
        %640 = vst [vmem:[%s634 + $0x10] sm:$0xff] %v639
        %v641 = vld [vmem:[%s633 + $0x18] sm:$0xff]
        %642 = vst [vmem:[%s634 + $0x18] sm:$0xff] %v641
        %v643 = vld [vmem:[%s633 + $0x20] sm:$0xff]
        %644 = vst [vmem:[%s634 + $0x20] sm:$0xff] %v643
        %v645 = vld [vmem:[%s633 + $0x28] sm:$0xff]
        %646 = vst [vmem:[%s634 + $0x28] sm:$0xff] %v645
        %v647 = vld [vmem:[%s633 + $0x30] sm:$0xff]
        %648 = vst [vmem:[%s634 + $0x30] sm:$0xff] %v647
        %v649 = vld [vmem:[%s633 + $0x38] sm:$0xff]
        %650 = vst [vmem:[%s634 + $0x38] sm:$0xff] %v649
        %v651 = vld [vmem:[%s633 + $0x40] sm:$0xff]
        %652 = vst [vmem:[%s634 + $0x40] sm:$0xff] %v651
        %v653 = vld [vmem:[%s633 + $0x48] sm:$0xff]
        %654 = vst [vmem:[%s634 + $0x48] sm:$0xff] %v653
        %v655 = vld [vmem:[%s633 + $0x50] sm:$0xff]
        %656 = vst [vmem:[%s634 + $0x50] sm:$0xff] %v655
        %v657 = vld [vmem:[%s633 + $0x58] sm:$0xff]
        %658 = vst [vmem:[%s634 + $0x58] sm:$0xff] %v657
        %v659 = vld [vmem:[%s633 + $0x60] sm:$0xff]
        %660 = vst [vmem:[%s634 + $0x60] sm:$0xff] %v659
        %v661 = vld [vmem:[%s633 + $0x68] sm:$0xff]
        %662 = vst [vmem:[%s634 + $0x68] sm:$0xff] %v661
        %v663 = vld [vmem:[%s633 + $0x70] sm:$0xff]
        %664 = vst [vmem:[%s634 + $0x70] sm:$0xff] %v663
        %v665 = vld [vmem:[%s633 + $0x78] sm:$0xff]
        %666 = vst [vmem:[%s634 + $0x78] sm:$0xff] %v665
        %v667 = vld [vmem:[%s633 + $0x80] sm:$0xff]
        %668 = vst [vmem:[%s634 + $0x80] sm:$0xff] %v667
        %v669 = vld [vmem:[%s633 + $0x88] sm:$0xff]
        %670 = vst [vmem:[%s634 + $0x88] sm:$0xff] %v669
        %v671 = vld [vmem:[%s633 + $0x90] sm:$0xff]
        %672 = vst [vmem:[%s634 + $0x90] sm:$0xff] %v671
        %v673 = vld [vmem:[%s633 + $0x98] sm:$0xff]
        %674 = vst [vmem:[%s634 + $0x98] sm:$0xff] %v673
        %v675 = vld [vmem:[%s633 + $0xa0] sm:$0xff]
        %676 = vst [vmem:[%s634 + $0xa0] sm:$0xff] %v675
        %v677 = vld [vmem:[%s633 + $0xa8] sm:$0xff]
        %678 = vst [vmem:[%s634 + $0xa8] sm:$0xff] %v677
        %v679 = vld [vmem:[%s633 + $0xb0] sm:$0xff]
        %680 = vst [vmem:[%s634 + $0xb0] sm:$0xff] %v679
        %v681 = vld [vmem:[%s633 + $0xb8] sm:$0xff]
        %682 = vst [vmem:[%s634 + $0xb8] sm:$0xff] %v681
        %v683 = vld [vmem:[%s633 + $0xc0] sm:$0xff]
        %684 = vst [vmem:[%s634 + $0xc0] sm:$0xff] %v683
        %v685 = vld [vmem:[%s633 + $0xc8] sm:$0xff]
        %686 = vst [vmem:[%s634 + $0xc8] sm:$0xff] %v685
        %v687 = vld [vmem:[%s633 + $0xd0] sm:$0xff]
        %688 = vst [vmem:[%s634 + $0xd0] sm:$0xff] %v687
        %v689 = vld [vmem:[%s633 + $0xd8] sm:$0xff]
        %690 = vst [vmem:[%s634 + $0xd8] sm:$0xff] %v689
        %v691 = vld [vmem:[%s633 + $0xe0] sm:$0xff]
        %692 = vst [vmem:[%s634 + $0xe0] sm:$0xff] %v691
        %v693 = vld [vmem:[%s633 + $0xe8] sm:$0xff]
        %694 = vst [vmem:[%s634 + $0xe8] sm:$0xff] %v693
        %v695 = vld [vmem:[%s633 + $0xf0] sm:$0xff]
        %696 = vst [vmem:[%s634 + $0xf0] sm:$0xff] %v695
        %v697 = vld [vmem:[%s633 + $0xf8] sm:$0xff]
        %698 = vst [vmem:[%s634 + $0xf8] sm:$0xff] %v697
        %v699 = vld [vmem:[%s633 + $0x100] sm:$0xff]
        %700 = vst [vmem:[%s634 + $0x100] sm:$0xff] %v699
        %v701 = vld [vmem:[%s633 + $0x108] sm:$0xff]
        %702 = vst [vmem:[%s634 + $0x108] sm:$0xff] %v701
        %v703 = vld [vmem:[%s633 + $0x110] sm:$0xff]
        %704 = vst [vmem:[%s634 + $0x110] sm:$0xff] %v703
        %v705 = vld [vmem:[%s633 + $0x118] sm:$0xff]
        %706 = vst [vmem:[%s634 + $0x118] sm:$0xff] %v705
        %v707 = vld [vmem:[%s633 + $0x120] sm:$0xff]
        %708 = vst [vmem:[%s634 + $0x120] sm:$0xff] %v707
        %v709 = vld [vmem:[%s633 + $0x128] sm:$0xff]
        %710 = vst [vmem:[%s634 + $0x128] sm:$0xff] %v709
        %v711 = vld [vmem:[%s633 + $0x130] sm:$0xff]
        %712 = vst [vmem:[%s634 + $0x130] sm:$0xff] %v711
        %v713 = vld [vmem:[%s633 + $0x138] sm:$0xff]
        %714 = vst [vmem:[%s634 + $0x138] sm:$0xff] %v713
        %v715 = vld [vmem:[%s633 + $0x140] sm:$0xff]
        %716 = vst [vmem:[%s634 + $0x140] sm:$0xff] %v715
        %v717 = vld [vmem:[%s633 + $0x148] sm:$0xff]
        %718 = vst [vmem:[%s634 + $0x148] sm:$0xff] %v717
        %v719 = vld [vmem:[%s633 + $0x150] sm:$0xff]
        %720 = vst [vmem:[%s634 + $0x150] sm:$0xff] %v719
        %v721 = vld [vmem:[%s633 + $0x158] sm:$0xff]
        %722 = vst [vmem:[%s634 + $0x158] sm:$0xff] %v721
        %v723 = vld [vmem:[%s633 + $0x160] sm:$0xff]
        %724 = vst [vmem:[%s634 + $0x160] sm:$0xff] %v723
        %v725 = vld [vmem:[%s633 + $0x168] sm:$0xff]
        %726 = vst [vmem:[%s634 + $0x168] sm:$0xff] %v725
        %v727 = vld [vmem:[%s633 + $0x170] sm:$0xff]
        %728 = vst [vmem:[%s634 + $0x170] sm:$0xff] %v727
        %v729 = vld [vmem:[%s633 + $0x178] sm:$0xff]
        %730 = vst [vmem:[%s634 + $0x178] sm:$0xff] %v729
        %v731 = vld [vmem:[%s633 + $0x180] sm:$0xff]
        %732 = vst [vmem:[%s634 + $0x180] sm:$0xff] %v731
        %v733 = vld [vmem:[%s633 + $0x188] sm:$0xff]
        %734 = vst [vmem:[%s634 + $0x188] sm:$0xff] %v733
        %v735 = vld [vmem:[%s633 + $0x190] sm:$0xff]
        %736 = vst [vmem:[%s634 + $0x190] sm:$0xff] %v735
        %v737 = vld [vmem:[%s633 + $0x198] sm:$0xff]
        %738 = vst [vmem:[%s634 + $0x198] sm:$0xff] %v737
        %v739 = vld [vmem:[%s633 + $0x1a0] sm:$0xff]
        %740 = vst [vmem:[%s634 + $0x1a0] sm:$0xff] %v739
        %v741 = vld [vmem:[%s633 + $0x1a8] sm:$0xff]
        %742 = vst [vmem:[%s634 + $0x1a8] sm:$0xff] %v741
        %v743 = vld [vmem:[%s633 + $0x1b0] sm:$0xff]
        %744 = vst [vmem:[%s634 + $0x1b0] sm:$0xff] %v743
        %v745 = vld [vmem:[%s633 + $0x1b8] sm:$0xff]
        %746 = vst [vmem:[%s634 + $0x1b8] sm:$0xff] %v745
        %v747 = vld [vmem:[%s633 + $0x1c0] sm:$0xff]
        %748 = vst [vmem:[%s634 + $0x1c0] sm:$0xff] %v747
        %v749 = vld [vmem:[%s633 + $0x1c8] sm:$0xff]
        %750 = vst [vmem:[%s634 + $0x1c8] sm:$0xff] %v749
        %v751 = vld [vmem:[%s633 + $0x1d0] sm:$0xff]
        %752 = vst [vmem:[%s634 + $0x1d0] sm:$0xff] %v751
        %v753 = vld [vmem:[%s633 + $0x1d8] sm:$0xff]
        %754 = vst [vmem:[%s634 + $0x1d8] sm:$0xff] %v753
        %v755 = vld [vmem:[%s633 + $0x1e0] sm:$0xff]
        %756 = vst [vmem:[%s634 + $0x1e0] sm:$0xff] %v755
        %v757 = vld [vmem:[%s633 + $0x1e8] sm:$0xff]
        %758 = vst [vmem:[%s634 + $0x1e8] sm:$0xff] %v757
        %v759 = vld [vmem:[%s633 + $0x1f0] sm:$0xff]
        %760 = vst [vmem:[%s634 + $0x1f0] sm:$0xff] %v759
        %v761 = vld [vmem:[%s633 + $0x1f8] sm:$0xff]
        %762 = vst [vmem:[%s634 + $0x1f8] sm:$0xff] %v761
        %v763 = vld [vmem:[%s633 + $0x200] sm:$0xff]
        %764 = vst [vmem:[%s634 + $0x200] sm:$0xff] %v763
        %v765 = vld [vmem:[%s633 + $0x208] sm:$0xff]
        %766 = vst [vmem:[%s634 + $0x208] sm:$0xff] %v765
        %v767 = vld [vmem:[%s633 + $0x210] sm:$0xff]
        %768 = vst [vmem:[%s634 + $0x210] sm:$0xff] %v767
        %v769 = vld [vmem:[%s633 + $0x218] sm:$0xff]
        %770 = vst [vmem:[%s634 + $0x218] sm:$0xff] %v769
        %v771 = vld [vmem:[%s633 + $0x220] sm:$0xff]
        %772 = vst [vmem:[%s634 + $0x220] sm:$0xff] %v771
        %v773 = vld [vmem:[%s633 + $0x228] sm:$0xff]
        %774 = vst [vmem:[%s634 + $0x228] sm:$0xff] %v773
        %v775 = vld [vmem:[%s633 + $0x230] sm:$0xff]
        %776 = vst [vmem:[%s634 + $0x230] sm:$0xff] %v775
        %v777 = vld [vmem:[%s633 + $0x238] sm:$0xff]
        %778 = vst [vmem:[%s634 + $0x238] sm:$0xff] %v777
        %v779 = vld [vmem:[%s633 + $0x240] sm:$0xff]
        %780 = vst [vmem:[%s634 + $0x240] sm:$0xff] %v779
        %v781 = vld [vmem:[%s633 + $0x248] sm:$0xff]
        %782 = vst [vmem:[%s634 + $0x248] sm:$0xff] %v781
        %v783 = vld [vmem:[%s633 + $0x250] sm:$0xff]
        %784 = vst [vmem:[%s634 + $0x250] sm:$0xff] %v783
        %v785 = vld [vmem:[%s633 + $0x258] sm:$0xff]
        %786 = vst [vmem:[%s634 + $0x258] sm:$0xff] %v785
        %v787 = vld [vmem:[%s633 + $0x260] sm:$0xff]
        %788 = vst [vmem:[%s634 + $0x260] sm:$0xff] %v787
        %v789 = vld [vmem:[%s633 + $0x268] sm:$0xff]
        %790 = vst [vmem:[%s634 + $0x268] sm:$0xff] %v789
        %v791 = vld [vmem:[%s633 + $0x270] sm:$0xff]
        %792 = vst [vmem:[%s634 + $0x270] sm:$0xff] %v791
        %v793 = vld [vmem:[%s633 + $0x278] sm:$0xff]
        %794 = vst [vmem:[%s634 + $0x278] sm:$0xff] %v793
        %v795 = vld [vmem:[%s633 + $0x280] sm:$0xff]
        %796 = vst [vmem:[%s634 + $0x280] sm:$0xff] %v795
        %v797 = vld [vmem:[%s633 + $0x288] sm:$0xff]
        %798 = vst [vmem:[%s634 + $0x288] sm:$0xff] %v797
        %v799 = vld [vmem:[%s633 + $0x290] sm:$0xff]
        %800 = vst [vmem:[%s634 + $0x290] sm:$0xff] %v799
        %v801 = vld [vmem:[%s633 + $0x298] sm:$0xff]
        %802 = vst [vmem:[%s634 + $0x298] sm:$0xff] %v801
        %v803 = vld [vmem:[%s633 + $0x2a0] sm:$0xff]
        %804 = vst [vmem:[%s634 + $0x2a0] sm:$0xff] %v803
        %v805 = vld [vmem:[%s633 + $0x2a8] sm:$0xff]
        %806 = vst [vmem:[%s634 + $0x2a8] sm:$0xff] %v805
        %v807 = vld [vmem:[%s633 + $0x2b0] sm:$0xff]
        %808 = vst [vmem:[%s634 + $0x2b0] sm:$0xff] %v807
        %v809 = vld [vmem:[%s633 + $0x2b8] sm:$0xff]
        %810 = vst [vmem:[%s634 + $0x2b8] sm:$0xff] %v809
        %v811 = vld [vmem:[%s633 + $0x2c0] sm:$0xff]
        %812 = vst [vmem:[%s634 + $0x2c0] sm:$0xff] %v811
        %v813 = vld [vmem:[%s633 + $0x2c8] sm:$0xff]
        %814 = vst [vmem:[%s634 + $0x2c8] sm:$0xff] %v813
        %v815 = vld [vmem:[%s633 + $0x2d0] sm:$0xff]
        %816 = vst [vmem:[%s634 + $0x2d0] sm:$0xff] %v815
        %v817 = vld [vmem:[%s633 + $0x2d8] sm:$0xff]
        %818 = vst [vmem:[%s634 + $0x2d8] sm:$0xff] %v817
        %v819 = vld [vmem:[%s633 + $0x2e0] sm:$0xff]
        %820 = vst [vmem:[%s634 + $0x2e0] sm:$0xff] %v819
        %v821 = vld [vmem:[%s633 + $0x2e8] sm:$0xff]
        %822 = vst [vmem:[%s634 + $0x2e8] sm:$0xff] %v821
        %v823 = vld [vmem:[%s633 + $0x2f0] sm:$0xff]
        %824 = vst [vmem:[%s634 + $0x2f0] sm:$0xff] %v823
        %v825 = vld [vmem:[%s633 + $0x2f8] sm:$0xff]
        %826 = vst [vmem:[%s634 + $0x2f8] sm:$0xff] %v825
        %v827 = vld [vmem:[%s633 + $0x300] sm:$0xff]
        %828 = vst [vmem:[%s634 + $0x300] sm:$0xff] %v827
        %v829 = vld [vmem:[%s633 + $0x308] sm:$0xff]
        %830 = vst [vmem:[%s634 + $0x308] sm:$0xff] %v829
        %v831 = vld [vmem:[%s633 + $0x310] sm:$0xff]
        %832 = vst [vmem:[%s634 + $0x310] sm:$0xff] %v831
        %v833 = vld [vmem:[%s633 + $0x318] sm:$0xff]
        %834 = vst [vmem:[%s634 + $0x318] sm:$0xff] %v833
        %v835 = vld [vmem:[%s633 + $0x320] sm:$0xff]
        %836 = vst [vmem:[%s634 + $0x320] sm:$0xff] %v835
        %v837 = vld [vmem:[%s633 + $0x328] sm:$0xff]
        %838 = vst [vmem:[%s634 + $0x328] sm:$0xff] %v837
        %v839 = vld [vmem:[%s633 + $0x330] sm:$0xff]
        %840 = vst [vmem:[%s634 + $0x330] sm:$0xff] %v839
        %v841 = vld [vmem:[%s633 + $0x338] sm:$0xff]
        %842 = vst [vmem:[%s634 + $0x338] sm:$0xff] %v841
        %v843 = vld [vmem:[%s633 + $0x340] sm:$0xff]
        %844 = vst [vmem:[%s634 + $0x340] sm:$0xff] %v843
        %v845 = vld [vmem:[%s633 + $0x348] sm:$0xff]
        %846 = vst [vmem:[%s634 + $0x348] sm:$0xff] %v845
        %v847 = vld [vmem:[%s633 + $0x350] sm:$0xff]
        %848 = vst [vmem:[%s634 + $0x350] sm:$0xff] %v847
        %v849 = vld [vmem:[%s633 + $0x358] sm:$0xff]
        %850 = vst [vmem:[%s634 + $0x358] sm:$0xff] %v849
        %v851 = vld [vmem:[%s633 + $0x360] sm:$0xff]
        %852 = vst [vmem:[%s634 + $0x360] sm:$0xff] %v851
        %v853 = vld [vmem:[%s633 + $0x368] sm:$0xff]
        %854 = vst [vmem:[%s634 + $0x368] sm:$0xff] %v853
        %v855 = vld [vmem:[%s633 + $0x370] sm:$0xff]
        %856 = vst [vmem:[%s634 + $0x370] sm:$0xff] %v855
        %v857 = vld [vmem:[%s633 + $0x378] sm:$0xff]
        %858 = vst [vmem:[%s634 + $0x378] sm:$0xff] %v857
        %v859 = vld [vmem:[%s633 + $0x380] sm:$0xff]
        %860 = vst [vmem:[%s634 + $0x380] sm:$0xff] %v859
        %v861 = vld [vmem:[%s633 + $0x388] sm:$0xff]
        %862 = vst [vmem:[%s634 + $0x388] sm:$0xff] %v861
        %v863 = vld [vmem:[%s633 + $0x390] sm:$0xff]
        %864 = vst [vmem:[%s634 + $0x390] sm:$0xff] %v863
        %v865 = vld [vmem:[%s633 + $0x398] sm:$0xff]
        %866 = vst [vmem:[%s634 + $0x398] sm:$0xff] %v865
        %v867 = vld [vmem:[%s633 + $0x3a0] sm:$0xff]
        %868 = vst [vmem:[%s634 + $0x3a0] sm:$0xff] %v867
        %v869 = vld [vmem:[%s633 + $0x3a8] sm:$0xff]
        %870 = vst [vmem:[%s634 + $0x3a8] sm:$0xff] %v869
        %v871 = vld [vmem:[%s633 + $0x3b0] sm:$0xff]
        %872 = vst [vmem:[%s634 + $0x3b0] sm:$0xff] %v871
        %v873 = vld [vmem:[%s633 + $0x3b8] sm:$0xff]
        %874 = vst [vmem:[%s634 + $0x3b8] sm:$0xff] %v873
        %v875 = vld [vmem:[%s633 + $0x3c0] sm:$0xff]
        %876 = vst [vmem:[%s634 + $0x3c0] sm:$0xff] %v875
        %v877 = vld [vmem:[%s633 + $0x3c8] sm:$0xff]
        %878 = vst [vmem:[%s634 + $0x3c8] sm:$0xff] %v877
        %v879 = vld [vmem:[%s633 + $0x3d0] sm:$0xff]
        %880 = vst [vmem:[%s634 + $0x3d0] sm:$0xff] %v879
        %v881 = vld [vmem:[%s633 + $0x3d8] sm:$0xff]
        %882 = vst [vmem:[%s634 + $0x3d8] sm:$0xff] %v881
        %v883 = vld [vmem:[%s633 + $0x3e0] sm:$0xff]
        %884 = vst [vmem:[%s634 + $0x3e0] sm:$0xff] %v883
        %v885 = vld [vmem:[%s633 + $0x3e8] sm:$0xff]
        %886 = vst [vmem:[%s634 + $0x3e8] sm:$0xff] %v885
        %v887 = vld [vmem:[%s633 + $0x3f0] sm:$0xff]
        %888 = vst [vmem:[%s634 + $0x3f0] sm:$0xff] %v887
        %v889 = vld [vmem:[%s633 + $0x3f8] sm:$0xff]
        %890 = vst [vmem:[%s634 + $0x3f8] sm:$0xff] %v889
      $region317: #{_lambda_.1} parent=311 // loop_footer
        %s632 = sadd.s32 1, %s628
      $region318: #{_lambda_.1} parent=311 // loop_footer_branch
        %627 = sbr.rel target = $region314
      $region319: #{_lambda_.1} parent=311 // loop_exit
        _
    $region312: #{_lambda_.1} parent=1 // pred_fallthru
      _
    // Predicated region
    $region320: #{_lambda_.1} parent=1 // pred_check
      _
    $region321: #{_lambda_.1} parent=1 // pred_check_branch
      %892 = sbr.rel target = $region323
    $region322: #{_lambda_.1} parent=1 // pred_region
      _
    $region323: #{_lambda_.1} parent=1 // pred_fallthru
      _
    // Predicated region
    $region324: #{_lambda_.1} parent=1 // pred_check
      _
    $region325: #{_lambda_.1} parent=1 // pred_check_branch
      %895 = sbr.rel (0) target = $region327
    $region326: #{_lambda_.1} parent=1 // pred_region
      %896 = vsyncadd %s624, 16384
    $region327: #{_lambda_.1} parent=1 // pred_fallthru
      _
    %v897 = vld [vmem:[%s1] sm:$0xff]
    %v898 = vld [vmem:[%s1 + $0x8] sm:$0xff]
    %v899 = vld [vmem:[%s7] sm:$0x1]
    %v900 = vld [vmem:[%s9] sm:$0x1]
    %vm901 = vcmask 392192
    %v902 = vsel %vm901, %v897, 0.0
    %903 = vadd.xlane.f32.xlu0 %v902
    %v904 = vpop.xlane.xlu0 %903
    %v905 = vsel %vm901, %v898, 0.0
    %906 = vadd.xlane.f32.xlu0 %v905
    %v907 = vpop.xlane.xlu0 %906
    %v908 = vrcp.pop 48.0
    %v909 = vmul.f32 48.0, %v908
    %v910 = vsub.f32 1.0, %v909
    %v911 = vmul.f32 %v908, %v910
    %v912 = vadd.f32 %v908, %v911
    %vm913 = vweird.f32 %v908
    %v914 = vsel %vm913, %v908, %v912
    %v915 = vmul.f32 %v904, %v914
    %v916 = vmul.f32 %v907, %v914
    %v917 = vsub.f32 %v897, %v915
    %v918 = vsub.f32 %v898, %v916
    %v919 = vmul.f32 %v917, %v917
    %v920 = vmul.f32 %v918, %v918
    %v921 = vsel %vm901, %v919, 0.0
    %922 = vadd.xlane.f32.xlu0 %v921
    %v923 = vpop.xlane.xlu0 %922
    %v924 = vsel %vm901, %v920, 0.0
    %925 = vadd.xlane.f32.xlu0 %v924
    %v926 = vpop.xlane.xlu0 %925
    %v927 = vmul.f32 %v923, %v914
    %v928 = vmul.f32 %v926, %v914
    %v929 = vadd.f32 %v927, 1e-05
    %v930 = vadd.f32 %v928, 1e-05
    %v931 = vrsqrt.pop %v929
    %v932 = vmul.f32 %v931, %v929
    %v933 = vmul.f32 %v932, %v931
    %v934 = vmul.f32 0.5, %v933
    %v935 = vsub.f32 1.5, %v934
    %v936 = vmul.f32 %v931, %v935
    %vm937 = vweird.f32 %v929
    %vm938 = vweird.f32 %v931
    %vm939 = vmor %vm937, %vm938
    %v940 = vsel %vm939, %v931, %v936
    %v941 = vrsqrt.pop %v930
    %v942 = vmul.f32 %v941, %v930
    %v943 = vmul.f32 %v942, %v941
    %v944 = vmul.f32 0.5, %v943
    %v945 = vsub.f32 1.5, %v944
    %v946 = vmul.f32 %v941, %v945
    %vm947 = vweird.f32 %v930
    %vm948 = vweird.f32 %v941
    %vm949 = vmor %vm947, %vm948
    %v950 = vsel %vm949, %v941, %v946
    %v951 = vmul.f32 %v917, %v940
    %v952 = vmul.f32 %v918, %v950
    %v954 = vperm.slane %v899, 0
    %v956 = vmul.f32 %v951, %v954
    %v957 = vmul.f32 %v952, %v954
    %v959 = vperm.slane %v900, 0
    %v961 = vadd.f32 %v956, %v959
    %v962 = vadd.f32 %v957, %v959
    %v963 = vlaneseq
    %v964 = vand.u32 %v963, 127
    %v965 = vlaneseq
    %v966 = vshrl.u32 %v965, 7
    %v967 = vmul.u32 %v966, 8
    %vm968 = vcmp.ge.s32.totalorder %v964, %v967
    %v969 = vadd.s32 %v966, 1
    %v970 = vmul.u32 %v969, 8
    %vm971 = vcmp.lt.s32.totalorder %v964, %v970
    %vm972 = vmand %vm968, %vm971
    %v973 = vsel %vm972, 0.125, 0.0
    %vm974 = vcmask 130048
    %v976 = vsel %vm974, %v973, 0
    %978 = vmatpush.msra.mxu0 0.0
    %979 = vmatpush.msra.mxu0 0.0
    %980 = vmatpush.msra.mxu0 0.0
    %981 = vmatpush.msra.mxu0 0.0
    %982 = vmatpush.msra.mxu0 0.0
    %983 = vmatpush.msra.mxu0 0.0
    %984 = vmatpush.msra.mxu0 0.0
    %985 = vmatpush.msra.mxu0 0.0
    %986 = vmatpush.msra.mxu0 0.0
    %987 = vmatpush.msra.mxu0 0.0
    %988 = vmatpush.msra.mxu0 0.0
    %989 = vmatpush.msra.mxu0 0.0
    %990 = vmatpush.msra.mxu0 0.0
    %991 = vmatpush.msra.mxu0 0.0
    %992 = vmatpush.msra.mxu0 %v962
    %993 = vmatpush.msra.mxu0 %v961
    %994 = vmatmul.f32.gmra.mxu0 %v976
    %v995 = vpop.f32.mrf.mxu0
    %v996 = vadd.f32 0.0, %v995
    %997 = vdwg.mxu0
    %v998 = vpack.c.bf16 %v996, %v996
    %v999 = vld [vmem:[%s11] sm:$0xf]
    %v1000 = vld [vmem:[%s11 + $0x4] sm:$0xf]
    %v1001 = vld [vmem:[%s11 + $0x8] sm:$0xf]
    %v1002 = vld [vmem:[%s11 + $0xc] sm:$0xf]
    %v1003 = vld [vmem:[%s11 + $0x10] sm:$0xf]
    %v1004 = vld [vmem:[%s11 + $0x14] sm:$0xf]
    %v1005 = vld [vmem:[%s13] sm:$0x1]
    %v1007 = vperm.slane %v1005, 0
    %v1015 = vunpack.c.l.b16 %v999
    %v1016 = vunpack.c.l.b16 %v1000
    %v1017 = vunpack.c.l.b16 %v1001
    %v1018 = vunpack.c.l.b16 %v1002
    %v1019 = vunpack.c.l.b16 %v1003
    %v1020 = vunpack.c.l.b16 %v1004
    %v1021 = vpack.c.b16 %v1016, %v1015
    %v1022 = vpack.c.b16 %v1018, %v1017
    %v1023 = vpack.c.b16 %v1020, %v1019
    %v1028 = vsel %vm901, %v998, 0
    %1030 = vmatpush.bf16.msra.mxu0 0
    %1031 = vmatpush.bf16.msra.mxu0 0
    %1032 = vmatpush.bf16.msra.mxu0 0
    %1033 = vmatpush.bf16.msra.mxu0 0
    %1034 = vmatpush.bf16.msra.mxu0 0
    %1035 = vmatpush.bf16.msra.mxu0 %v1023
    %1036 = vmatpush.bf16.msra.mxu0 %v1022
    %1037 = vmatpush.bf16.msra.mxu0 %v1021
    %1038 = vmatmul.bf16.gmra.mxu0 %v1028
    %v1039 = vpop.f32.mrf.mxu0
    %v1040 = vadd.f32 %v1007, %v1039
    %v1041 = vpop.f32.mrf.mxu0
    %1042 = vdwg.mxu0
    %v1043 = vld [vmem:[%s15] sm:$0xf]
    %v1044 = vld [vmem:[%s15 + $0x4] sm:$0xf]
    %v1045 = vld [vmem:[%s15 + $0x8] sm:$0xf]
    %v1046 = vld [vmem:[%s15 + $0xc] sm:$0xf]
    %v1047 = vld [vmem:[%s15 + $0x10] sm:$0xf]
    %v1048 = vld [vmem:[%s15 + $0x14] sm:$0xf]
    %v1049 = vld [vmem:[%s17] sm:$0x1]
    %v1051 = vperm.slane %v1049, 0
    %v1059 = vunpack.c.l.b16 %v1043
    %v1060 = vunpack.c.l.b16 %v1044
    %v1061 = vunpack.c.l.b16 %v1045
    %v1062 = vunpack.c.l.b16 %v1046
    %v1063 = vunpack.c.l.b16 %v1047
    %v1064 = vunpack.c.l.b16 %v1048
    %v1065 = vpack.c.b16 %v1060, %v1059
    %v1066 = vpack.c.b16 %v1062, %v1061
    %v1067 = vpack.c.b16 %v1064, %v1063
    %1071 = vmatpush.bf16.msra.mxu0 0
    %1072 = vmatpush.bf16.msra.mxu0 0
    %1073 = vmatpush.bf16.msra.mxu0 0
    %1074 = vmatpush.bf16.msra.mxu0 0
    %1075 = vmatpush.bf16.msra.mxu0 0
    %1076 = vmatpush.bf16.msra.mxu0 %v1067
    %1077 = vmatpush.bf16.msra.mxu0 %v1066
    %1078 = vmatpush.bf16.msra.mxu0 %v1065
    %1079 = vmatmul.bf16.gmra.mxu0 %v1028
    %v1080 = vpop.f32.mrf.mxu0
    %v1081 = vadd.f32 %v1051, %v1080
    %v1082 = vpop.f32.mrf.mxu0
    %1083 = vdwg.mxu0
    %v1084 = vld [vmem:[%s3] sm:$0xff]
    %v1085 = vld [vmem:[%s19] sm:$0x1]
    %v1086 = vld [vmem:[#allocation5] sm:$0x1]
    %vm1087 = vcmask 261120
    %v1088 = vsel %vm1087, %v1084, 0.0
    %1089 = vadd.xlane.f32.xlu0 %v1088
    %v1090 = vpop.xlane.xlu0 %1089
    %v1091 = vrcp.pop 32.0
    %v1092 = vmul.f32 32.0, %v1091
    %v1093 = vsub.f32 1.0, %v1092
    %v1094 = vmul.f32 %v1091, %v1093
    %v1095 = vadd.f32 %v1091, %v1094
    %vm1096 = vweird.f32 %v1091
    %v1097 = vsel %vm1096, %v1091, %v1095
    %v1098 = vmul.f32 %v1090, %v1097
    %v1099 = vsub.f32 %v1084, %v1098
    %v1100 = vmul.f32 %v1099, %v1099
    %v1101 = vsel %vm1087, %v1100, 0.0
    %1102 = vadd.xlane.f32.xlu0 %v1101
    %v1103 = vpop.xlane.xlu0 %1102
    %v1104 = vmul.f32 %v1103, %v1097
    %v1105 = vadd.f32 %v1104, 1e-05
    %v1106 = vrsqrt.pop %v1105
    %v1107 = vmul.f32 %v1106, %v1105
    %v1108 = vmul.f32 %v1107, %v1106
    %v1109 = vmul.f32 0.5, %v1108
    %v1110 = vsub.f32 1.5, %v1109
    %v1111 = vmul.f32 %v1106, %v1110
    %vm1112 = vweird.f32 %v1105
    %vm1113 = vweird.f32 %v1106
    %vm1114 = vmor %vm1112, %vm1113
    %v1115 = vsel %vm1114, %v1106, %v1111
    %v1116 = vmul.f32 %v1099, %v1115
    %v1118 = vperm.slane %v1085, 0
    %v1120 = vmul.f32 %v1116, %v1118
    %v1122 = vperm.slane %v1086, 0
    %v1124 = vadd.f32 %v1120, %v1122
    %v1125 = vmul.u32 %v966, 4
    %vm1126 = vcmp.ge.s32.totalorder %v964, %v1125
    %v1127 = vmul.u32 %v969, 4
    %vm1128 = vcmp.lt.s32.totalorder %v964, %v1127
    %vm1129 = vmand %vm1126, %vm1128
    %v1130 = vsel %vm1129, 0.25, 0.0
    %vm1131 = vcmask 64512
    %v1133 = vsel %vm1131, %v1130, 0
    %1135 = vmatpush.msra.mxu0 0.0
    %1136 = vmatpush.msra.mxu0 0.0
    %1137 = vmatpush.msra.mxu0 0.0
    %1138 = vmatpush.msra.mxu0 0.0
    %1139 = vmatpush.msra.mxu0 0.0
    %1140 = vmatpush.msra.mxu0 0.0
    %1141 = vmatpush.msra.mxu0 0.0
    %1142 = vmatpush.msra.mxu0 0.0
    %1143 = vmatpush.msra.mxu0 0.0
    %1144 = vmatpush.msra.mxu0 0.0
    %1145 = vmatpush.msra.mxu0 0.0
    %1146 = vmatpush.msra.mxu0 0.0
    %1147 = vmatpush.msra.mxu0 0.0
    %1148 = vmatpush.msra.mxu0 0.0
    %1149 = vmatpush.msra.mxu0 0.0
    %1150 = vmatpush.msra.mxu0 %v1124
    %1151 = vmatmul.f32.gmra.mxu0 %v1133
    %v1152 = vpop.f32.mrf.mxu0
    %v1153 = vadd.f32 0.0, %v1152
    %1154 = vdwg.mxu0
    %v1155 = vpack.c.bf16 %v1153, %v1153
    %v1156 = vld [vmem:[%s23] sm:$0xf]
    %v1157 = vld [vmem:[%s23 + $0x4] sm:$0xf]
    %v1158 = vld [vmem:[%s23 + $0x8] sm:$0xf]
    %v1159 = vld [vmem:[%s23 + $0xc] sm:$0xf]
    %v1160 = vld [vmem:[#allocation7] sm:$0x1]
    %v1162 = vperm.slane %v1160, 0
    %v1168 = vunpack.c.l.b16 %v1156
    %v1169 = vunpack.c.l.b16 %v1157
    %v1170 = vunpack.c.l.b16 %v1158
    %v1171 = vunpack.c.l.b16 %v1159
    %v1172 = vpack.c.b16 %v1169, %v1168
    %v1173 = vpack.c.b16 %v1171, %v1170
    %v1177 = vsel %vm1087, %v1155, 0
    %1179 = vmatpush.bf16.msra.mxu0 0
    %1180 = vmatpush.bf16.msra.mxu0 0
    %1181 = vmatpush.bf16.msra.mxu0 0
    %1182 = vmatpush.bf16.msra.mxu0 0
    %1183 = vmatpush.bf16.msra.mxu0 0
    %1184 = vmatpush.bf16.msra.mxu0 0
    %1185 = vmatpush.bf16.msra.mxu0 %v1173
    %1186 = vmatpush.bf16.msra.mxu0 %v1172
    %1187 = vmatmul.bf16.gmra.mxu0 %v1177
    %v1188 = vpop.f32.mrf.mxu0
    %v1189 = vadd.f32 %v1162, %v1188
    %v1190 = vpop.f32.mrf.mxu0
    %1191 = vdwg.mxu0
    %v1192 = vld [vmem:[%s27] sm:$0xf]
    %v1193 = vld [vmem:[%s27 + $0x4] sm:$0xf]
    %v1194 = vld [vmem:[%s27 + $0x8] sm:$0xf]
    %v1195 = vld [vmem:[%s27 + $0xc] sm:$0xf]
    %v1196 = vld [vmem:[%s29] sm:$0x1]
    %v1198 = vperm.slane %v1196, 0
    %v1204 = vunpack.c.l.b16 %v1192
    %v1205 = vunpack.c.l.b16 %v1193
    %v1206 = vunpack.c.l.b16 %v1194
    %v1207 = vunpack.c.l.b16 %v1195
    %v1208 = vpack.c.b16 %v1205, %v1204
    %v1209 = vpack.c.b16 %v1207, %v1206
    %1212 = vmatpush.bf16.msra.mxu0 0
    %1213 = vmatpush.bf16.msra.mxu0 0
    %1214 = vmatpush.bf16.msra.mxu0 0
    %1215 = vmatpush.bf16.msra.mxu0 0
    %1216 = vmatpush.bf16.msra.mxu0 0
    %1217 = vmatpush.bf16.msra.mxu0 0
    %1218 = vmatpush.bf16.msra.mxu0 %v1209
    %1219 = vmatpush.bf16.msra.mxu0 %v1208
    %1220 = vmatmul.bf16.gmra.mxu0 %v1177
    %v1221 = vpop.f32.mrf.mxu0
    %v1222 = vadd.f32 %v1198, %v1221
    %v1223 = vpop.f32.mrf.mxu0
    %1224 = vdwg.mxu0
    %v1225 = vld [vmem:[%s5] sm:$0xff]
    %v1226 = vld [vmem:[%s5 + $0x8] sm:$0xff]
    %v1227 = vld [vmem:[#allocation9] sm:$0x1]
    %v1228 = vld [vmem:[#allocation10] sm:$0x1]
    %v1229 = vsel %vm901, %v1225, 0.0
    %1230 = vadd.xlane.f32.xlu0 %v1229
    %v1231 = vpop.xlane.xlu0 %1230
    %v1232 = vsel %vm901, %v1226, 0.0
    %1233 = vadd.xlane.f32.xlu0 %v1232
    %v1234 = vpop.xlane.xlu0 %1233
    %v1235 = vmul.f32 %v1231, %v914
    %v1236 = vmul.f32 %v1234, %v914
    %v1237 = vsub.f32 %v1225, %v1235
    %v1238 = vsub.f32 %v1226, %v1236
    %v1239 = vmul.f32 %v1237, %v1237
    %v1240 = vmul.f32 %v1238, %v1238
    %v1241 = vsel %vm901, %v1239, 0.0
    %1242 = vadd.xlane.f32.xlu0 %v1241
    %v1243 = vpop.xlane.xlu0 %1242
    %v1244 = vsel %vm901, %v1240, 0.0
    %1245 = vadd.xlane.f32.xlu0 %v1244
    %v1246 = vpop.xlane.xlu0 %1245
    %v1247 = vmul.f32 %v1243, %v914
    %v1248 = vmul.f32 %v1246, %v914
    %v1249 = vadd.f32 %v1247, 1e-05
    %v1250 = vadd.f32 %v1248, 1e-05
    %v1251 = vrsqrt.pop %v1249
    %v1252 = vmul.f32 %v1251, %v1249
    %v1253 = vmul.f32 %v1252, %v1251
    %v1254 = vmul.f32 0.5, %v1253
    %v1255 = vsub.f32 1.5, %v1254
    %v1256 = vmul.f32 %v1251, %v1255
    %vm1257 = vweird.f32 %v1249
    %vm1258 = vweird.f32 %v1251
    %vm1259 = vmor %vm1257, %vm1258
    %v1260 = vsel %vm1259, %v1251, %v1256
    %v1261 = vrsqrt.pop %v1250
    %v1262 = vmul.f32 %v1261, %v1250
    %v1263 = vmul.f32 %v1262, %v1261
    %v1264 = vmul.f32 0.5, %v1263
    %v1265 = vsub.f32 1.5, %v1264
    %v1266 = vmul.f32 %v1261, %v1265
    %vm1267 = vweird.f32 %v1250
    %vm1268 = vweird.f32 %v1261
    %vm1269 = vmor %vm1267, %vm1268
    %v1270 = vsel %vm1269, %v1261, %v1266
    %v1271 = vmul.f32 %v1237, %v1260
    %v1272 = vmul.f32 %v1238, %v1270
    %v1274 = vperm.slane %v1227, 0
    %v1276 = vmul.f32 %v1271, %v1274
    %v1277 = vmul.f32 %v1272, %v1274
    %v1279 = vperm.slane %v1228, 0
    %v1281 = vadd.f32 %v1276, %v1279
    %v1282 = vadd.f32 %v1277, %v1279
    %1283 = vmatpush.msra.mxu0 0.0
    %1284 = vmatpush.msra.mxu0 0.0
    %1285 = vmatpush.msra.mxu0 0.0
    %1286 = vmatpush.msra.mxu0 0.0
    %1287 = vmatpush.msra.mxu0 0.0
    %1288 = vmatpush.msra.mxu0 0.0
    %1289 = vmatpush.msra.mxu0 0.0
    %1290 = vmatpush.msra.mxu0 0.0
    %1291 = vmatpush.msra.mxu0 0.0
    %1292 = vmatpush.msra.mxu0 0.0
    %1293 = vmatpush.msra.mxu0 0.0
    %1294 = vmatpush.msra.mxu0 0.0
    %1295 = vmatpush.msra.mxu0 0.0
    %1296 = vmatpush.msra.mxu0 0.0
    %1297 = vmatpush.msra.mxu0 %v1282
    %1298 = vmatpush.msra.mxu0 %v1281
    %1299 = vmatmul.f32.gmra.mxu0 %v976
    %v1300 = vpop.f32.mrf.mxu0
    %v1301 = vadd.f32 0.0, %v1300
    %1302 = vdwg.mxu0
    %v1303 = vpack.c.bf16 %v1301, %v1301
    %v1304 = vld [vmem:[%s35] sm:$0xf]
    %v1305 = vld [vmem:[%s35 + $0x4] sm:$0xf]
    %v1306 = vld [vmem:[%s35 + $0x8] sm:$0xf]
    %v1307 = vld [vmem:[%s35 + $0xc] sm:$0xf]
    %v1308 = vld [vmem:[%s35 + $0x10] sm:$0xf]
    %v1309 = vld [vmem:[%s35 + $0x14] sm:$0xf]
    %v1310 = vld [vmem:[#allocation12] sm:$0x1]
    %v1312 = vperm.slane %v1310, 0
    %v1320 = vunpack.c.l.b16 %v1304
    %v1321 = vunpack.c.l.b16 %v1305
    %v1322 = vunpack.c.l.b16 %v1306
    %v1323 = vunpack.c.l.b16 %v1307
    %v1324 = vunpack.c.l.b16 %v1308
    %v1325 = vunpack.c.l.b16 %v1309
    %v1326 = vpack.c.b16 %v1321, %v1320
    %v1327 = vpack.c.b16 %v1323, %v1322
    %v1328 = vpack.c.b16 %v1325, %v1324
    %v1333 = vsel %vm901, %v1303, 0
    %1335 = vmatpush.bf16.msra.mxu0 0
    %1336 = vmatpush.bf16.msra.mxu0 0
    %1337 = vmatpush.bf16.msra.mxu0 0
    %1338 = vmatpush.bf16.msra.mxu0 0
    %1339 = vmatpush.bf16.msra.mxu0 0
    %1340 = vmatpush.bf16.msra.mxu0 %v1328
    %1341 = vmatpush.bf16.msra.mxu0 %v1327
    %1342 = vmatpush.bf16.msra.mxu0 %v1326
    %1343 = vmatmul.bf16.gmra.mxu0 %v1333
    %v1344 = vpop.f32.mrf.mxu0
    %v1345 = vadd.f32 %v1312, %v1344
    %v1346 = vpop.f32.mrf.mxu0
    %1347 = vdwg.mxu0
    %v1348 = vld [vmem:[%s39] sm:$0xf]
    %v1349 = vld [vmem:[%s39 + $0x4] sm:$0xf]
    %v1350 = vld [vmem:[%s39 + $0x8] sm:$0xf]
    %v1351 = vld [vmem:[%s39 + $0xc] sm:$0xf]
    %v1352 = vld [vmem:[%s39 + $0x10] sm:$0xf]
    %v1353 = vld [vmem:[%s39 + $0x14] sm:$0xf]
    %v1354 = vld [vmem:[%s41] sm:$0x1]
    %v1356 = vperm.slane %v1354, 0
    %v1364 = vunpack.c.l.b16 %v1348
    %v1365 = vunpack.c.l.b16 %v1349
    %v1366 = vunpack.c.l.b16 %v1350
    %v1367 = vunpack.c.l.b16 %v1351
    %v1368 = vunpack.c.l.b16 %v1352
    %v1369 = vunpack.c.l.b16 %v1353
    %v1370 = vpack.c.b16 %v1365, %v1364
    %v1371 = vpack.c.b16 %v1367, %v1366
    %v1372 = vpack.c.b16 %v1369, %v1368
    %1376 = vmatpush.bf16.msra.mxu0 0
    %1377 = vmatpush.bf16.msra.mxu0 0
    %1378 = vmatpush.bf16.msra.mxu0 0
    %1379 = vmatpush.bf16.msra.mxu0 0
    %1380 = vmatpush.bf16.msra.mxu0 0
    %1381 = vmatpush.bf16.msra.mxu0 %v1372
    %1382 = vmatpush.bf16.msra.mxu0 %v1371
    %1383 = vmatpush.bf16.msra.mxu0 %v1370
    %1384 = vmatmul.bf16.gmra.mxu0 %v1333
    %v1385 = vpop.f32.mrf.mxu0
    %v1386 = vadd.f32 %v1356, %v1385
    %v1387 = vpop.f32.mrf.mxu0
    %1388 = vdwg.mxu0
    %v1389 = vadd.f32 %v1081, %v1222
    %v1390 = vadd.f32 %v1389, %v1386
    %v1391 = vrcp.pop 3.0
    %v1392 = vmul.f32 3.0, %v1391
    %v1393 = vsub.f32 1.0, %v1392
    %v1394 = vmul.f32 %v1391, %v1393
    %v1395 = vadd.f32 %v1391, %v1394
    %vm1396 = vweird.f32 %v1391
    %v1397 = vsel %vm1396, %v1391, %v1395
    %v1398 = vmul.f32 %v1390, %v1397
    %v1400 = vrot.slane %v1189, 6
    %v1403 = vrot.slane %v1345, 4
    %v1406 = vrot.slane %v1398, 2
    %vm1408 = vcmask 1041408
    %v1409 = vsel %vm1408, %v1040, %v1400
    %vm1410 = vcmask 1043456
    %v1411 = vsel %vm1410, %v1409, %v1403
    %vm1412 = vcmask 1045504
    %v1413 = vsel %vm1412, %v1411, %v1406
    %v1414 = vpack.c.bf16 %v1413, %v1413
    %v1415 = vld [vmem:[%s43] sm:$0xf]
    %v1416 = vld [vmem:[%s43 + $0x4] sm:$0xf]
    %v1417 = vld [vmem:[%s43 + $0x8] sm:$0xf]
    %v1418 = vld [vmem:[%s43 + $0xc] sm:$0xf]
    %v1419 = vld [vmem:[%s43 + $0x10] sm:$0xf]
    %v1420 = vld [vmem:[%s43 + $0x14] sm:$0xf]
    %v1421 = vld [vmem:[%s43 + $0x18] sm:$0xf]
    %v1422 = vld [vmem:[%s43 + $0x1c] sm:$0xf]
    %v1423 = vld [vmem:[%s45] sm:$0x1]
    %v1425 = vperm.slane %v1423, 0
    %v1435 = vunpack.c.l.b16 %v1415
    %v1436 = vunpack.c.l.b16 %v1416
    %v1437 = vunpack.c.l.b16 %v1417
    %v1438 = vunpack.c.l.b16 %v1418
    %v1439 = vunpack.c.l.b16 %v1419
    %v1440 = vunpack.c.l.b16 %v1420
    %v1441 = vunpack.c.l.b16 %v1421
    %v1442 = vunpack.c.l.b16 %v1422
    %v1443 = vpack.c.b16 %v1436, %v1435
    %v1444 = vpack.c.b16 %v1438, %v1437
    %v1445 = vpack.c.b16 %v1440, %v1439
    %v1446 = vpack.c.b16 %v1442, %v1441
    %vm1451 = vcmask 523264
    %v1453 = vsel %vm1451, %v1414, 0
    %1455 = vmatpush.bf16.msra.mxu0 0
    %1456 = vmatpush.bf16.msra.mxu0 0
    %1457 = vmatpush.bf16.msra.mxu0 0
    %1458 = vmatpush.bf16.msra.mxu0 0
    %1459 = vmatpush.bf16.msra.mxu0 %v1446
    %1460 = vmatpush.bf16.msra.mxu0 %v1445
    %1461 = vmatpush.bf16.msra.mxu0 %v1444
    %1462 = vmatpush.bf16.msra.mxu0 %v1443
    %1463 = vmatmul.bf16.gmra.mxu0 %v1453
    %v1464 = vpop.f32.mrf.mxu0
    %v1465 = vadd.f32 %v1425, %v1464
    %v1466 = vpop.f32.mrf.mxu0
    %1467 = vdwg.mxu0
    %v1468 = vadd.f32 %v1040, %v1081
    %v1469 = vadd.f32 %v1189, %v1222
    %v1470 = vadd.f32 %v1345, %v1386
    %v1471 = vpack.c.bf16 %v1468, %v1468
    %v1472 = vld [vmem:[%s47] sm:$0xf]
    %v1473 = vld [vmem:[%s47 + $0x4] sm:$0xf]
    %v1474 = vld [vmem:[%s47 + $0x8] sm:$0xf]
    %v1475 = vld [vmem:[%s47 + $0xc] sm:$0xf]
    %v1476 = vld [vmem:[%s47 + $0x10] sm:$0xf]
    %v1477 = vld [vmem:[%s47 + $0x14] sm:$0xf]
    %v1478 = vld [vmem:[%s47 + $0x18] sm:$0xf]
    %v1479 = vld [vmem:[%s47 + $0x1c] sm:$0xf]
    %v1480 = vld [vmem:[%s49] sm:$0x1]
    %v1482 = vperm.slane %v1480, 0
    %v1492 = vunpack.c.l.b16 %v1472
    %v1493 = vunpack.c.l.b16 %v1473
    %v1494 = vunpack.c.l.b16 %v1474
    %v1495 = vunpack.c.l.b16 %v1475
    %v1496 = vunpack.c.l.b16 %v1476
    %v1497 = vunpack.c.l.b16 %v1477
    %v1498 = vunpack.c.l.b16 %v1478
    %v1499 = vunpack.c.l.b16 %v1479
    %v1500 = vpack.c.b16 %v1493, %v1492
    %v1501 = vpack.c.b16 %v1495, %v1494
    %v1502 = vpack.c.b16 %v1497, %v1496
    %v1503 = vpack.c.b16 %v1499, %v1498
    %v1509 = vsel %vm1451, %v1471, 0
    %1511 = vmatpush.bf16.msra.mxu0 0
    %1512 = vmatpush.bf16.msra.mxu0 0
    %1513 = vmatpush.bf16.msra.mxu0 0
    %1514 = vmatpush.bf16.msra.mxu0 0
    %1515 = vmatpush.bf16.msra.mxu0 %v1503
    %1516 = vmatpush.bf16.msra.mxu0 %v1502
    %1517 = vmatpush.bf16.msra.mxu0 %v1501
    %1518 = vmatpush.bf16.msra.mxu0 %v1500
    %1519 = vmatmul.bf16.gmra.mxu0 %v1509
    %v1520 = vpop.f32.mrf.mxu0
    %v1521 = vadd.f32 %v1482, %v1520
    %v1522 = vpop.f32.mrf.mxu0
    %1523 = vdwg.mxu0
    %v1524 = vpack.c.bf16 %v1469, %v1469
    %s1525 = scalar_lea.vmem %s47, 32
    %v1526 = vld [vmem:[%s1525] sm:$0xf]
    %v1527 = vld [vmem:[%s1525 + $0x4] sm:$0xf]
    %v1528 = vld [vmem:[%s1525 + $0x8] sm:$0xf]
    %v1529 = vld [vmem:[%s1525 + $0xc] sm:$0xf]
    %v1530 = vld [vmem:[%s1525 + $0x10] sm:$0xf]
    %v1531 = vld [vmem:[%s1525 + $0x14] sm:$0xf]
    %v1532 = vld [vmem:[%s1525 + $0x18] sm:$0xf]
    %v1533 = vld [vmem:[%s1525 + $0x1c] sm:$0xf]
    %s1534 = scalar_lea.vmem %s49, 1
    %v1535 = vld [vmem:[%s1534] sm:$0x1]
    %v1537 = vperm.slane %v1535, 0
    %v1547 = vunpack.c.l.b16 %v1526
    %v1548 = vunpack.c.l.b16 %v1527
    %v1549 = vunpack.c.l.b16 %v1528
    %v1550 = vunpack.c.l.b16 %v1529
    %v1551 = vunpack.c.l.b16 %v1530
    %v1552 = vunpack.c.l.b16 %v1531
    %v1553 = vunpack.c.l.b16 %v1532
    %v1554 = vunpack.c.l.b16 %v1533
    %v1555 = vpack.c.b16 %v1548, %v1547
    %v1556 = vpack.c.b16 %v1550, %v1549
    %v1557 = vpack.c.b16 %v1552, %v1551
    %v1558 = vpack.c.b16 %v1554, %v1553
    %v1564 = vsel %vm1451, %v1524, 0
    %1566 = vmatpush.bf16.msra.mxu0 0
    %1567 = vmatpush.bf16.msra.mxu0 0
    %1568 = vmatpush.bf16.msra.mxu0 0
    %1569 = vmatpush.bf16.msra.mxu0 0
    %1570 = vmatpush.bf16.msra.mxu0 %v1558
    %1571 = vmatpush.bf16.msra.mxu0 %v1557
    %1572 = vmatpush.bf16.msra.mxu0 %v1556
    %1573 = vmatpush.bf16.msra.mxu0 %v1555
    %1574 = vmatmul.bf16.gmra.mxu0 %v1564
    %v1575 = vpop.f32.mrf.mxu0
    %v1576 = vadd.f32 %v1537, %v1575
    %v1577 = vpop.f32.mrf.mxu0
    %1578 = vdwg.mxu0
    %v1579 = vpack.c.bf16 %v1470, %v1470
    %s1580 = scalar_lea.vmem %s47, 64
    %v1581 = vld [vmem:[%s1580] sm:$0xf]
    %v1582 = vld [vmem:[%s1580 + $0x4] sm:$0xf]
    %v1583 = vld [vmem:[%s1580 + $0x8] sm:$0xf]
    %v1584 = vld [vmem:[%s1580 + $0xc] sm:$0xf]
    %v1585 = vld [vmem:[%s1580 + $0x10] sm:$0xf]
    %v1586 = vld [vmem:[%s1580 + $0x14] sm:$0xf]
    %v1587 = vld [vmem:[%s1580 + $0x18] sm:$0xf]
    %v1588 = vld [vmem:[%s1580 + $0x1c] sm:$0xf]
    %s1589 = scalar_lea.vmem %s49, 2
    %v1590 = vld [vmem:[%s1589] sm:$0x1]
    %v1592 = vperm.slane %v1590, 0
    %v1602 = vunpack.c.l.b16 %v1581
    %v1603 = vunpack.c.l.b16 %v1582
    %v1604 = vunpack.c.l.b16 %v1583
    %v1605 = vunpack.c.l.b16 %v1584
    %v1606 = vunpack.c.l.b16 %v1585
    %v1607 = vunpack.c.l.b16 %v1586
    %v1608 = vunpack.c.l.b16 %v1587
    %v1609 = vunpack.c.l.b16 %v1588
    %v1610 = vpack.c.b16 %v1603, %v1602
    %v1611 = vpack.c.b16 %v1605, %v1604
    %v1612 = vpack.c.b16 %v1607, %v1606
    %v1613 = vpack.c.b16 %v1609, %v1608
    %v1619 = vsel %vm1451, %v1579, 0
    %1621 = vmatpush.bf16.msra.mxu0 0
    %1622 = vmatpush.bf16.msra.mxu0 0
    %1623 = vmatpush.bf16.msra.mxu0 0
    %1624 = vmatpush.bf16.msra.mxu0 0
    %1625 = vmatpush.bf16.msra.mxu0 %v1613
    %1626 = vmatpush.bf16.msra.mxu0 %v1612
    %1627 = vmatpush.bf16.msra.mxu0 %v1611
    %1628 = vmatpush.bf16.msra.mxu0 %v1610
    %1629 = vmatmul.bf16.gmra.mxu0 %v1619
    %v1630 = vpop.f32.mrf.mxu0
    %v1631 = vadd.f32 %v1592, %v1630
    %v1632 = vpop.f32.mrf.mxu0
    %1633 = vdwg.mxu0
    %v1635 = vrot.slane %v1576, 6
    %v1638 = vrot.slane %v1631, 4
    %v1640 = vsel %vm1408, %v1521, %v1635
    %v1641 = vsel %vm1410, %v1640, %v1638
    %v1643 = vrot.slane %v1081, 2
    %v1646 = vrot.slane %v1386, 6
    %v1648 = vsel %vm1412, %v1411, %v1643
    %v1649 = vsel %vm1408, %v1222, %v1646
    %v1650 = vadd.s32 %v966, 8
    %v1651 = vsub.s32 %v966, %v964
    %v1652 = vsub.s32 %v1650, %v964
    %vm1653 = vcmp.eq.s32.totalorder %v1651, 0
    %vm1654 = vcmp.eq.s32.totalorder %v1652, 0
    %vm1655 = vcmp.eq.s32.totalorder %v1651, 2
    %vm1656 = vcmp.eq.s32.totalorder %v1652, 2
    %vm1657 = vcmp.eq.s32.totalorder %v1651, 4294967294
    %vm1658 = vcmp.eq.s32.totalorder %v1652, 4294967294
    %vm1659 = vmor %vm1655, %vm1657
    %vm1660 = vmor %vm1656, %vm1658
    %vm1661 = vmor %vm1653, %vm1659
    %vm1662 = vmor %vm1654, %vm1660
    %vm1663 = vcmp.eq.s32.totalorder %v1651, 4
    %vm1664 = vcmp.eq.s32.totalorder %v1652, 4
    %vm1665 = vcmp.eq.s32.totalorder %v1651, 4294967292
    %vm1666 = vcmp.eq.s32.totalorder %v1652, 4294967292
    %vm1667 = vmor %vm1663, %vm1665
    %vm1668 = vmor %vm1664, %vm1666
    %vm1669 = vmor %vm1661, %vm1667
    %vm1670 = vmor %vm1662, %vm1668
    %vm1671 = vcmp.eq.s32.totalorder %v1651, 6
    %vm1672 = vcmp.eq.s32.totalorder %v1652, 6
    %vm1673 = vcmp.eq.s32.totalorder %v1651, 4294967290
    %vm1674 = vcmp.eq.s32.totalorder %v1652, 4294967290
    %vm1675 = vmor %vm1671, %vm1673
    %vm1676 = vmor %vm1672, %vm1674
    %vm1677 = vmor %vm1669, %vm1675
    %vm1678 = vmor %vm1670, %vm1676
    %vm1679 = vcmp.eq.s32.totalorder %v1651, 8
    %vm1680 = vcmp.eq.s32.totalorder %v1652, 8
    %vm1681 = vcmp.eq.s32.totalorder %v1651, 4294967288
    %vm1682 = vcmp.eq.s32.totalorder %v1652, 4294967288
    %vm1683 = vmor %vm1679, %vm1681
    %vm1684 = vmor %vm1680, %vm1682
    %vm1685 = vmor %vm1677, %vm1683
    %vm1686 = vmor %vm1678, %vm1684
    %vm1687 = vcmp.eq.s32.totalorder %v1651, 10
    %vm1688 = vcmp.eq.s32.totalorder %v1652, 10
    %vm1689 = vcmp.eq.s32.totalorder %v1651, 4294967286
    %vm1690 = vcmp.eq.s32.totalorder %v1652, 4294967286
    %vm1691 = vmor %vm1687, %vm1689
    %vm1692 = vmor %vm1688, %vm1690
    %vm1693 = vmor %vm1685, %vm1691
    %vm1694 = vmor %vm1686, %vm1692
    %v1695 = vsel %vm1693, 0.0, -1e+30
    %v1696 = vsel %vm1694, 0.0, -1e+30
    %v1697 = vpack.c.bf16 %v1649, %v1648
    %v1698 = vld [vmem:[%s51] sm:$0xf]
    %v1699 = vld [vmem:[%s51 + $0x4] sm:$0xf]
    %v1700 = vld [vmem:[%s51 + $0x8] sm:$0xf]
    %v1701 = vld [vmem:[%s51 + $0xc] sm:$0xf]
    %v1702 = vld [vmem:[%s51 + $0x10] sm:$0xf]
    %v1703 = vld [vmem:[%s51 + $0x14] sm:$0xf]
    %v1704 = vld [vmem:[%s51 + $0x18] sm:$0xf]
    %v1705 = vld [vmem:[%s51 + $0x1c] sm:$0xf]
    %v1706 = vld [vmem:[%s53] sm:$0x1]
    %v1708 = vperm.slane %v1706, 0
    %v1718 = vunpack.c.l.b16 %v1698
    %v1719 = vunpack.c.l.b16 %v1699
    %v1720 = vunpack.c.l.b16 %v1700
    %v1721 = vunpack.c.l.b16 %v1701
    %v1722 = vunpack.c.l.b16 %v1702
    %v1723 = vunpack.c.l.b16 %v1703
    %v1724 = vunpack.c.l.b16 %v1704
    %v1725 = vunpack.c.l.b16 %v1705
    %v1726 = vpack.c.b16 %v1719, %v1718
    %v1727 = vpack.c.b16 %v1721, %v1720
    %v1728 = vpack.c.b16 %v1723, %v1722
    %v1729 = vpack.c.b16 %v1725, %v1724
    %v1735 = vsel %vm1451, %v1697, 0
    %1737 = vmatpush.bf16.msra.mxu0 0
    %1738 = vmatpush.bf16.msra.mxu0 0
    %1739 = vmatpush.bf16.msra.mxu0 0
    %1740 = vmatpush.bf16.msra.mxu0 0
    %1741 = vmatpush.bf16.msra.mxu0 %v1729
    %1742 = vmatpush.bf16.msra.mxu0 %v1728
    %1743 = vmatpush.bf16.msra.mxu0 %v1727
    %1744 = vmatpush.bf16.msra.mxu0 %v1726
    %1745 = vmatmul.bf16.gmra.mxu0 %v1735
    %v1746 = vpop.f32.mrf.mxu0
    %v1747 = vadd.f32 %v1708, %v1746
    %v1748 = vpop.f32.mrf.mxu0
    %v1749 = vadd.f32 %v1708, %v1748
    %1750 = vdwg.mxu0
    %v1751 = vld [vmem:[%s55] sm:$0xf]
    %v1752 = vld [vmem:[%s55 + $0x4] sm:$0xf]
    %v1753 = vld [vmem:[%s55 + $0x8] sm:$0xf]
    %v1754 = vld [vmem:[%s55 + $0xc] sm:$0xf]
    %v1755 = vld [vmem:[%s55 + $0x10] sm:$0xf]
    %v1756 = vld [vmem:[%s55 + $0x14] sm:$0xf]
    %v1757 = vld [vmem:[%s55 + $0x18] sm:$0xf]
    %v1758 = vld [vmem:[%s55 + $0x1c] sm:$0xf]
    %v1759 = vld [vmem:[%s57] sm:$0x1]
    %v1761 = vperm.slane %v1759, 0
    %v1771 = vunpack.c.l.b16 %v1751
    %v1772 = vunpack.c.l.b16 %v1752
    %v1773 = vunpack.c.l.b16 %v1753
    %v1774 = vunpack.c.l.b16 %v1754
    %v1775 = vunpack.c.l.b16 %v1755
    %v1776 = vunpack.c.l.b16 %v1756
    %v1777 = vunpack.c.l.b16 %v1757
    %v1778 = vunpack.c.l.b16 %v1758
    %v1779 = vpack.c.b16 %v1772, %v1771
    %v1780 = vpack.c.b16 %v1774, %v1773
    %v1781 = vpack.c.b16 %v1776, %v1775
    %v1782 = vpack.c.b16 %v1778, %v1777
    %1787 = vmatpush.bf16.msra.mxu0 0
    %1788 = vmatpush.bf16.msra.mxu0 0
    %1789 = vmatpush.bf16.msra.mxu0 0
    %1790 = vmatpush.bf16.msra.mxu0 0
    %1791 = vmatpush.bf16.msra.mxu0 %v1782
    %1792 = vmatpush.bf16.msra.mxu0 %v1781
    %1793 = vmatpush.bf16.msra.mxu0 %v1780
    %1794 = vmatpush.bf16.msra.mxu0 %v1779
    %1795 = vmatmul.bf16.gmra.mxu0 %v1735
    %v1796 = vpop.f32.mrf.mxu0
    %v1797 = vadd.f32 %v1761, %v1796
    %v1798 = vpop.f32.mrf.mxu0
    %v1799 = vadd.f32 %v1761, %v1798
    %1800 = vdwg.mxu0
    %v1801 = vld [vmem:[%s59] sm:$0xf]
    %v1802 = vld [vmem:[%s59 + $0x4] sm:$0xf]
    %v1803 = vld [vmem:[%s59 + $0x8] sm:$0xf]
    %v1804 = vld [vmem:[%s59 + $0xc] sm:$0xf]
    %v1805 = vld [vmem:[%s59 + $0x10] sm:$0xf]
    %v1806 = vld [vmem:[%s59 + $0x14] sm:$0xf]
    %v1807 = vld [vmem:[%s59 + $0x18] sm:$0xf]
    %v1808 = vld [vmem:[%s59 + $0x1c] sm:$0xf]
    %v1809 = vld [vmem:[%s61] sm:$0x1]
    %v1811 = vperm.slane %v1809, 0
    %v1821 = vunpack.c.l.b16 %v1801
    %v1822 = vunpack.c.l.b16 %v1802
    %v1823 = vunpack.c.l.b16 %v1803
    %v1824 = vunpack.c.l.b16 %v1804
    %v1825 = vunpack.c.l.b16 %v1805
    %v1826 = vunpack.c.l.b16 %v1806
    %v1827 = vunpack.c.l.b16 %v1807
    %v1828 = vunpack.c.l.b16 %v1808
    %v1829 = vpack.c.b16 %v1822, %v1821
    %v1830 = vpack.c.b16 %v1824, %v1823
    %v1831 = vpack.c.b16 %v1826, %v1825
    %v1832 = vpack.c.b16 %v1828, %v1827
    %1837 = vmatpush.bf16.msra.mxu0 0
    %1838 = vmatpush.bf16.msra.mxu0 0
    %1839 = vmatpush.bf16.msra.mxu0 0
    %1840 = vmatpush.bf16.msra.mxu0 0
    %1841 = vmatpush.bf16.msra.mxu0 %v1832
    %1842 = vmatpush.bf16.msra.mxu0 %v1831
    %1843 = vmatpush.bf16.msra.mxu0 %v1830
    %1844 = vmatpush.bf16.msra.mxu0 %v1829
    %1845 = vmatmul.bf16.gmra.mxu0 %v1735
    %v1846 = vpop.f32.mrf.mxu0
    %v1847 = vadd.f32 %v1811, %v1846
    %v1848 = vpop.f32.mrf.mxu0
    %v1849 = vadd.f32 %v1811, %v1848
    %1850 = vdwg.mxu0
    %v1851 = vld [vmem:[%s65] sm:$0x1]
    %v1853 = vsel %vm1087, %v1747, 0
    %v1856 = vsel %vm1087, %v1749, 0
    %v1859 = vsel %vm1087, %v1797, 0
    %v1862 = vsel %vm1087, %v1799, 0
    %1864 = vmatpush.xpose.msra.mxu0 0.0
    %1865 = vmatpush.xpose.msra.mxu0 0.0
    %1866 = vmatpush.xpose.msra.mxu0 0.0
    %1867 = vmatpush.xpose.msra.mxu0 0.0
    %1868 = vmatpush.xpose.msra.mxu0 0.0
    %1869 = vmatpush.xpose.msra.mxu0 0.0
    %1870 = vmatpush.xpose.msra.mxu0 0.0
    %1871 = vmatpush.xpose.msra.mxu0 0.0
    %1872 = vmatpush.xpose.msra.mxu0 0.0
    %1873 = vmatpush.xpose.msra.mxu0 0.0
    %1874 = vmatpush.xpose.msra.mxu0 0.0
    %1875 = vmatpush.xpose.msra.mxu0 0.0
    %1876 = vmatpush.xpose.msra.mxu0 0.0
    %1877 = vmatpush.xpose.msra.mxu0 0.0
    %1878 = vmatpush.xpose.msra.mxu0 %v1862
    %1879 = vmatpush.xpose.msra.mxu0 %v1859
    %1880 = vmatmul.f32.gmra.mxu0 %v1853
    %v1881 = vpop.f32.mrf.mxu0
    %v1882 = vadd.f32 %v1695, %v1881
    %1883 = vmatmul.f32.gmra.mxu0 %v1856
    %v1884 = vpop.f32.mrf.mxu0
    %v1885 = vadd.f32 %v1696, %v1884
    %1886 = vdwg.mxu0
    %vm1887 = vcmask 97280
    %v1888 = vsel %vm1887, %v1882, -inf
    %1889 = vmax.xlane.f32.xlu0 %v1888
    %v1890 = vpop.xlane.xlu0 %1889
    %vm1891 = vcmask 93184
    %v1892 = vsel %vm1891, %v1885, -inf
    %1893 = vmax.xlane.f32.xlu0 %v1892
    %v1894 = vpop.xlane.xlu0 %1893
    %v1895 = vsub.f32 %v1882, %v1890
    %v1896 = vsub.f32 %v1885, %v1894
    %v1897 = vmul.f32 %v1895, 1.442695
    %v1898 = vpow.pop %v1897
    %v1899 = vmul.f32 %v1896, 1.442695
    %v1900 = vpow.pop %v1899
    %v1901 = vsel %vm1887, %v1898, 0.0
    %1902 = vadd.xlane.f32.xlu0 %v1901
    %v1903 = vpop.xlane.xlu0 %1902
    %v1904 = vsel %vm1891, %v1900, 0.0
    %1905 = vadd.xlane.f32.xlu0 %v1904
    %v1906 = vpop.xlane.xlu0 %1905
    %v1907 = vrcp.pop %v1903
    %v1908 = vrcp.pop %v1906
    %v1909 = vmul.f32 %v1898, %v1907
    %v1910 = vmul.f32 %v1900, %v1908
    %v1912 = vsel %vm1887, %v1909, 0
    %v1915 = vsel %vm1887, %v1910, 0
    %v1918 = vsel %vm1410, %v1849, 0
    %1920 = vmatpush.msra.mxu0 0.0
    %1921 = vmatpush.msra.mxu0 0.0
    %1922 = vmatpush.msra.mxu0 0.0
    %1923 = vmatpush.msra.mxu0 0.0
    %1924 = vmatpush.msra.mxu0 0.0
    %1925 = vmatpush.msra.mxu0 0.0
    %1926 = vmatpush.msra.mxu0 0.0
    %1927 = vmatpush.msra.mxu0 0.0
    %1928 = vmatpush.msra.mxu0 0.0
    %1929 = vmatpush.msra.mxu0 0.0
    %1930 = vmatpush.msra.mxu0 0.0
    %1931 = vmatpush.msra.mxu0 0.0
    %1932 = vmatpush.msra.mxu0 0.0
    %1933 = vmatpush.msra.mxu0 0.0
    %1934 = vmatpush.msra.mxu0 %v1918
    %1935 = vmatpush.msra.mxu0 %v1847
    %1936 = vmatmul.f32.gmra.mxu0 %v1912
    %v1937 = vpop.f32.mrf.mxu0
    %v1938 = vadd.f32 0.0, %v1937
    %1939 = vmatmul.f32.gmra.mxu0 %v1915
    %v1940 = vpop.f32.mrf.mxu0
    %v1941 = vadd.f32 0.0, %v1940
    %1942 = vdwg.mxu0
    %v1943 = vpack.c.bf16 %v1941, %v1938
    %v1944 = vld [vmem:[%s63] sm:$0xf]
    %v1945 = vld [vmem:[%s63 + $0x4] sm:$0xf]
    %v1946 = vld [vmem:[%s63 + $0x8] sm:$0xf]
    %v1947 = vld [vmem:[%s63 + $0xc] sm:$0xf]
    %v1952 = vunpack.c.l.b16 %v1944
    %v1953 = vunpack.c.l.b16 %v1945
    %v1954 = vunpack.c.l.b16 %v1946
    %v1955 = vunpack.c.l.b16 %v1947
    %v1956 = vpack.c.b16 %v1953, %v1952
    %v1957 = vpack.c.b16 %v1955, %v1954
    %v1961 = vsel %vm1087, %v1943, 0
    %1963 = vmatpush.bf16.msra.mxu0 0
    %1964 = vmatpush.bf16.msra.mxu0 0
    %1965 = vmatpush.bf16.msra.mxu0 0
    %1966 = vmatpush.bf16.msra.mxu0 0
    %1967 = vmatpush.bf16.msra.mxu0 0
    %1968 = vmatpush.bf16.msra.mxu0 0
    %1969 = vmatpush.bf16.msra.mxu0 %v1957
    %1970 = vmatpush.bf16.msra.mxu0 %v1956
    %1971 = vmatmul.bf16.gmra.mxu0 %v1961
    %v1972 = vpop.f32.mrf.mxu0
    %v1973 = vadd.f32 0.0, %v1972
    %v1974 = vpop.f32.mrf.mxu0
    %v1975 = vadd.f32 0.0, %v1974
    %1976 = vdwg.mxu0
    %v1978 = vperm.slane %v1851, 0
    %v1980 = vadd.f32 %v1978, %v1973
    %v1981 = vadd.f32 %v1978, %v1975
    %1982 = vrot.lane.b32.xlu0 %v1747, 96
    %v1983 = vpop.permute.xlu0 %1982
    %1984 = vrot.lane.b32.xlu0 %v1749, 96
    %v1985 = vpop.permute.xlu0 %1984
    %1986 = vrot.lane.b32.xlu0 %v1797, 96
    %v1987 = vpop.permute.xlu0 %1986
    %1988 = vrot.lane.b32.xlu0 %v1799, 96
    %v1989 = vpop.permute.xlu0 %1988
    %v1990 = vsel %vm1087, %v1983, 0
    %v1992 = vsel %vm1087, %v1985, 0
    %v1994 = vsel %vm1087, %v1987, 0
    %v1996 = vsel %vm1087, %v1989, 0
    %1998 = vmatpush.xpose.msra.mxu0 0.0
    %1999 = vmatpush.xpose.msra.mxu0 0.0
    %2000 = vmatpush.xpose.msra.mxu0 0.0
    %2001 = vmatpush.xpose.msra.mxu0 0.0
    %2002 = vmatpush.xpose.msra.mxu0 0.0
    %2003 = vmatpush.xpose.msra.mxu0 0.0
    %2004 = vmatpush.xpose.msra.mxu0 0.0
    %2005 = vmatpush.xpose.msra.mxu0 0.0
    %2006 = vmatpush.xpose.msra.mxu0 0.0
    %2007 = vmatpush.xpose.msra.mxu0 0.0
    %2008 = vmatpush.xpose.msra.mxu0 0.0
    %2009 = vmatpush.xpose.msra.mxu0 0.0
    %2010 = vmatpush.xpose.msra.mxu0 0.0
    %2011 = vmatpush.xpose.msra.mxu0 0.0
    %2012 = vmatpush.xpose.msra.mxu0 %v1996
    %2013 = vmatpush.xpose.msra.mxu0 %v1994
    %2014 = vmatmul.f32.gmra.mxu0 %v1990
    %v2015 = vpop.f32.mrf.mxu0
    %v2016 = vadd.f32 %v1695, %v2015
    %2017 = vmatmul.f32.gmra.mxu0 %v1992
    %v2018 = vpop.f32.mrf.mxu0
    %v2019 = vadd.f32 %v1696, %v2018
    %2020 = vdwg.mxu0
    %v2021 = vsel %vm1887, %v2016, -inf
    %2022 = vmax.xlane.f32.xlu0 %v2021
    %v2023 = vpop.xlane.xlu0 %2022
    %v2024 = vsel %vm1891, %v2019, -inf
    %2025 = vmax.xlane.f32.xlu0 %v2024
    %v2026 = vpop.xlane.xlu0 %2025
    %v2027 = vsub.f32 %v2016, %v2023
    %v2028 = vsub.f32 %v2019, %v2026
    %v2029 = vmul.f32 %v2027, 1.442695
    %v2030 = vpow.pop %v2029
    %v2031 = vmul.f32 %v2028, 1.442695
    %v2032 = vpow.pop %v2031
    %v2033 = vsel %vm1887, %v2030, 0.0
    %2034 = vadd.xlane.f32.xlu0 %v2033
    %v2035 = vpop.xlane.xlu0 %2034
    %v2036 = vsel %vm1891, %v2032, 0.0
    %2037 = vadd.xlane.f32.xlu0 %v2036
    %v2038 = vpop.xlane.xlu0 %2037
    %v2039 = vrcp.pop %v2035
    %v2040 = vrcp.pop %v2038
    %v2041 = vmul.f32 %v2030, %v2039
    %v2042 = vmul.f32 %v2032, %v2040
    %2044 = vrot.lane.b32.xlu0 %v1847, 96
    %v2045 = vpop.permute.xlu0 %2044
    %2046 = vrot.lane.b32.xlu0 %v1849, 96
    %v2047 = vpop.permute.xlu0 %2046
    %v2050 = vsel %vm1887, %v2041, 0
    %v2053 = vsel %vm1887, %v2042, 0
    %v2055 = vsel %vm1410, %v2047, 0
    %2057 = vmatpush.msra.mxu0 0.0
    %2058 = vmatpush.msra.mxu0 0.0
    %2059 = vmatpush.msra.mxu0 0.0
    %2060 = vmatpush.msra.mxu0 0.0
    %2061 = vmatpush.msra.mxu0 0.0
    %2062 = vmatpush.msra.mxu0 0.0
    %2063 = vmatpush.msra.mxu0 0.0
    %2064 = vmatpush.msra.mxu0 0.0
    %2065 = vmatpush.msra.mxu0 0.0
    %2066 = vmatpush.msra.mxu0 0.0
    %2067 = vmatpush.msra.mxu0 0.0
    %2068 = vmatpush.msra.mxu0 0.0
    %2069 = vmatpush.msra.mxu0 0.0
    %2070 = vmatpush.msra.mxu0 0.0
    %2071 = vmatpush.msra.mxu0 %v2055
    %2072 = vmatpush.msra.mxu0 %v2045
    %2073 = vmatmul.f32.gmra.mxu0 %v2050
    %v2074 = vpop.f32.mrf.mxu0
    %v2075 = vadd.f32 0.0, %v2074
    %2076 = vmatmul.f32.gmra.mxu0 %v2053
    %v2077 = vpop.f32.mrf.mxu0
    %v2078 = vadd.f32 0.0, %v2077
    %2079 = vdwg.mxu0
    %v2080 = vpack.c.bf16 %v2078, %v2075
    %s2081 = scalar_lea.vmem %s63, 16
    %v2082 = vld [vmem:[%s2081] sm:$0xf]
    %v2083 = vld [vmem:[%s2081 + $0x4] sm:$0xf]
    %v2084 = vld [vmem:[%s2081 + $0x8] sm:$0xf]
    %v2085 = vld [vmem:[%s2081 + $0xc] sm:$0xf]
    %v2090 = vunpack.c.l.b16 %v2082
    %v2091 = vunpack.c.l.b16 %v2083
    %v2092 = vunpack.c.l.b16 %v2084
    %v2093 = vunpack.c.l.b16 %v2085
    %v2094 = vpack.c.b16 %v2091, %v2090
    %v2095 = vpack.c.b16 %v2093, %v2092
    %v2099 = vsel %vm1087, %v2080, 0
    %2101 = vmatpush.bf16.msra.mxu0 0
    %2102 = vmatpush.bf16.msra.mxu0 0
    %2103 = vmatpush.bf16.msra.mxu0 0
    %2104 = vmatpush.bf16.msra.mxu0 0
    %2105 = vmatpush.bf16.msra.mxu0 0
    %2106 = vmatpush.bf16.msra.mxu0 0
    %2107 = vmatpush.bf16.msra.mxu0 %v2095
    %2108 = vmatpush.bf16.msra.mxu0 %v2094
    %2109 = vmatmul.bf16.gmra.mxu0 %v2099
    %v2110 = vpop.f32.mrf.mxu0
    %v2111 = vadd.f32 0.0, %v2110
    %v2112 = vpop.f32.mrf.mxu0
    %v2113 = vadd.f32 0.0, %v2112
    %2114 = vdwg.mxu0
    %v2115 = vadd.f32 %v1980, %v2111
    %v2116 = vadd.f32 %v1981, %v2113
    %v2117 = vadd.f32 %v1648, %v2115
    %v2118 = vadd.f32 %v1649, %v2116
    %v2119 = vld [vmem:[#allocation19] sm:$0x1]
    %v2120 = vld [vmem:[#allocation21] sm:$0x1]
    %v2121 = vsel %vm1451, %v2117, 0.0
    %2122 = vadd.xlane.f32.xlu0 %v2121
    %v2123 = vpop.xlane.xlu0 %2122
    %vm2124 = vcmask 519168
    %v2125 = vsel %vm2124, %v2118, 0.0
    %2126 = vadd.xlane.f32.xlu0 %v2125
    %v2127 = vpop.xlane.xlu0 %2126
    %v2128 = vrcp.pop 64.0
    %v2129 = vmul.f32 64.0, %v2128
    %v2130 = vsub.f32 1.0, %v2129
    %v2131 = vmul.f32 %v2128, %v2130
    %v2132 = vadd.f32 %v2128, %v2131
    %vm2133 = vweird.f32 %v2128
    %v2134 = vsel %vm2133, %v2128, %v2132
    %v2135 = vmul.f32 %v2123, %v2134
    %v2136 = vmul.f32 %v2127, %v2134
    %v2137 = vsub.f32 %v2117, %v2135
    %v2138 = vsub.f32 %v2118, %v2136
    %v2139 = vmul.f32 %v2137, %v2137
    %v2140 = vmul.f32 %v2138, %v2138
    %v2141 = vsel %vm1451, %v2139, 0.0
    %2142 = vadd.xlane.f32.xlu0 %v2141
    %v2143 = vpop.xlane.xlu0 %2142
    %v2144 = vsel %vm2124, %v2140, 0.0
    %2145 = vadd.xlane.f32.xlu0 %v2144
    %v2146 = vpop.xlane.xlu0 %2145
    %v2147 = vmul.f32 %v2143, %v2134
    %v2148 = vmul.f32 %v2146, %v2134
    %v2149 = vadd.f32 %v2147, 1e-05
    %v2150 = vadd.f32 %v2148, 1e-05
    %v2151 = vrsqrt.pop %v2149
    %v2152 = vmul.f32 %v2151, %v2149
    %v2153 = vmul.f32 %v2152, %v2151
    %v2154 = vmul.f32 0.5, %v2153
    %v2155 = vsub.f32 1.5, %v2154
    %v2156 = vmul.f32 %v2151, %v2155
    %vm2157 = vweird.f32 %v2149
    %vm2158 = vweird.f32 %v2151
    %vm2159 = vmor %vm2157, %vm2158
    %v2160 = vsel %vm2159, %v2151, %v2156
    %v2161 = vrsqrt.pop %v2150
    %v2162 = vmul.f32 %v2161, %v2150
    %v2163 = vmul.f32 %v2162, %v2161
    %v2164 = vmul.f32 0.5, %v2163
    %v2165 = vsub.f32 1.5, %v2164
    %v2166 = vmul.f32 %v2161, %v2165
    %vm2167 = vweird.f32 %v2150
    %vm2168 = vweird.f32 %v2161
    %vm2169 = vmor %vm2167, %vm2168
    %v2170 = vsel %vm2169, %v2161, %v2166
    %v2171 = vmul.f32 %v2137, %v2160
    %v2172 = vmul.f32 %v2138, %v2170
    %v2174 = vperm.slane %v2119, 0
    %v2176 = vmul.f32 %v2171, %v2174
    %v2177 = vmul.f32 %v2172, %v2174
    %v2179 = vperm.slane %v2120, 0
    %v2181 = vadd.f32 %v2176, %v2179
    %v2182 = vadd.f32 %v2177, %v2179
    %v2183 = vpack.c.bf16 %v2182, %v2181
    %v2184 = vld [vmem:[%s67] sm:$0xf]
    %v2185 = vld [vmem:[%s67 + $0x4] sm:$0xf]
    %v2186 = vld [vmem:[%s67 + $0x8] sm:$0xf]
    %v2187 = vld [vmem:[%s67 + $0xc] sm:$0xf]
    %v2188 = vld [vmem:[%s67 + $0x10] sm:$0xf]
    %v2189 = vld [vmem:[%s67 + $0x14] sm:$0xf]
    %v2190 = vld [vmem:[%s67 + $0x18] sm:$0xf]
    %v2191 = vld [vmem:[%s67 + $0x1c] sm:$0xf]
    %v2192 = vld [vmem:[#allocation13] sm:$0x1]
    %v2194 = vperm.slane %v2192, 0
    %v2204 = vunpack.c.l.b16 %v2184
    %v2205 = vunpack.c.l.b16 %v2185
    %v2206 = vunpack.c.l.b16 %v2186
    %v2207 = vunpack.c.l.b16 %v2187
    %v2208 = vunpack.c.l.b16 %v2188
    %v2209 = vunpack.c.l.b16 %v2189
    %v2210 = vunpack.c.l.b16 %v2190
    %v2211 = vunpack.c.l.b16 %v2191
    %v2212 = vpack.c.b16 %v2205, %v2204
    %v2213 = vpack.c.b16 %v2207, %v2206
    %v2214 = vpack.c.b16 %v2209, %v2208
    %v2215 = vpack.c.b16 %v2211, %v2210
    %v2221 = vsel %vm1451, %v2183, 0
    %2223 = vmatpush.bf16.msra.mxu0 0
    %2224 = vmatpush.bf16.msra.mxu0 0
    %2225 = vmatpush.bf16.msra.mxu0 0
    %2226 = vmatpush.bf16.msra.mxu0 0
    %2227 = vmatpush.bf16.msra.mxu0 %v2215
    %2228 = vmatpush.bf16.msra.mxu0 %v2214
    %2229 = vmatpush.bf16.msra.mxu0 %v2213
    %2230 = vmatpush.bf16.msra.mxu0 %v2212
    %2231 = vmatmul.bf16.gmra.mxu0 %v2221
    %v2232 = vpop.f32.mrf.mxu0
    %v2233 = vadd.f32 %v2194, %v2232
    %v2234 = vpop.f32.mrf.mxu0
    %v2235 = vadd.f32 %v2194, %v2234
    %2236 = vdwg.mxu0
    %v2237 = vld [vmem:[%s71] sm:$0xf]
    %v2238 = vld [vmem:[%s71 + $0x4] sm:$0xf]
    %v2239 = vld [vmem:[%s71 + $0x8] sm:$0xf]
    %v2240 = vld [vmem:[%s71 + $0xc] sm:$0xf]
    %v2241 = vld [vmem:[%s71 + $0x10] sm:$0xf]
    %v2242 = vld [vmem:[%s71 + $0x14] sm:$0xf]
    %v2243 = vld [vmem:[%s71 + $0x18] sm:$0xf]
    %v2244 = vld [vmem:[%s71 + $0x1c] sm:$0xf]
    %v2245 = vld [vmem:[#allocation15] sm:$0x1]
    %v2247 = vperm.slane %v2245, 0
    %v2257 = vunpack.c.l.b16 %v2237
    %v2258 = vunpack.c.l.b16 %v2238
    %v2259 = vunpack.c.l.b16 %v2239
    %v2260 = vunpack.c.l.b16 %v2240
    %v2261 = vunpack.c.l.b16 %v2241
    %v2262 = vunpack.c.l.b16 %v2242
    %v2263 = vunpack.c.l.b16 %v2243
    %v2264 = vunpack.c.l.b16 %v2244
    %v2265 = vpack.c.b16 %v2258, %v2257
    %v2266 = vpack.c.b16 %v2260, %v2259
    %v2267 = vpack.c.b16 %v2262, %v2261
    %v2268 = vpack.c.b16 %v2264, %v2263
    %2273 = vmatpush.bf16.msra.mxu0 0
    %2274 = vmatpush.bf16.msra.mxu0 0
    %2275 = vmatpush.bf16.msra.mxu0 0
    %2276 = vmatpush.bf16.msra.mxu0 0
    %2277 = vmatpush.bf16.msra.mxu0 %v2268
    %2278 = vmatpush.bf16.msra.mxu0 %v2267
    %2279 = vmatpush.bf16.msra.mxu0 %v2266
    %2280 = vmatpush.bf16.msra.mxu0 %v2265
    %2281 = vmatmul.bf16.gmra.mxu0 %v1735
    %v2282 = vpop.f32.mrf.mxu0
    %v2283 = vadd.f32 %v2247, %v2282
    %v2284 = vpop.f32.mrf.mxu0
    %v2285 = vadd.f32 %v2247, %v2284
    %2286 = vdwg.mxu0
    %v2287 = vld [vmem:[%s75] sm:$0xf]
    %v2288 = vld [vmem:[%s75 + $0x4] sm:$0xf]
    %v2289 = vld [vmem:[%s75 + $0x8] sm:$0xf]
    %v2290 = vld [vmem:[%s75 + $0xc] sm:$0xf]
    %v2291 = vld [vmem:[%s75 + $0x10] sm:$0xf]
    %v2292 = vld [vmem:[%s75 + $0x14] sm:$0xf]
    %v2293 = vld [vmem:[%s75 + $0x18] sm:$0xf]
    %v2294 = vld [vmem:[%s75 + $0x1c] sm:$0xf]
    %v2295 = vld [vmem:[#allocation16] sm:$0x1]
    %v2297 = vperm.slane %v2295, 0
    %v2307 = vunpack.c.l.b16 %v2287
    %v2308 = vunpack.c.l.b16 %v2288
    %v2309 = vunpack.c.l.b16 %v2289
    %v2310 = vunpack.c.l.b16 %v2290
    %v2311 = vunpack.c.l.b16 %v2291
    %v2312 = vunpack.c.l.b16 %v2292
    %v2313 = vunpack.c.l.b16 %v2293
    %v2314 = vunpack.c.l.b16 %v2294
    %v2315 = vpack.c.b16 %v2308, %v2307
    %v2316 = vpack.c.b16 %v2310, %v2309
    %v2317 = vpack.c.b16 %v2312, %v2311
    %v2318 = vpack.c.b16 %v2314, %v2313
    %2323 = vmatpush.bf16.msra.mxu0 0
    %2324 = vmatpush.bf16.msra.mxu0 0
    %2325 = vmatpush.bf16.msra.mxu0 0
    %2326 = vmatpush.bf16.msra.mxu0 0
    %2327 = vmatpush.bf16.msra.mxu0 %v2318
    %2328 = vmatpush.bf16.msra.mxu0 %v2317
    %2329 = vmatpush.bf16.msra.mxu0 %v2316
    %2330 = vmatpush.bf16.msra.mxu0 %v2315
    %2331 = vmatmul.bf16.gmra.mxu0 %v1735
    %v2332 = vpop.f32.mrf.mxu0
    %v2333 = vadd.f32 %v2297, %v2332
    %v2334 = vpop.f32.mrf.mxu0
    %v2335 = vadd.f32 %v2297, %v2334
    %2336 = vdwg.mxu0
    %v2337 = vld [vmem:[#allocation18] sm:$0x1]
    %v2339 = vsel %vm1087, %v2233, 0
    %v2342 = vsel %vm1087, %v2235, 0
    %v2345 = vsel %vm1087, %v2283, 0
    %v2348 = vsel %vm1087, %v2285, 0
    %2350 = vmatpush.xpose.msra.mxu0 0.0
    %2351 = vmatpush.xpose.msra.mxu0 0.0
    %2352 = vmatpush.xpose.msra.mxu0 0.0
    %2353 = vmatpush.xpose.msra.mxu0 0.0
    %2354 = vmatpush.xpose.msra.mxu0 0.0
    %2355 = vmatpush.xpose.msra.mxu0 0.0
    %2356 = vmatpush.xpose.msra.mxu0 0.0
    %2357 = vmatpush.xpose.msra.mxu0 0.0
    %2358 = vmatpush.xpose.msra.mxu0 0.0
    %2359 = vmatpush.xpose.msra.mxu0 0.0
    %2360 = vmatpush.xpose.msra.mxu0 0.0
    %2361 = vmatpush.xpose.msra.mxu0 0.0
    %2362 = vmatpush.xpose.msra.mxu0 0.0
    %2363 = vmatpush.xpose.msra.mxu0 0.0
    %2364 = vmatpush.xpose.msra.mxu0 %v2348
    %2365 = vmatpush.xpose.msra.mxu0 %v2345
    %2366 = vmatmul.f32.gmra.mxu0 %v2339
    %v2367 = vpop.f32.mrf.mxu0
    %v2368 = vadd.f32 %v1695, %v2367
    %2369 = vmatmul.f32.gmra.mxu0 %v2342
    %v2370 = vpop.f32.mrf.mxu0
    %v2371 = vadd.f32 %v1696, %v2370
    %2372 = vdwg.mxu0
    %v2373 = vsel %vm1887, %v2368, -inf
    %2374 = vmax.xlane.f32.xlu0 %v2373
    %v2375 = vpop.xlane.xlu0 %2374
    %v2376 = vsel %vm1891, %v2371, -inf
    %2377 = vmax.xlane.f32.xlu0 %v2376
    %v2378 = vpop.xlane.xlu0 %2377
    %v2379 = vsub.f32 %v2368, %v2375
    %v2380 = vsub.f32 %v2371, %v2378
    %v2381 = vmul.f32 %v2379, 1.442695
    %v2382 = vpow.pop %v2381
    %v2383 = vmul.f32 %v2380, 1.442695
    %v2384 = vpow.pop %v2383
    %v2385 = vsel %vm1887, %v2382, 0.0
    %2386 = vadd.xlane.f32.xlu0 %v2385
    %v2387 = vpop.xlane.xlu0 %2386
    %v2388 = vsel %vm1891, %v2384, 0.0
    %2389 = vadd.xlane.f32.xlu0 %v2388
    %v2390 = vpop.xlane.xlu0 %2389
    %v2391 = vrcp.pop %v2387
    %v2392 = vrcp.pop %v2390
    %v2393 = vmul.f32 %v2382, %v2391
    %v2394 = vmul.f32 %v2384, %v2392
    %v2396 = vsel %vm1887, %v2393, 0
    %v2399 = vsel %vm1887, %v2394, 0
    %v2402 = vsel %vm1410, %v2335, 0
    %2404 = vmatpush.msra.mxu0 0.0
    %2405 = vmatpush.msra.mxu0 0.0
    %2406 = vmatpush.msra.mxu0 0.0
    %2407 = vmatpush.msra.mxu0 0.0
    %2408 = vmatpush.msra.mxu0 0.0
    %2409 = vmatpush.msra.mxu0 0.0
    %2410 = vmatpush.msra.mxu0 0.0
    %2411 = vmatpush.msra.mxu0 0.0
    %2412 = vmatpush.msra.mxu0 0.0
    %2413 = vmatpush.msra.mxu0 0.0
    %2414 = vmatpush.msra.mxu0 0.0
    %2415 = vmatpush.msra.mxu0 0.0
    %2416 = vmatpush.msra.mxu0 0.0
    %2417 = vmatpush.msra.mxu0 0.0
    %2418 = vmatpush.msra.mxu0 %v2402
    %2419 = vmatpush.msra.mxu0 %v2333
    %2420 = vmatmul.f32.gmra.mxu0 %v2396
    %v2421 = vpop.f32.mrf.mxu0
    %v2422 = vadd.f32 0.0, %v2421
    %2423 = vmatmul.f32.gmra.mxu0 %v2399
    %v2424 = vpop.f32.mrf.mxu0
    %v2425 = vadd.f32 0.0, %v2424
    %2426 = vdwg.mxu0
    %v2427 = vpack.c.bf16 %v2425, %v2422
    %v2428 = vld [vmem:[%s79] sm:$0xf]
    %v2429 = vld [vmem:[%s79 + $0x4] sm:$0xf]
    %v2430 = vld [vmem:[%s79 + $0x8] sm:$0xf]
    %v2431 = vld [vmem:[%s79 + $0xc] sm:$0xf]
    %v2436 = vunpack.c.l.b16 %v2428
    %v2437 = vunpack.c.l.b16 %v2429
    %v2438 = vunpack.c.l.b16 %v2430
    %v2439 = vunpack.c.l.b16 %v2431
    %v2440 = vpack.c.b16 %v2437, %v2436
    %v2441 = vpack.c.b16 %v2439, %v2438
    %v2445 = vsel %vm1087, %v2427, 0
    %2447 = vmatpush.bf16.msra.mxu0 0
    %2448 = vmatpush.bf16.msra.mxu0 0
    %2449 = vmatpush.bf16.msra.mxu0 0
    %2450 = vmatpush.bf16.msra.mxu0 0
    %2451 = vmatpush.bf16.msra.mxu0 0
    %2452 = vmatpush.bf16.msra.mxu0 0
    %2453 = vmatpush.bf16.msra.mxu0 %v2441
    %2454 = vmatpush.bf16.msra.mxu0 %v2440
    %2455 = vmatmul.bf16.gmra.mxu0 %v2445
    %v2456 = vpop.f32.mrf.mxu0
    %v2457 = vadd.f32 0.0, %v2456
    %v2458 = vpop.f32.mrf.mxu0
    %v2459 = vadd.f32 0.0, %v2458
    %2460 = vdwg.mxu0
    %v2462 = vperm.slane %v2337, 0
    %v2464 = vadd.f32 %v2462, %v2457
    %v2465 = vadd.f32 %v2462, %v2459
    %2466 = vrot.lane.b32.xlu0 %v2233, 96
    %v2467 = vpop.permute.xlu0 %2466
    %2468 = vrot.lane.b32.xlu0 %v2235, 96
    %v2469 = vpop.permute.xlu0 %2468
    %2470 = vrot.lane.b32.xlu0 %v2283, 96
    %v2471 = vpop.permute.xlu0 %2470
    %2472 = vrot.lane.b32.xlu0 %v2285, 96
    %v2473 = vpop.permute.xlu0 %2472
    %v2474 = vsel %vm1087, %v2467, 0
    %v2476 = vsel %vm1087, %v2469, 0
    %v2478 = vsel %vm1087, %v2471, 0
    %v2480 = vsel %vm1087, %v2473, 0
    %2482 = vmatpush.xpose.msra.mxu0 0.0
    %2483 = vmatpush.xpose.msra.mxu0 0.0
    %2484 = vmatpush.xpose.msra.mxu0 0.0
    %2485 = vmatpush.xpose.msra.mxu0 0.0
    %2486 = vmatpush.xpose.msra.mxu0 0.0
    %2487 = vmatpush.xpose.msra.mxu0 0.0
    %2488 = vmatpush.xpose.msra.mxu0 0.0
    %2489 = vmatpush.xpose.msra.mxu0 0.0
    %2490 = vmatpush.xpose.msra.mxu0 0.0
    %2491 = vmatpush.xpose.msra.mxu0 0.0
    %2492 = vmatpush.xpose.msra.mxu0 0.0
    %2493 = vmatpush.xpose.msra.mxu0 0.0
    %2494 = vmatpush.xpose.msra.mxu0 0.0
    %2495 = vmatpush.xpose.msra.mxu0 0.0
    %2496 = vmatpush.xpose.msra.mxu0 %v2480
    %2497 = vmatpush.xpose.msra.mxu0 %v2478
    %2498 = vmatmul.f32.gmra.mxu0 %v2474
    %v2499 = vpop.f32.mrf.mxu0
    %v2500 = vadd.f32 %v1695, %v2499
    %2501 = vmatmul.f32.gmra.mxu0 %v2476
    %v2502 = vpop.f32.mrf.mxu0
    %v2503 = vadd.f32 %v1696, %v2502
    %2504 = vdwg.mxu0
    %v2505 = vsel %vm1887, %v2500, -inf
    %2506 = vmax.xlane.f32.xlu0 %v2505
    %v2507 = vpop.xlane.xlu0 %2506
    %v2508 = vsel %vm1891, %v2503, -inf
    %2509 = vmax.xlane.f32.xlu0 %v2508
    %v2510 = vpop.xlane.xlu0 %2509
    %v2511 = vsub.f32 %v2500, %v2507
    %v2512 = vsub.f32 %v2503, %v2510
    %v2513 = vmul.f32 %v2511, 1.442695
    %v2514 = vpow.pop %v2513
    %v2515 = vmul.f32 %v2512, 1.442695
    %v2516 = vpow.pop %v2515
    %v2517 = vsel %vm1887, %v2514, 0.0
    %2518 = vadd.xlane.f32.xlu0 %v2517
    %v2519 = vpop.xlane.xlu0 %2518
    %v2520 = vsel %vm1891, %v2516, 0.0
    %2521 = vadd.xlane.f32.xlu0 %v2520
    %v2522 = vpop.xlane.xlu0 %2521
    %v2523 = vrcp.pop %v2519
    %v2524 = vrcp.pop %v2522
    %v2525 = vmul.f32 %v2514, %v2523
    %v2526 = vmul.f32 %v2516, %v2524
    %2528 = vrot.lane.b32.xlu0 %v2333, 96
    %v2529 = vpop.permute.xlu0 %2528
    %2530 = vrot.lane.b32.xlu0 %v2335, 96
    %v2531 = vpop.permute.xlu0 %2530
    %v2534 = vsel %vm1887, %v2525, 0
    %v2537 = vsel %vm1887, %v2526, 0
    %v2539 = vsel %vm1410, %v2531, 0
    %2541 = vmatpush.msra.mxu0 0.0
    %2542 = vmatpush.msra.mxu0 0.0
    %2543 = vmatpush.msra.mxu0 0.0
    %2544 = vmatpush.msra.mxu0 0.0
    %2545 = vmatpush.msra.mxu0 0.0
    %2546 = vmatpush.msra.mxu0 0.0
    %2547 = vmatpush.msra.mxu0 0.0
    %2548 = vmatpush.msra.mxu0 0.0
    %2549 = vmatpush.msra.mxu0 0.0
    %2550 = vmatpush.msra.mxu0 0.0
    %2551 = vmatpush.msra.mxu0 0.0
    %2552 = vmatpush.msra.mxu0 0.0
    %2553 = vmatpush.msra.mxu0 0.0
    %2554 = vmatpush.msra.mxu0 0.0
    %2555 = vmatpush.msra.mxu0 %v2539
    %2556 = vmatpush.msra.mxu0 %v2529
    %2557 = vmatmul.f32.gmra.mxu0 %v2534
    %v2558 = vpop.f32.mrf.mxu0
    %v2559 = vadd.f32 0.0, %v2558
    %2560 = vmatmul.f32.gmra.mxu0 %v2537
    %v2561 = vpop.f32.mrf.mxu0
    %v2562 = vadd.f32 0.0, %v2561
    %2563 = vdwg.mxu0
    %v2564 = vpack.c.bf16 %v2562, %v2559
    %s2565 = scalar_lea.vmem %s79, 16
    %v2566 = vld [vmem:[%s2565] sm:$0xf]
    %v2567 = vld [vmem:[%s2565 + $0x4] sm:$0xf]
    %v2568 = vld [vmem:[%s2565 + $0x8] sm:$0xf]
    %v2569 = vld [vmem:[%s2565 + $0xc] sm:$0xf]
    %v2574 = vunpack.c.l.b16 %v2566
    %v2575 = vunpack.c.l.b16 %v2567
    %v2576 = vunpack.c.l.b16 %v2568
    %v2577 = vunpack.c.l.b16 %v2569
    %v2578 = vpack.c.b16 %v2575, %v2574
    %v2579 = vpack.c.b16 %v2577, %v2576
    %v2583 = vsel %vm1087, %v2564, 0
    %2585 = vmatpush.bf16.msra.mxu0 0
    %2586 = vmatpush.bf16.msra.mxu0 0
    %2587 = vmatpush.bf16.msra.mxu0 0
    %2588 = vmatpush.bf16.msra.mxu0 0
    %2589 = vmatpush.bf16.msra.mxu0 0
    %2590 = vmatpush.bf16.msra.mxu0 0
    %2591 = vmatpush.bf16.msra.mxu0 %v2579
    %2592 = vmatpush.bf16.msra.mxu0 %v2578
    %2593 = vmatmul.bf16.gmra.mxu0 %v2583
    %v2594 = vpop.f32.mrf.mxu0
    %v2595 = vadd.f32 0.0, %v2594
    %v2596 = vpop.f32.mrf.mxu0
    %v2597 = vadd.f32 0.0, %v2596
    %2598 = vdwg.mxu0
    %v2599 = vadd.f32 %v2464, %v2595
    %v2600 = vadd.f32 %v2465, %v2597
    %v2601 = vadd.f32 %v2181, %v2599
    %v2602 = vadd.f32 %v2182, %v2600
    %v2603 = vld [vmem:[#allocation22] sm:$0x1]
    %v2604 = vld [vmem:[#allocation24] sm:$0x1]
    %v2605 = vsel %vm1451, %v2601, 0.0
    %2606 = vadd.xlane.f32.xlu0 %v2605
    %v2607 = vpop.xlane.xlu0 %2606
    %v2608 = vsel %vm2124, %v2602, 0.0
    %2609 = vadd.xlane.f32.xlu0 %v2608
    %v2610 = vpop.xlane.xlu0 %2609
    %v2611 = vmul.f32 %v2607, %v2134
    %v2612 = vmul.f32 %v2610, %v2134
    %v2613 = vsub.f32 %v2601, %v2611
    %v2614 = vsub.f32 %v2602, %v2612
    %v2615 = vmul.f32 %v2613, %v2613
    %v2616 = vmul.f32 %v2614, %v2614
    %v2617 = vsel %vm1451, %v2615, 0.0
    %2618 = vadd.xlane.f32.xlu0 %v2617
    %v2619 = vpop.xlane.xlu0 %2618
    %v2620 = vsel %vm2124, %v2616, 0.0
    %2621 = vadd.xlane.f32.xlu0 %v2620
    %v2622 = vpop.xlane.xlu0 %2621
    %v2623 = vmul.f32 %v2619, %v2134
    %v2624 = vmul.f32 %v2622, %v2134
    %v2625 = vadd.f32 %v2623, 1e-05
    %v2626 = vadd.f32 %v2624, 1e-05
    %v2627 = vrsqrt.pop %v2625
    %v2628 = vmul.f32 %v2627, %v2625
    %v2629 = vmul.f32 %v2628, %v2627
    %v2630 = vmul.f32 0.5, %v2629
    %v2631 = vsub.f32 1.5, %v2630
    %v2632 = vmul.f32 %v2627, %v2631
    %vm2633 = vweird.f32 %v2625
    %vm2634 = vweird.f32 %v2627
    %vm2635 = vmor %vm2633, %vm2634
    %v2636 = vsel %vm2635, %v2627, %v2632
    %v2637 = vrsqrt.pop %v2626
    %v2638 = vmul.f32 %v2637, %v2626
    %v2639 = vmul.f32 %v2638, %v2637
    %v2640 = vmul.f32 0.5, %v2639
    %v2641 = vsub.f32 1.5, %v2640
    %v2642 = vmul.f32 %v2637, %v2641
    %vm2643 = vweird.f32 %v2626
    %vm2644 = vweird.f32 %v2637
    %vm2645 = vmor %vm2643, %vm2644
    %v2646 = vsel %vm2645, %v2637, %v2642
    %v2647 = vmul.f32 %v2613, %v2636
    %v2648 = vmul.f32 %v2614, %v2646
    %v2650 = vperm.slane %v2603, 0
    %v2652 = vmul.f32 %v2647, %v2650
    %v2653 = vmul.f32 %v2648, %v2650
    %v2655 = vperm.slane %v2604, 0
    %v2657 = vadd.f32 %v2652, %v2655
    %v2658 = vadd.f32 %v2653, %v2655
    %s2659 = smul.u32 4, 8
    %s2660 = smul.u32 %s2659, 16
    %s2661 = sshll.u32 %s2660, 4
    %2662 = dma.done [#allocation4], %s2661
    %v2663 = vpack.c.bf16 %v2658, %v2657
    %v2664 = vld [vmem:[#allocation2] sm:$0xff]
    %v2665 = vld [vmem:[#allocation2 + $0x8] sm:$0xff]
    %v2666 = vld [vmem:[#allocation2 + $0x10] sm:$0xff]
    %v2667 = vld [vmem:[#allocation2 + $0x18] sm:$0xff]
    %v2668 = vld [vmem:[#allocation2 + $0x20] sm:$0xff]
    %v2669 = vld [vmem:[#allocation2 + $0x28] sm:$0xff]
    %v2670 = vld [vmem:[#allocation2 + $0x30] sm:$0xff]
    %v2671 = vld [vmem:[#allocation2 + $0x38] sm:$0xff]
    %v2672 = vld [vmem:[#allocation2 + $0x40] sm:$0xff]
    %v2673 = vld [vmem:[#allocation2 + $0x48] sm:$0xff]
    %v2674 = vld [vmem:[#allocation2 + $0x50] sm:$0xff]
    %v2675 = vld [vmem:[#allocation2 + $0x58] sm:$0xff]
    %v2676 = vld [vmem:[#allocation2 + $0x60] sm:$0xff]
    %v2677 = vld [vmem:[#allocation2 + $0x68] sm:$0xff]
    %v2678 = vld [vmem:[#allocation2 + $0x70] sm:$0xff]
    %v2679 = vld [vmem:[#allocation2 + $0x78] sm:$0xff]
    %v2680 = vld [vmem:[#allocation2 + $0x80] sm:$0xff]
    %v2681 = vld [vmem:[#allocation2 + $0x88] sm:$0xff]
    %v2682 = vld [vmem:[#allocation2 + $0x90] sm:$0xff]
    %v2683 = vld [vmem:[#allocation2 + $0x98] sm:$0xff]
    %v2684 = vld [vmem:[#allocation2 + $0xa0] sm:$0xff]
    %v2685 = vld [vmem:[#allocation2 + $0xa8] sm:$0xff]
    %v2686 = vld [vmem:[#allocation2 + $0xb0] sm:$0xff]
    %v2687 = vld [vmem:[#allocation2 + $0xb8] sm:$0xff]
    %v2688 = vld [vmem:[#allocation2 + $0xc0] sm:$0xff]
    %v2689 = vld [vmem:[#allocation2 + $0xc8] sm:$0xff]
    %v2690 = vld [vmem:[#allocation2 + $0xd0] sm:$0xff]
    %v2691 = vld [vmem:[#allocation2 + $0xd8] sm:$0xff]
    %v2692 = vld [vmem:[#allocation2 + $0xe0] sm:$0xff]
    %v2693 = vld [vmem:[#allocation2 + $0xe8] sm:$0xff]
    %v2694 = vld [vmem:[#allocation2 + $0xf0] sm:$0xff]
    %v2695 = vld [vmem:[#allocation2 + $0xf8] sm:$0xff]
    %v2696 = vld [vmem:[#allocation2 + $0x100] sm:$0xff]
    %v2697 = vld [vmem:[#allocation2 + $0x108] sm:$0xff]
    %v2698 = vld [vmem:[#allocation2 + $0x110] sm:$0xff]
    %v2699 = vld [vmem:[#allocation2 + $0x118] sm:$0xff]
    %v2700 = vld [vmem:[#allocation2 + $0x120] sm:$0xff]
    %v2701 = vld [vmem:[#allocation2 + $0x128] sm:$0xff]
    %v2702 = vld [vmem:[#allocation2 + $0x130] sm:$0xff]
    %v2703 = vld [vmem:[#allocation2 + $0x138] sm:$0xff]
    %v2704 = vld [vmem:[#allocation2 + $0x140] sm:$0xff]
    %v2705 = vld [vmem:[#allocation2 + $0x148] sm:$0xff]
    %v2706 = vld [vmem:[#allocation2 + $0x150] sm:$0xff]
    %v2707 = vld [vmem:[#allocation2 + $0x158] sm:$0xff]
    %v2708 = vld [vmem:[#allocation2 + $0x160] sm:$0xff]
    %v2709 = vld [vmem:[#allocation2 + $0x168] sm:$0xff]
    %v2710 = vld [vmem:[#allocation2 + $0x170] sm:$0xff]
    %v2711 = vld [vmem:[#allocation2 + $0x178] sm:$0xff]
    %v2712 = vld [vmem:[#allocation2 + $0x180] sm:$0xff]
    %v2713 = vld [vmem:[#allocation2 + $0x188] sm:$0xff]
    %v2714 = vld [vmem:[#allocation2 + $0x190] sm:$0xff]
    %v2715 = vld [vmem:[#allocation2 + $0x198] sm:$0xff]
    %v2716 = vld [vmem:[#allocation2 + $0x1a0] sm:$0xff]
    %v2717 = vld [vmem:[#allocation2 + $0x1a8] sm:$0xff]
    %v2718 = vld [vmem:[#allocation2 + $0x1b0] sm:$0xff]
    %v2719 = vld [vmem:[#allocation2 + $0x1b8] sm:$0xff]
    %v2720 = vld [vmem:[#allocation2 + $0x1c0] sm:$0xff]
    %v2721 = vld [vmem:[#allocation2 + $0x1c8] sm:$0xff]
    %v2722 = vld [vmem:[#allocation2 + $0x1d0] sm:$0xff]
    %v2723 = vld [vmem:[#allocation2 + $0x1d8] sm:$0xff]
    %v2724 = vld [vmem:[#allocation2 + $0x1e0] sm:$0xff]
    %v2725 = vld [vmem:[#allocation2 + $0x1e8] sm:$0xff]
    %v2726 = vld [vmem:[#allocation2 + $0x1f0] sm:$0xff]
    %v2727 = vld [vmem:[#allocation2 + $0x1f8] sm:$0xff]
    %v2728 = vld [vmem:[#allocation28] sm:$0xff]
    %v2729 = vld [vmem:[#allocation28 + $0x8] sm:$0xff]
    %v2732 = vperm.slane %v2728, 0
    %v2733 = vperm.slane %v2728, 1
    %v2734 = vperm.slane %v2728, 2
    %v2735 = vperm.slane %v2728, 3
    %v2736 = vperm.slane %v2728, 4
    %v2737 = vperm.slane %v2728, 5
    %v2738 = vperm.slane %v2728, 6
    %v2739 = vperm.slane %v2728, 7
    %v2740 = vperm.slane %v2729, 0
    %v2741 = vperm.slane %v2729, 1
    %v2742 = vperm.slane %v2729, 2
    %v2743 = vperm.slane %v2729, 3
    %v2744 = vperm.slane %v2729, 4
    %v2745 = vperm.slane %v2729, 5
    %v2746 = vperm.slane %v2729, 6
    %v2747 = vperm.slane %v2729, 7
    %v2828 = vunpack.c.l.b16 %v2664
    %v2829 = vunpack.c.h.b16 %v2664
    %v2830 = vunpack.c.l.b16 %v2665
    %v2831 = vunpack.c.h.b16 %v2665
    %v2832 = vunpack.c.l.b16 %v2666
    %v2833 = vunpack.c.h.b16 %v2666
    %v2834 = vunpack.c.l.b16 %v2667
    %v2835 = vunpack.c.h.b16 %v2667
    %v2836 = vunpack.c.l.b16 %v2668
    %v2837 = vunpack.c.h.b16 %v2668
    %v2838 = vunpack.c.l.b16 %v2669
    %v2839 = vunpack.c.h.b16 %v2669
    %v2840 = vunpack.c.l.b16 %v2670
    %v2841 = vunpack.c.h.b16 %v2670
    %v2842 = vunpack.c.l.b16 %v2671
    %v2843 = vunpack.c.h.b16 %v2671
    %v2844 = vunpack.c.l.b16 %v2672
    %v2845 = vunpack.c.h.b16 %v2672
    %v2846 = vunpack.c.l.b16 %v2673
    %v2847 = vunpack.c.h.b16 %v2673
    %v2848 = vunpack.c.l.b16 %v2674
    %v2849 = vunpack.c.h.b16 %v2674
    %v2850 = vunpack.c.l.b16 %v2675
    %v2851 = vunpack.c.h.b16 %v2675
    %v2852 = vunpack.c.l.b16 %v2676
    %v2853 = vunpack.c.h.b16 %v2676
    %v2854 = vunpack.c.l.b16 %v2677
    %v2855 = vunpack.c.h.b16 %v2677
    %v2856 = vunpack.c.l.b16 %v2678
    %v2857 = vunpack.c.h.b16 %v2678
    %v2858 = vunpack.c.l.b16 %v2679
    %v2859 = vunpack.c.h.b16 %v2679
    %v2860 = vunpack.c.l.b16 %v2680
    %v2861 = vunpack.c.h.b16 %v2680
    %v2862 = vunpack.c.l.b16 %v2681
    %v2863 = vunpack.c.h.b16 %v2681
    %v2864 = vunpack.c.l.b16 %v2682
    %v2865 = vunpack.c.h.b16 %v2682
    %v2866 = vunpack.c.l.b16 %v2683
    %v2867 = vunpack.c.h.b16 %v2683
    %v2868 = vunpack.c.l.b16 %v2684
    %v2869 = vunpack.c.h.b16 %v2684
    %v2870 = vunpack.c.l.b16 %v2685
    %v2871 = vunpack.c.h.b16 %v2685
    %v2872 = vunpack.c.l.b16 %v2686
    %v2873 = vunpack.c.h.b16 %v2686
    %v2874 = vunpack.c.l.b16 %v2687
    %v2875 = vunpack.c.h.b16 %v2687
    %v2876 = vunpack.c.l.b16 %v2688
    %v2877 = vunpack.c.h.b16 %v2688
    %v2878 = vunpack.c.l.b16 %v2689
    %v2879 = vunpack.c.h.b16 %v2689
    %v2880 = vunpack.c.l.b16 %v2690
    %v2881 = vunpack.c.h.b16 %v2690
    %v2882 = vunpack.c.l.b16 %v2691
    %v2883 = vunpack.c.h.b16 %v2691
    %v2884 = vunpack.c.l.b16 %v2692
    %v2885 = vunpack.c.h.b16 %v2692
    %v2886 = vunpack.c.l.b16 %v2693
    %v2887 = vunpack.c.h.b16 %v2693
    %v2888 = vunpack.c.l.b16 %v2694
    %v2889 = vunpack.c.h.b16 %v2694
    %v2890 = vunpack.c.l.b16 %v2695
    %v2891 = vunpack.c.h.b16 %v2695
    %v2892 = vunpack.c.l.b16 %v2696
    %v2893 = vunpack.c.h.b16 %v2696
    %v2894 = vunpack.c.l.b16 %v2697
    %v2895 = vunpack.c.h.b16 %v2697
    %v2896 = vunpack.c.l.b16 %v2698
    %v2897 = vunpack.c.h.b16 %v2698
    %v2898 = vunpack.c.l.b16 %v2699
    %v2899 = vunpack.c.h.b16 %v2699
    %v2900 = vunpack.c.l.b16 %v2700
    %v2901 = vunpack.c.h.b16 %v2700
    %v2902 = vunpack.c.l.b16 %v2701
    %v2903 = vunpack.c.h.b16 %v2701
    %v2904 = vunpack.c.l.b16 %v2702
    %v2905 = vunpack.c.h.b16 %v2702
    %v2906 = vunpack.c.l.b16 %v2703
    %v2907 = vunpack.c.h.b16 %v2703
    %v2908 = vunpack.c.l.b16 %v2704
    %v2909 = vunpack.c.h.b16 %v2704
    %v2910 = vunpack.c.l.b16 %v2705
    %v2911 = vunpack.c.h.b16 %v2705
    %v2912 = vunpack.c.l.b16 %v2706
    %v2913 = vunpack.c.h.b16 %v2706
    %v2914 = vunpack.c.l.b16 %v2707
    %v2915 = vunpack.c.h.b16 %v2707
    %v2916 = vunpack.c.l.b16 %v2708
    %v2917 = vunpack.c.h.b16 %v2708
    %v2918 = vunpack.c.l.b16 %v2709
    %v2919 = vunpack.c.h.b16 %v2709
    %v2920 = vunpack.c.l.b16 %v2710
    %v2921 = vunpack.c.h.b16 %v2710
    %v2922 = vunpack.c.l.b16 %v2711
    %v2923 = vunpack.c.h.b16 %v2711
    %v2924 = vunpack.c.l.b16 %v2712
    %v2925 = vunpack.c.h.b16 %v2712
    %v2926 = vunpack.c.l.b16 %v2713
    %v2927 = vunpack.c.h.b16 %v2713
    %v2928 = vunpack.c.l.b16 %v2714
    %v2929 = vunpack.c.h.b16 %v2714
    %v2930 = vunpack.c.l.b16 %v2715
    %v2931 = vunpack.c.h.b16 %v2715
    %v2932 = vunpack.c.l.b16 %v2716
    %v2933 = vunpack.c.h.b16 %v2716
    %v2934 = vunpack.c.l.b16 %v2717
    %v2935 = vunpack.c.h.b16 %v2717
    %v2936 = vunpack.c.l.b16 %v2718
    %v2937 = vunpack.c.h.b16 %v2718
    %v2938 = vunpack.c.l.b16 %v2719
    %v2939 = vunpack.c.h.b16 %v2719
    %v2940 = vunpack.c.l.b16 %v2720
    %v2941 = vunpack.c.h.b16 %v2720
    %v2942 = vunpack.c.l.b16 %v2721
    %v2943 = vunpack.c.h.b16 %v2721
    %v2944 = vunpack.c.l.b16 %v2722
    %v2945 = vunpack.c.h.b16 %v2722
    %v2946 = vunpack.c.l.b16 %v2723
    %v2947 = vunpack.c.h.b16 %v2723
    %v2948 = vunpack.c.l.b16 %v2724
    %v2949 = vunpack.c.h.b16 %v2724
    %v2950 = vunpack.c.l.b16 %v2725
    %v2951 = vunpack.c.h.b16 %v2725
    %v2952 = vunpack.c.l.b16 %v2726
    %v2953 = vunpack.c.h.b16 %v2726
    %v2954 = vunpack.c.l.b16 %v2727
    %v2955 = vunpack.c.h.b16 %v2727
    %v2956 = vpack.c.b16 %v2844, %v2828
    %v2957 = vpack.c.b16 %v2845, %v2829
    %v2958 = vpack.c.b16 %v2846, %v2830
    %v2959 = vpack.c.b16 %v2847, %v2831
    %v2960 = vpack.c.b16 %v2848, %v2832
    %v2961 = vpack.c.b16 %v2849, %v2833
    %v2962 = vpack.c.b16 %v2850, %v2834
    %v2963 = vpack.c.b16 %v2851, %v2835
    %v2964 = vpack.c.b16 %v2852, %v2836
    %v2965 = vpack.c.b16 %v2853, %v2837
    %v2966 = vpack.c.b16 %v2854, %v2838
    %v2967 = vpack.c.b16 %v2855, %v2839
    %v2968 = vpack.c.b16 %v2856, %v2840
    %v2969 = vpack.c.b16 %v2857, %v2841
    %v2970 = vpack.c.b16 %v2858, %v2842
    %v2971 = vpack.c.b16 %v2859, %v2843
    %v2972 = vpack.c.b16 %v2876, %v2860
    %v2973 = vpack.c.b16 %v2877, %v2861
    %v2974 = vpack.c.b16 %v2878, %v2862
    %v2975 = vpack.c.b16 %v2879, %v2863
    %v2976 = vpack.c.b16 %v2880, %v2864
    %v2977 = vpack.c.b16 %v2881, %v2865
    %v2978 = vpack.c.b16 %v2882, %v2866
    %v2979 = vpack.c.b16 %v2883, %v2867
    %v2980 = vpack.c.b16 %v2884, %v2868
    %v2981 = vpack.c.b16 %v2885, %v2869
    %v2982 = vpack.c.b16 %v2886, %v2870
    %v2983 = vpack.c.b16 %v2887, %v2871
    %v2984 = vpack.c.b16 %v2888, %v2872
    %v2985 = vpack.c.b16 %v2889, %v2873
    %v2986 = vpack.c.b16 %v2890, %v2874
    %v2987 = vpack.c.b16 %v2891, %v2875
    %v2988 = vpack.c.b16 %v2908, %v2892
    %v2989 = vpack.c.b16 %v2909, %v2893
    %v2990 = vpack.c.b16 %v2910, %v2894
    %v2991 = vpack.c.b16 %v2911, %v2895
    %v2992 = vpack.c.b16 %v2912, %v2896
    %v2993 = vpack.c.b16 %v2913, %v2897
    %v2994 = vpack.c.b16 %v2914, %v2898
    %v2995 = vpack.c.b16 %v2915, %v2899
    %v2996 = vpack.c.b16 %v2916, %v2900
    %v2997 = vpack.c.b16 %v2917, %v2901
    %v2998 = vpack.c.b16 %v2918, %v2902
    %v2999 = vpack.c.b16 %v2919, %v2903
    %v3000 = vpack.c.b16 %v2920, %v2904
    %v3001 = vpack.c.b16 %v2921, %v2905
    %v3002 = vpack.c.b16 %v2922, %v2906
    %v3003 = vpack.c.b16 %v2923, %v2907
    %v3004 = vpack.c.b16 %v2940, %v2924
    %v3005 = vpack.c.b16 %v2941, %v2925
    %v3006 = vpack.c.b16 %v2942, %v2926
    %v3007 = vpack.c.b16 %v2943, %v2927
    %v3008 = vpack.c.b16 %v2944, %v2928
    %v3009 = vpack.c.b16 %v2945, %v2929
    %v3010 = vpack.c.b16 %v2946, %v2930
    %v3011 = vpack.c.b16 %v2947, %v2931
    %v3012 = vpack.c.b16 %v2948, %v2932
    %v3013 = vpack.c.b16 %v2949, %v2933
    %v3014 = vpack.c.b16 %v2950, %v2934
    %v3015 = vpack.c.b16 %v2951, %v2935
    %v3016 = vpack.c.b16 %v2952, %v2936
    %v3017 = vpack.c.b16 %v2953, %v2937
    %v3018 = vpack.c.b16 %v2954, %v2938
    %v3019 = vpack.c.b16 %v2955, %v2939
    %v3085 = vsel %vm1451, %v2663, 0
    %3087 = vmatpush.bf16.msra.mxu0 0
    %3088 = vmatpush.bf16.msra.mxu0 0
    %3089 = vmatpush.bf16.msra.mxu0 0
    %3090 = vmatpush.bf16.msra.mxu0 0
    %3091 = vmatpush.bf16.msra.mxu0 %v3004
    %3092 = vmatpush.bf16.msra.mxu0 %v2988
    %3093 = vmatpush.bf16.msra.mxu0 %v2972
    %3094 = vmatpush.bf16.msra.mxu0 %v2956
    %3095 = vmatmul.bf16.gmra.mxu0 %v3085
    %v3096 = vpop.f32.mrf.mxu0
    %v3097 = vadd.f32 %v2732, %v3096
    %v3098 = vpop.f32.mrf.mxu0
    %v3099 = vadd.f32 %v2732, %v3098
    %3100 = vdwg.mxu0
    %3101 = vmatpush.bf16.msra.mxu0 0
    %3102 = vmatpush.bf16.msra.mxu0 0
    %3103 = vmatpush.bf16.msra.mxu0 0
    %3104 = vmatpush.bf16.msra.mxu0 0
    %3105 = vmatpush.bf16.msra.mxu0 %v3005
    %3106 = vmatpush.bf16.msra.mxu0 %v2989
    %3107 = vmatpush.bf16.msra.mxu0 %v2973
    %3108 = vmatpush.bf16.msra.mxu0 %v2957
    %3109 = vmatmul.bf16.gmra.mxu0 %v3085
    %v3110 = vpop.f32.mrf.mxu0
    %v3111 = vadd.f32 %v2733, %v3110
    %v3112 = vpop.f32.mrf.mxu0
    %v3113 = vadd.f32 %v2733, %v3112
    %3114 = vdwg.mxu0
    %3115 = vmatpush.bf16.msra.mxu0 0
    %3116 = vmatpush.bf16.msra.mxu0 0
    %3117 = vmatpush.bf16.msra.mxu0 0
    %3118 = vmatpush.bf16.msra.mxu0 0
    %3119 = vmatpush.bf16.msra.mxu0 %v3006
    %3120 = vmatpush.bf16.msra.mxu0 %v2990
    %3121 = vmatpush.bf16.msra.mxu0 %v2974
    %3122 = vmatpush.bf16.msra.mxu0 %v2958
    %3123 = vmatmul.bf16.gmra.mxu0 %v3085
    %v3124 = vpop.f32.mrf.mxu0
    %v3125 = vadd.f32 %v2734, %v3124
    %v3126 = vpop.f32.mrf.mxu0
    %v3127 = vadd.f32 %v2734, %v3126
    %3128 = vdwg.mxu0
    %3129 = vmatpush.bf16.msra.mxu0 0
    %3130 = vmatpush.bf16.msra.mxu0 0
    %3131 = vmatpush.bf16.msra.mxu0 0
    %3132 = vmatpush.bf16.msra.mxu0 0
    %3133 = vmatpush.bf16.msra.mxu0 %v3007
    %3134 = vmatpush.bf16.msra.mxu0 %v2991
    %3135 = vmatpush.bf16.msra.mxu0 %v2975
    %3136 = vmatpush.bf16.msra.mxu0 %v2959
    %3137 = vmatmul.bf16.gmra.mxu0 %v3085
    %v3138 = vpop.f32.mrf.mxu0
    %v3139 = vadd.f32 %v2735, %v3138
    %v3140 = vpop.f32.mrf.mxu0
    %v3141 = vadd.f32 %v2735, %v3140
    %3142 = vdwg.mxu0
    %3143 = vmatpush.bf16.msra.mxu0 0
    %3144 = vmatpush.bf16.msra.mxu0 0
    %3145 = vmatpush.bf16.msra.mxu0 0
    %3146 = vmatpush.bf16.msra.mxu0 0
    %3147 = vmatpush.bf16.msra.mxu0 %v3008
    %3148 = vmatpush.bf16.msra.mxu0 %v2992
    %3149 = vmatpush.bf16.msra.mxu0 %v2976
    %3150 = vmatpush.bf16.msra.mxu0 %v2960
    %3151 = vmatmul.bf16.gmra.mxu0 %v3085
    %v3152 = vpop.f32.mrf.mxu0
    %v3153 = vadd.f32 %v2736, %v3152
    %v3154 = vpop.f32.mrf.mxu0
    %v3155 = vadd.f32 %v2736, %v3154
    %3156 = vdwg.mxu0
    %3157 = vmatpush.bf16.msra.mxu0 0
    %3158 = vmatpush.bf16.msra.mxu0 0
    %3159 = vmatpush.bf16.msra.mxu0 0
    %3160 = vmatpush.bf16.msra.mxu0 0
    %3161 = vmatpush.bf16.msra.mxu0 %v3009
    %3162 = vmatpush.bf16.msra.mxu0 %v2993
    %3163 = vmatpush.bf16.msra.mxu0 %v2977
    %3164 = vmatpush.bf16.msra.mxu0 %v2961
    %3165 = vmatmul.bf16.gmra.mxu0 %v3085
    %v3166 = vpop.f32.mrf.mxu0
    %v3167 = vadd.f32 %v2737, %v3166
    %v3168 = vpop.f32.mrf.mxu0
    %v3169 = vadd.f32 %v2737, %v3168
    %3170 = vdwg.mxu0
    %3171 = vmatpush.bf16.msra.mxu0 0
    %3172 = vmatpush.bf16.msra.mxu0 0
    %3173 = vmatpush.bf16.msra.mxu0 0
    %3174 = vmatpush.bf16.msra.mxu0 0
    %3175 = vmatpush.bf16.msra.mxu0 %v3010
    %3176 = vmatpush.bf16.msra.mxu0 %v2994
    %3177 = vmatpush.bf16.msra.mxu0 %v2978
    %3178 = vmatpush.bf16.msra.mxu0 %v2962
    %3179 = vmatmul.bf16.gmra.mxu0 %v3085
    %v3180 = vpop.f32.mrf.mxu0
    %v3181 = vadd.f32 %v2738, %v3180
    %v3182 = vpop.f32.mrf.mxu0
    %v3183 = vadd.f32 %v2738, %v3182
    %3184 = vdwg.mxu0
    %3185 = vmatpush.bf16.msra.mxu0 0
    %3186 = vmatpush.bf16.msra.mxu0 0
    %3187 = vmatpush.bf16.msra.mxu0 0
    %3188 = vmatpush.bf16.msra.mxu0 0
    %3189 = vmatpush.bf16.msra.mxu0 %v3011
    %3190 = vmatpush.bf16.msra.mxu0 %v2995
    %3191 = vmatpush.bf16.msra.mxu0 %v2979
    %3192 = vmatpush.bf16.msra.mxu0 %v2963
    %3193 = vmatmul.bf16.gmra.mxu0 %v3085
    %v3194 = vpop.f32.mrf.mxu0
    %v3195 = vadd.f32 %v2739, %v3194
    %v3196 = vpop.f32.mrf.mxu0
    %v3197 = vadd.f32 %v2739, %v3196
    %3198 = vdwg.mxu0
    %3199 = vmatpush.bf16.msra.mxu0 0
    %3200 = vmatpush.bf16.msra.mxu0 0
    %3201 = vmatpush.bf16.msra.mxu0 0
    %3202 = vmatpush.bf16.msra.mxu0 0
    %3203 = vmatpush.bf16.msra.mxu0 %v3012
    %3204 = vmatpush.bf16.msra.mxu0 %v2996
    %3205 = vmatpush.bf16.msra.mxu0 %v2980
    %3206 = vmatpush.bf16.msra.mxu0 %v2964
    %3207 = vmatmul.bf16.gmra.mxu0 %v3085
    %v3208 = vpop.f32.mrf.mxu0
    %v3209 = vadd.f32 %v2740, %v3208
    %v3210 = vpop.f32.mrf.mxu0
    %v3211 = vadd.f32 %v2740, %v3210
    %3212 = vdwg.mxu0
    %3213 = vmatpush.bf16.msra.mxu0 0
    %3214 = vmatpush.bf16.msra.mxu0 0
    %3215 = vmatpush.bf16.msra.mxu0 0
    %3216 = vmatpush.bf16.msra.mxu0 0
    %3217 = vmatpush.bf16.msra.mxu0 %v3013
    %3218 = vmatpush.bf16.msra.mxu0 %v2997
    %3219 = vmatpush.bf16.msra.mxu0 %v2981
    %3220 = vmatpush.bf16.msra.mxu0 %v2965
    %3221 = vmatmul.bf16.gmra.mxu0 %v3085
    %v3222 = vpop.f32.mrf.mxu0
    %v3223 = vadd.f32 %v2741, %v3222
    %v3224 = vpop.f32.mrf.mxu0
    %v3225 = vadd.f32 %v2741, %v3224
    %3226 = vdwg.mxu0
    %3227 = vmatpush.bf16.msra.mxu0 0
    %3228 = vmatpush.bf16.msra.mxu0 0
    %3229 = vmatpush.bf16.msra.mxu0 0
    %3230 = vmatpush.bf16.msra.mxu0 0
    %3231 = vmatpush.bf16.msra.mxu0 %v3014
    %3232 = vmatpush.bf16.msra.mxu0 %v2998
    %3233 = vmatpush.bf16.msra.mxu0 %v2982
    %3234 = vmatpush.bf16.msra.mxu0 %v2966
    %3235 = vmatmul.bf16.gmra.mxu0 %v3085
    %v3236 = vpop.f32.mrf.mxu0
    %v3237 = vadd.f32 %v2742, %v3236
    %v3238 = vpop.f32.mrf.mxu0
    %v3239 = vadd.f32 %v2742, %v3238
    %3240 = vdwg.mxu0
    %3241 = vmatpush.bf16.msra.mxu0 0
    %3242 = vmatpush.bf16.msra.mxu0 0
    %3243 = vmatpush.bf16.msra.mxu0 0
    %3244 = vmatpush.bf16.msra.mxu0 0
    %3245 = vmatpush.bf16.msra.mxu0 %v3015
    %3246 = vmatpush.bf16.msra.mxu0 %v2999
    %3247 = vmatpush.bf16.msra.mxu0 %v2983
    %3248 = vmatpush.bf16.msra.mxu0 %v2967
    %3249 = vmatmul.bf16.gmra.mxu0 %v3085
    %v3250 = vpop.f32.mrf.mxu0
    %v3251 = vadd.f32 %v2743, %v3250
    %v3252 = vpop.f32.mrf.mxu0
    %v3253 = vadd.f32 %v2743, %v3252
    %3254 = vdwg.mxu0
    %3255 = vmatpush.bf16.msra.mxu0 0
    %3256 = vmatpush.bf16.msra.mxu0 0
    %3257 = vmatpush.bf16.msra.mxu0 0
    %3258 = vmatpush.bf16.msra.mxu0 0
    %3259 = vmatpush.bf16.msra.mxu0 %v3016
    %3260 = vmatpush.bf16.msra.mxu0 %v3000
    %3261 = vmatpush.bf16.msra.mxu0 %v2984
    %3262 = vmatpush.bf16.msra.mxu0 %v2968
    %3263 = vmatmul.bf16.gmra.mxu0 %v3085
    %v3264 = vpop.f32.mrf.mxu0
    %v3265 = vadd.f32 %v2744, %v3264
    %v3266 = vpop.f32.mrf.mxu0
    %v3267 = vadd.f32 %v2744, %v3266
    %3268 = vdwg.mxu0
    %3269 = vmatpush.bf16.msra.mxu0 0
    %3270 = vmatpush.bf16.msra.mxu0 0
    %3271 = vmatpush.bf16.msra.mxu0 0
    %3272 = vmatpush.bf16.msra.mxu0 0
    %3273 = vmatpush.bf16.msra.mxu0 %v3017
    %3274 = vmatpush.bf16.msra.mxu0 %v3001
    %3275 = vmatpush.bf16.msra.mxu0 %v2985
    %3276 = vmatpush.bf16.msra.mxu0 %v2969
    %3277 = vmatmul.bf16.gmra.mxu0 %v3085
    %v3278 = vpop.f32.mrf.mxu0
    %v3279 = vadd.f32 %v2745, %v3278
    %v3280 = vpop.f32.mrf.mxu0
    %v3281 = vadd.f32 %v2745, %v3280
    %3282 = vdwg.mxu0
    %3283 = vmatpush.bf16.msra.mxu0 0
    %3284 = vmatpush.bf16.msra.mxu0 0
    %3285 = vmatpush.bf16.msra.mxu0 0
    %3286 = vmatpush.bf16.msra.mxu0 0
    %3287 = vmatpush.bf16.msra.mxu0 %v3018
    %3288 = vmatpush.bf16.msra.mxu0 %v3002
    %3289 = vmatpush.bf16.msra.mxu0 %v2986
    %3290 = vmatpush.bf16.msra.mxu0 %v2970
    %3291 = vmatmul.bf16.gmra.mxu0 %v3085
    %v3292 = vpop.f32.mrf.mxu0
    %v3293 = vadd.f32 %v2746, %v3292
    %v3294 = vpop.f32.mrf.mxu0
    %v3295 = vadd.f32 %v2746, %v3294
    %3296 = vdwg.mxu0
    %3297 = vmatpush.bf16.msra.mxu0 0
    %3298 = vmatpush.bf16.msra.mxu0 0
    %3299 = vmatpush.bf16.msra.mxu0 0
    %3300 = vmatpush.bf16.msra.mxu0 0
    %3301 = vmatpush.bf16.msra.mxu0 %v3019
    %3302 = vmatpush.bf16.msra.mxu0 %v3003
    %3303 = vmatpush.bf16.msra.mxu0 %v2987
    %3304 = vmatpush.bf16.msra.mxu0 %v2971
    %3305 = vmatmul.bf16.gmra.mxu0 %v3085
    %v3306 = vpop.f32.mrf.mxu0
    %v3307 = vadd.f32 %v2747, %v3306
    %v3308 = vpop.f32.mrf.mxu0
    %v3309 = vadd.f32 %v2747, %v3308
    %3310 = vdwg.mxu0
    %v3311 = vmax.f32 %v3097, 0.0
    %v3312 = vmax.f32 %v3111, 0.0
    %v3313 = vmax.f32 %v3125, 0.0
    %v3314 = vmax.f32 %v3139, 0.0
    %v3315 = vmax.f32 %v3153, 0.0
    %v3316 = vmax.f32 %v3167, 0.0
    %v3317 = vmax.f32 %v3181, 0.0
    %v3318 = vmax.f32 %v3195, 0.0
    %v3319 = vmax.f32 %v3209, 0.0
    %v3320 = vmax.f32 %v3223, 0.0
    %v3321 = vmax.f32 %v3237, 0.0
    %v3322 = vmax.f32 %v3251, 0.0
    %v3323 = vmax.f32 %v3265, 0.0
    %v3324 = vmax.f32 %v3279, 0.0
    %v3325 = vmax.f32 %v3293, 0.0
    %v3326 = vmax.f32 %v3307, 0.0
    %v3327 = vmax.f32 %v3099, 0.0
    %v3328 = vmax.f32 %v3113, 0.0
    %v3329 = vmax.f32 %v3127, 0.0
    %v3330 = vmax.f32 %v3141, 0.0
    %v3331 = vmax.f32 %v3155, 0.0
    %v3332 = vmax.f32 %v3169, 0.0
    %v3333 = vmax.f32 %v3183, 0.0
    %v3334 = vmax.f32 %v3197, 0.0
    %v3335 = vmax.f32 %v3211, 0.0
    %v3336 = vmax.f32 %v3225, 0.0
    %v3337 = vmax.f32 %v3239, 0.0
    %v3338 = vmax.f32 %v3253, 0.0
    %v3339 = vmax.f32 %v3267, 0.0
    %v3340 = vmax.f32 %v3281, 0.0
    %v3341 = vmax.f32 %v3295, 0.0
    %v3342 = vmax.f32 %v3309, 0.0
    %s3343 = smul.u32 4, 256
    %s3344 = smul.u32 %s3343, 1
    %s3345 = sshll.u32 %s3344, 4
    %3346 = dma.done %s624, %s3345
    %v3347 = vpack.c.bf16 %v3327, %v3311
    %v3348 = vpack.c.bf16 %v3328, %v3312
    %v3349 = vpack.c.bf16 %v3329, %v3313
    %v3350 = vpack.c.bf16 %v3330, %v3314
    %v3351 = vpack.c.bf16 %v3331, %v3315
    %v3352 = vpack.c.bf16 %v3332, %v3316
    %v3353 = vpack.c.bf16 %v3333, %v3317
    %v3354 = vpack.c.bf16 %v3334, %v3318
    %v3355 = vpack.c.bf16 %v3335, %v3319
    %v3356 = vpack.c.bf16 %v3336, %v3320
    %v3357 = vpack.c.bf16 %v3337, %v3321
    %v3358 = vpack.c.bf16 %v3338, %v3322
    %v3359 = vpack.c.bf16 %v3339, %v3323
    %v3360 = vpack.c.bf16 %v3340, %v3324
    %v3361 = vpack.c.bf16 %v3341, %v3325
    %v3362 = vpack.c.bf16 %v3342, %v3326
    %v3363 = vld [vmem:[#allocation3] sm:$0xf]
    %v3364 = vld [vmem:[#allocation3 + $0x4] sm:$0xf]
    %v3365 = vld [vmem:[#allocation3 + $0x8] sm:$0xf]
    %v3366 = vld [vmem:[#allocation3 + $0xc] sm:$0xf]
    %v3367 = vld [vmem:[#allocation3 + $0x10] sm:$0xf]
    %v3368 = vld [vmem:[#allocation3 + $0x14] sm:$0xf]
    %v3369 = vld [vmem:[#allocation3 + $0x18] sm:$0xf]
    %v3370 = vld [vmem:[#allocation3 + $0x1c] sm:$0xf]
    %v3371 = vld [vmem:[#allocation3 + $0x20] sm:$0xf]
    %v3372 = vld [vmem:[#allocation3 + $0x24] sm:$0xf]
    %v3373 = vld [vmem:[#allocation3 + $0x28] sm:$0xf]
    %v3374 = vld [vmem:[#allocation3 + $0x2c] sm:$0xf]
    %v3375 = vld [vmem:[#allocation3 + $0x30] sm:$0xf]
    %v3376 = vld [vmem:[#allocation3 + $0x34] sm:$0xf]
    %v3377 = vld [vmem:[#allocation3 + $0x38] sm:$0xf]
    %v3378 = vld [vmem:[#allocation3 + $0x3c] sm:$0xf]
    %v3379 = vld [vmem:[#allocation3 + $0x40] sm:$0xf]
    %v3380 = vld [vmem:[#allocation3 + $0x44] sm:$0xf]
    %v3381 = vld [vmem:[#allocation3 + $0x48] sm:$0xf]
    %v3382 = vld [vmem:[#allocation3 + $0x4c] sm:$0xf]
    %v3383 = vld [vmem:[#allocation3 + $0x50] sm:$0xf]
    %v3384 = vld [vmem:[#allocation3 + $0x54] sm:$0xf]
    %v3385 = vld [vmem:[#allocation3 + $0x58] sm:$0xf]
    %v3386 = vld [vmem:[#allocation3 + $0x5c] sm:$0xf]
    %v3387 = vld [vmem:[#allocation3 + $0x60] sm:$0xf]
    %v3388 = vld [vmem:[#allocation3 + $0x64] sm:$0xf]
    %v3389 = vld [vmem:[#allocation3 + $0x68] sm:$0xf]
    %v3390 = vld [vmem:[#allocation3 + $0x6c] sm:$0xf]
    %v3391 = vld [vmem:[#allocation3 + $0x70] sm:$0xf]
    %v3392 = vld [vmem:[#allocation3 + $0x74] sm:$0xf]
    %v3393 = vld [vmem:[#allocation3 + $0x78] sm:$0xf]
    %v3394 = vld [vmem:[#allocation3 + $0x7c] sm:$0xf]
    %v3395 = vld [vmem:[#allocation3 + $0x80] sm:$0xf]
    %v3396 = vld [vmem:[#allocation3 + $0x84] sm:$0xf]
    %v3397 = vld [vmem:[#allocation3 + $0x88] sm:$0xf]
    %v3398 = vld [vmem:[#allocation3 + $0x8c] sm:$0xf]
    %v3399 = vld [vmem:[#allocation3 + $0x90] sm:$0xf]
    %v3400 = vld [vmem:[#allocation3 + $0x94] sm:$0xf]
    %v3401 = vld [vmem:[#allocation3 + $0x98] sm:$0xf]
    %v3402 = vld [vmem:[#allocation3 + $0x9c] sm:$0xf]
    %v3403 = vld [vmem:[#allocation3 + $0xa0] sm:$0xf]
    %v3404 = vld [vmem:[#allocation3 + $0xa4] sm:$0xf]
    %v3405 = vld [vmem:[#allocation3 + $0xa8] sm:$0xf]
    %v3406 = vld [vmem:[#allocation3 + $0xac] sm:$0xf]
    %v3407 = vld [vmem:[#allocation3 + $0xb0] sm:$0xf]
    %v3408 = vld [vmem:[#allocation3 + $0xb4] sm:$0xf]
    %v3409 = vld [vmem:[#allocation3 + $0xb8] sm:$0xf]
    %v3410 = vld [vmem:[#allocation3 + $0xbc] sm:$0xf]
    %v3411 = vld [vmem:[#allocation3 + $0xc0] sm:$0xf]
    %v3412 = vld [vmem:[#allocation3 + $0xc4] sm:$0xf]
    %v3413 = vld [vmem:[#allocation3 + $0xc8] sm:$0xf]
    %v3414 = vld [vmem:[#allocation3 + $0xcc] sm:$0xf]
    %v3415 = vld [vmem:[#allocation3 + $0xd0] sm:$0xf]
    %v3416 = vld [vmem:[#allocation3 + $0xd4] sm:$0xf]
    %v3417 = vld [vmem:[#allocation3 + $0xd8] sm:$0xf]
    %v3418 = vld [vmem:[#allocation3 + $0xdc] sm:$0xf]
    %v3419 = vld [vmem:[#allocation3 + $0xe0] sm:$0xf]
    %v3420 = vld [vmem:[#allocation3 + $0xe4] sm:$0xf]
    %v3421 = vld [vmem:[#allocation3 + $0xe8] sm:$0xf]
    %v3422 = vld [vmem:[#allocation3 + $0xec] sm:$0xf]
    %v3423 = vld [vmem:[#allocation3 + $0xf0] sm:$0xf]
    %v3424 = vld [vmem:[#allocation3 + $0xf4] sm:$0xf]
    %v3425 = vld [vmem:[#allocation3 + $0xf8] sm:$0xf]
    %v3426 = vld [vmem:[#allocation3 + $0xfc] sm:$0xf]
    %v3427 = vld [vmem:[#allocation3 + $0x100] sm:$0xf]
    %v3428 = vld [vmem:[#allocation3 + $0x104] sm:$0xf]
    %v3429 = vld [vmem:[#allocation3 + $0x108] sm:$0xf]
    %v3430 = vld [vmem:[#allocation3 + $0x10c] sm:$0xf]
    %v3431 = vld [vmem:[#allocation3 + $0x110] sm:$0xf]
    %v3432 = vld [vmem:[#allocation3 + $0x114] sm:$0xf]
    %v3433 = vld [vmem:[#allocation3 + $0x118] sm:$0xf]
    %v3434 = vld [vmem:[#allocation3 + $0x11c] sm:$0xf]
    %v3435 = vld [vmem:[#allocation3 + $0x120] sm:$0xf]
    %v3436 = vld [vmem:[#allocation3 + $0x124] sm:$0xf]
    %v3437 = vld [vmem:[#allocation3 + $0x128] sm:$0xf]
    %v3438 = vld [vmem:[#allocation3 + $0x12c] sm:$0xf]
    %v3439 = vld [vmem:[#allocation3 + $0x130] sm:$0xf]
    %v3440 = vld [vmem:[#allocation3 + $0x134] sm:$0xf]
    %v3441 = vld [vmem:[#allocation3 + $0x138] sm:$0xf]
    %v3442 = vld [vmem:[#allocation3 + $0x13c] sm:$0xf]
    %v3443 = vld [vmem:[#allocation3 + $0x140] sm:$0xf]
    %v3444 = vld [vmem:[#allocation3 + $0x144] sm:$0xf]
    %v3445 = vld [vmem:[#allocation3 + $0x148] sm:$0xf]
    %v3446 = vld [vmem:[#allocation3 + $0x14c] sm:$0xf]
    %v3447 = vld [vmem:[#allocation3 + $0x150] sm:$0xf]
    %v3448 = vld [vmem:[#allocation3 + $0x154] sm:$0xf]
    %v3449 = vld [vmem:[#allocation3 + $0x158] sm:$0xf]
    %v3450 = vld [vmem:[#allocation3 + $0x15c] sm:$0xf]
    %v3451 = vld [vmem:[#allocation3 + $0x160] sm:$0xf]
    %v3452 = vld [vmem:[#allocation3 + $0x164] sm:$0xf]
    %v3453 = vld [vmem:[#allocation3 + $0x168] sm:$0xf]
    %v3454 = vld [vmem:[#allocation3 + $0x16c] sm:$0xf]
    %v3455 = vld [vmem:[#allocation3 + $0x170] sm:$0xf]
    %v3456 = vld [vmem:[#allocation3 + $0x174] sm:$0xf]
    %v3457 = vld [vmem:[#allocation3 + $0x178] sm:$0xf]
    %v3458 = vld [vmem:[#allocation3 + $0x17c] sm:$0xf]
    %v3459 = vld [vmem:[#allocation3 + $0x180] sm:$0xf]
    %v3460 = vld [vmem:[#allocation3 + $0x184] sm:$0xf]
    %v3461 = vld [vmem:[#allocation3 + $0x188] sm:$0xf]
    %v3462 = vld [vmem:[#allocation3 + $0x18c] sm:$0xf]
    %v3463 = vld [vmem:[#allocation3 + $0x190] sm:$0xf]
    %v3464 = vld [vmem:[#allocation3 + $0x194] sm:$0xf]
    %v3465 = vld [vmem:[#allocation3 + $0x198] sm:$0xf]
    %v3466 = vld [vmem:[#allocation3 + $0x19c] sm:$0xf]
    %v3467 = vld [vmem:[#allocation3 + $0x1a0] sm:$0xf]
    %v3468 = vld [vmem:[#allocation3 + $0x1a4] sm:$0xf]
    %v3469 = vld [vmem:[#allocation3 + $0x1a8] sm:$0xf]
    %v3470 = vld [vmem:[#allocation3 + $0x1ac] sm:$0xf]
    %v3471 = vld [vmem:[#allocation3 + $0x1b0] sm:$0xf]
    %v3472 = vld [vmem:[#allocation3 + $0x1b4] sm:$0xf]
    %v3473 = vld [vmem:[#allocation3 + $0x1b8] sm:$0xf]
    %v3474 = vld [vmem:[#allocation3 + $0x1bc] sm:$0xf]
    %v3475 = vld [vmem:[#allocation3 + $0x1c0] sm:$0xf]
    %v3476 = vld [vmem:[#allocation3 + $0x1c4] sm:$0xf]
    %v3477 = vld [vmem:[#allocation3 + $0x1c8] sm:$0xf]
    %v3478 = vld [vmem:[#allocation3 + $0x1cc] sm:$0xf]
    %v3479 = vld [vmem:[#allocation3 + $0x1d0] sm:$0xf]
    %v3480 = vld [vmem:[#allocation3 + $0x1d4] sm:$0xf]
    %v3481 = vld [vmem:[#allocation3 + $0x1d8] sm:$0xf]
    %v3482 = vld [vmem:[#allocation3 + $0x1dc] sm:$0xf]
    %v3483 = vld [vmem:[#allocation3 + $0x1e0] sm:$0xf]
    %v3484 = vld [vmem:[#allocation3 + $0x1e4] sm:$0xf]
    %v3485 = vld [vmem:[#allocation3 + $0x1e8] sm:$0xf]
    %v3486 = vld [vmem:[#allocation3 + $0x1ec] sm:$0xf]
    %v3487 = vld [vmem:[#allocation3 + $0x1f0] sm:$0xf]
    %v3488 = vld [vmem:[#allocation3 + $0x1f4] sm:$0xf]
    %v3489 = vld [vmem:[#allocation3 + $0x1f8] sm:$0xf]
    %v3490 = vld [vmem:[#allocation3 + $0x1fc] sm:$0xf]
    %v3491 = vld [vmem:[#allocation3 + $0x200] sm:$0xf]
    %v3492 = vld [vmem:[#allocation3 + $0x204] sm:$0xf]
    %v3493 = vld [vmem:[#allocation3 + $0x208] sm:$0xf]
    %v3494 = vld [vmem:[#allocation3 + $0x20c] sm:$0xf]
    %v3495 = vld [vmem:[#allocation3 + $0x210] sm:$0xf]
    %v3496 = vld [vmem:[#allocation3 + $0x214] sm:$0xf]
    %v3497 = vld [vmem:[#allocation3 + $0x218] sm:$0xf]
    %v3498 = vld [vmem:[#allocation3 + $0x21c] sm:$0xf]
    %v3499 = vld [vmem:[#allocation3 + $0x220] sm:$0xf]
    %v3500 = vld [vmem:[#allocation3 + $0x224] sm:$0xf]
    %v3501 = vld [vmem:[#allocation3 + $0x228] sm:$0xf]
    %v3502 = vld [vmem:[#allocation3 + $0x22c] sm:$0xf]
    %v3503 = vld [vmem:[#allocation3 + $0x230] sm:$0xf]
    %v3504 = vld [vmem:[#allocation3 + $0x234] sm:$0xf]
    %v3505 = vld [vmem:[#allocation3 + $0x238] sm:$0xf]
    %v3506 = vld [vmem:[#allocation3 + $0x23c] sm:$0xf]
    %v3507 = vld [vmem:[#allocation3 + $0x240] sm:$0xf]
    %v3508 = vld [vmem:[#allocation3 + $0x244] sm:$0xf]
    %v3509 = vld [vmem:[#allocation3 + $0x248] sm:$0xf]
    %v3510 = vld [vmem:[#allocation3 + $0x24c] sm:$0xf]
    %v3511 = vld [vmem:[#allocation3 + $0x250] sm:$0xf]
    %v3512 = vld [vmem:[#allocation3 + $0x254] sm:$0xf]
    %v3513 = vld [vmem:[#allocation3 + $0x258] sm:$0xf]
    %v3514 = vld [vmem:[#allocation3 + $0x25c] sm:$0xf]
    %v3515 = vld [vmem:[#allocation3 + $0x260] sm:$0xf]
    %v3516 = vld [vmem:[#allocation3 + $0x264] sm:$0xf]
    %v3517 = vld [vmem:[#allocation3 + $0x268] sm:$0xf]
    %v3518 = vld [vmem:[#allocation3 + $0x26c] sm:$0xf]
    %v3519 = vld [vmem:[#allocation3 + $0x270] sm:$0xf]
    %v3520 = vld [vmem:[#allocation3 + $0x274] sm:$0xf]
    %v3521 = vld [vmem:[#allocation3 + $0x278] sm:$0xf]
    %v3522 = vld [vmem:[#allocation3 + $0x27c] sm:$0xf]
    %v3523 = vld [vmem:[#allocation3 + $0x280] sm:$0xf]
    %v3524 = vld [vmem:[#allocation3 + $0x284] sm:$0xf]
    %v3525 = vld [vmem:[#allocation3 + $0x288] sm:$0xf]
    %v3526 = vld [vmem:[#allocation3 + $0x28c] sm:$0xf]
    %v3527 = vld [vmem:[#allocation3 + $0x290] sm:$0xf]
    %v3528 = vld [vmem:[#allocation3 + $0x294] sm:$0xf]
    %v3529 = vld [vmem:[#allocation3 + $0x298] sm:$0xf]
    %v3530 = vld [vmem:[#allocation3 + $0x29c] sm:$0xf]
    %v3531 = vld [vmem:[#allocation3 + $0x2a0] sm:$0xf]
    %v3532 = vld [vmem:[#allocation3 + $0x2a4] sm:$0xf]
    %v3533 = vld [vmem:[#allocation3 + $0x2a8] sm:$0xf]
    %v3534 = vld [vmem:[#allocation3 + $0x2ac] sm:$0xf]
    %v3535 = vld [vmem:[#allocation3 + $0x2b0] sm:$0xf]
    %v3536 = vld [vmem:[#allocation3 + $0x2b4] sm:$0xf]
    %v3537 = vld [vmem:[#allocation3 + $0x2b8] sm:$0xf]
    %v3538 = vld [vmem:[#allocation3 + $0x2bc] sm:$0xf]
    %v3539 = vld [vmem:[#allocation3 + $0x2c0] sm:$0xf]
    %v3540 = vld [vmem:[#allocation3 + $0x2c4] sm:$0xf]
    %v3541 = vld [vmem:[#allocation3 + $0x2c8] sm:$0xf]
    %v3542 = vld [vmem:[#allocation3 + $0x2cc] sm:$0xf]
    %v3543 = vld [vmem:[#allocation3 + $0x2d0] sm:$0xf]
    %v3544 = vld [vmem:[#allocation3 + $0x2d4] sm:$0xf]
    %v3545 = vld [vmem:[#allocation3 + $0x2d8] sm:$0xf]
    %v3546 = vld [vmem:[#allocation3 + $0x2dc] sm:$0xf]
    %v3547 = vld [vmem:[#allocation3 + $0x2e0] sm:$0xf]
    %v3548 = vld [vmem:[#allocation3 + $0x2e4] sm:$0xf]
    %v3549 = vld [vmem:[#allocation3 + $0x2e8] sm:$0xf]
    %v3550 = vld [vmem:[#allocation3 + $0x2ec] sm:$0xf]
    %v3551 = vld [vmem:[#allocation3 + $0x2f0] sm:$0xf]
    %v3552 = vld [vmem:[#allocation3 + $0x2f4] sm:$0xf]
    %v3553 = vld [vmem:[#allocation3 + $0x2f8] sm:$0xf]
    %v3554 = vld [vmem:[#allocation3 + $0x2fc] sm:$0xf]
    %v3555 = vld [vmem:[#allocation3 + $0x300] sm:$0xf]
    %v3556 = vld [vmem:[#allocation3 + $0x304] sm:$0xf]
    %v3557 = vld [vmem:[#allocation3 + $0x308] sm:$0xf]
    %v3558 = vld [vmem:[#allocation3 + $0x30c] sm:$0xf]
    %v3559 = vld [vmem:[#allocation3 + $0x310] sm:$0xf]
    %v3560 = vld [vmem:[#allocation3 + $0x314] sm:$0xf]
    %v3561 = vld [vmem:[#allocation3 + $0x318] sm:$0xf]
    %v3562 = vld [vmem:[#allocation3 + $0x31c] sm:$0xf]
    %v3563 = vld [vmem:[#allocation3 + $0x320] sm:$0xf]
    %v3564 = vld [vmem:[#allocation3 + $0x324] sm:$0xf]
    %v3565 = vld [vmem:[#allocation3 + $0x328] sm:$0xf]
    %v3566 = vld [vmem:[#allocation3 + $0x32c] sm:$0xf]
    %v3567 = vld [vmem:[#allocation3 + $0x330] sm:$0xf]
    %v3568 = vld [vmem:[#allocation3 + $0x334] sm:$0xf]
    %v3569 = vld [vmem:[#allocation3 + $0x338] sm:$0xf]
    %v3570 = vld [vmem:[#allocation3 + $0x33c] sm:$0xf]
    %v3571 = vld [vmem:[#allocation3 + $0x340] sm:$0xf]
    %v3572 = vld [vmem:[#allocation3 + $0x344] sm:$0xf]
    %v3573 = vld [vmem:[#allocation3 + $0x348] sm:$0xf]
    %v3574 = vld [vmem:[#allocation3 + $0x34c] sm:$0xf]
    %v3575 = vld [vmem:[#allocation3 + $0x350] sm:$0xf]
    %v3576 = vld [vmem:[#allocation3 + $0x354] sm:$0xf]
    %v3577 = vld [vmem:[#allocation3 + $0x358] sm:$0xf]
    %v3578 = vld [vmem:[#allocation3 + $0x35c] sm:$0xf]
    %v3579 = vld [vmem:[#allocation3 + $0x360] sm:$0xf]
    %v3580 = vld [vmem:[#allocation3 + $0x364] sm:$0xf]
    %v3581 = vld [vmem:[#allocation3 + $0x368] sm:$0xf]
    %v3582 = vld [vmem:[#allocation3 + $0x36c] sm:$0xf]
    %v3583 = vld [vmem:[#allocation3 + $0x370] sm:$0xf]
    %v3584 = vld [vmem:[#allocation3 + $0x374] sm:$0xf]
    %v3585 = vld [vmem:[#allocation3 + $0x378] sm:$0xf]
    %v3586 = vld [vmem:[#allocation3 + $0x37c] sm:$0xf]
    %v3587 = vld [vmem:[#allocation3 + $0x380] sm:$0xf]
    %v3588 = vld [vmem:[#allocation3 + $0x384] sm:$0xf]
    %v3589 = vld [vmem:[#allocation3 + $0x388] sm:$0xf]
    %v3590 = vld [vmem:[#allocation3 + $0x38c] sm:$0xf]
    %v3591 = vld [vmem:[#allocation3 + $0x390] sm:$0xf]
    %v3592 = vld [vmem:[#allocation3 + $0x394] sm:$0xf]
    %v3593 = vld [vmem:[#allocation3 + $0x398] sm:$0xf]
    %v3594 = vld [vmem:[#allocation3 + $0x39c] sm:$0xf]
    %v3595 = vld [vmem:[#allocation3 + $0x3a0] sm:$0xf]
    %v3596 = vld [vmem:[#allocation3 + $0x3a4] sm:$0xf]
    %v3597 = vld [vmem:[#allocation3 + $0x3a8] sm:$0xf]
    %v3598 = vld [vmem:[#allocation3 + $0x3ac] sm:$0xf]
    %v3599 = vld [vmem:[#allocation3 + $0x3b0] sm:$0xf]
    %v3600 = vld [vmem:[#allocation3 + $0x3b4] sm:$0xf]
    %v3601 = vld [vmem:[#allocation3 + $0x3b8] sm:$0xf]
    %v3602 = vld [vmem:[#allocation3 + $0x3bc] sm:$0xf]
    %v3603 = vld [vmem:[#allocation3 + $0x3c0] sm:$0xf]
    %v3604 = vld [vmem:[#allocation3 + $0x3c4] sm:$0xf]
    %v3605 = vld [vmem:[#allocation3 + $0x3c8] sm:$0xf]
    %v3606 = vld [vmem:[#allocation3 + $0x3cc] sm:$0xf]
    %v3607 = vld [vmem:[#allocation3 + $0x3d0] sm:$0xf]
    %v3608 = vld [vmem:[#allocation3 + $0x3d4] sm:$0xf]
    %v3609 = vld [vmem:[#allocation3 + $0x3d8] sm:$0xf]
    %v3610 = vld [vmem:[#allocation3 + $0x3dc] sm:$0xf]
    %v3611 = vld [vmem:[#allocation3 + $0x3e0] sm:$0xf]
    %v3612 = vld [vmem:[#allocation3 + $0x3e4] sm:$0xf]
    %v3613 = vld [vmem:[#allocation3 + $0x3e8] sm:$0xf]
    %v3614 = vld [vmem:[#allocation3 + $0x3ec] sm:$0xf]
    %v3615 = vld [vmem:[#allocation3 + $0x3f0] sm:$0xf]
    %v3616 = vld [vmem:[#allocation3 + $0x3f4] sm:$0xf]
    %v3617 = vld [vmem:[#allocation3 + $0x3f8] sm:$0xf]
    %v3618 = vld [vmem:[#allocation3 + $0x3fc] sm:$0xf]
    %v3619 = vld [vmem:[#allocation30] sm:$0x1]
    %v3621 = vperm.slane %v3619, 0
    %v3879 = vunpack.c.l.b16 %v3363
    %v3880 = vunpack.c.l.b16 %v3364
    %v3881 = vunpack.c.l.b16 %v3365
    %v3882 = vunpack.c.l.b16 %v3366
    %v3883 = vunpack.c.l.b16 %v3367
    %v3884 = vunpack.c.l.b16 %v3368
    %v3885 = vunpack.c.l.b16 %v3369
    %v3886 = vunpack.c.l.b16 %v3370
    %v3887 = vunpack.c.l.b16 %v3371
    %v3888 = vunpack.c.l.b16 %v3372
    %v3889 = vunpack.c.l.b16 %v3373
    %v3890 = vunpack.c.l.b16 %v3374
    %v3891 = vunpack.c.l.b16 %v3375
    %v3892 = vunpack.c.l.b16 %v3376
    %v3893 = vunpack.c.l.b16 %v3377
    %v3894 = vunpack.c.l.b16 %v3378
    %v3895 = vunpack.c.l.b16 %v3379
    %v3896 = vunpack.c.l.b16 %v3380
    %v3897 = vunpack.c.l.b16 %v3381
    %v3898 = vunpack.c.l.b16 %v3382
    %v3899 = vunpack.c.l.b16 %v3383
    %v3900 = vunpack.c.l.b16 %v3384
    %v3901 = vunpack.c.l.b16 %v3385
    %v3902 = vunpack.c.l.b16 %v3386
    %v3903 = vunpack.c.l.b16 %v3387
    %v3904 = vunpack.c.l.b16 %v3388
    %v3905 = vunpack.c.l.b16 %v3389
    %v3906 = vunpack.c.l.b16 %v3390
    %v3907 = vunpack.c.l.b16 %v3391
    %v3908 = vunpack.c.l.b16 %v3392
    %v3909 = vunpack.c.l.b16 %v3393
    %v3910 = vunpack.c.l.b16 %v3394
    %v3911 = vunpack.c.l.b16 %v3395
    %v3912 = vunpack.c.l.b16 %v3396
    %v3913 = vunpack.c.l.b16 %v3397
    %v3914 = vunpack.c.l.b16 %v3398
    %v3915 = vunpack.c.l.b16 %v3399
    %v3916 = vunpack.c.l.b16 %v3400
    %v3917 = vunpack.c.l.b16 %v3401
    %v3918 = vunpack.c.l.b16 %v3402
    %v3919 = vunpack.c.l.b16 %v3403
    %v3920 = vunpack.c.l.b16 %v3404
    %v3921 = vunpack.c.l.b16 %v3405
    %v3922 = vunpack.c.l.b16 %v3406
    %v3923 = vunpack.c.l.b16 %v3407
    %v3924 = vunpack.c.l.b16 %v3408
    %v3925 = vunpack.c.l.b16 %v3409
    %v3926 = vunpack.c.l.b16 %v3410
    %v3927 = vunpack.c.l.b16 %v3411
    %v3928 = vunpack.c.l.b16 %v3412
    %v3929 = vunpack.c.l.b16 %v3413
    %v3930 = vunpack.c.l.b16 %v3414
    %v3931 = vunpack.c.l.b16 %v3415
    %v3932 = vunpack.c.l.b16 %v3416
    %v3933 = vunpack.c.l.b16 %v3417
    %v3934 = vunpack.c.l.b16 %v3418
    %v3935 = vunpack.c.l.b16 %v3419
    %v3936 = vunpack.c.l.b16 %v3420
    %v3937 = vunpack.c.l.b16 %v3421
    %v3938 = vunpack.c.l.b16 %v3422
    %v3939 = vunpack.c.l.b16 %v3423
    %v3940 = vunpack.c.l.b16 %v3424
    %v3941 = vunpack.c.l.b16 %v3425
    %v3942 = vunpack.c.l.b16 %v3426
    %v3943 = vunpack.c.l.b16 %v3427
    %v3944 = vunpack.c.l.b16 %v3428
    %v3945 = vunpack.c.l.b16 %v3429
    %v3946 = vunpack.c.l.b16 %v3430
    %v3947 = vunpack.c.l.b16 %v3431
    %v3948 = vunpack.c.l.b16 %v3432
    %v3949 = vunpack.c.l.b16 %v3433
    %v3950 = vunpack.c.l.b16 %v3434
    %v3951 = vunpack.c.l.b16 %v3435
    %v3952 = vunpack.c.l.b16 %v3436
    %v3953 = vunpack.c.l.b16 %v3437
    %v3954 = vunpack.c.l.b16 %v3438
    %v3955 = vunpack.c.l.b16 %v3439
    %v3956 = vunpack.c.l.b16 %v3440
    %v3957 = vunpack.c.l.b16 %v3441
    %v3958 = vunpack.c.l.b16 %v3442
    %v3959 = vunpack.c.l.b16 %v3443
    %v3960 = vunpack.c.l.b16 %v3444
    %v3961 = vunpack.c.l.b16 %v3445
    %v3962 = vunpack.c.l.b16 %v3446
    %v3963 = vunpack.c.l.b16 %v3447
    %v3964 = vunpack.c.l.b16 %v3448
    %v3965 = vunpack.c.l.b16 %v3449
    %v3966 = vunpack.c.l.b16 %v3450
    %v3967 = vunpack.c.l.b16 %v3451
    %v3968 = vunpack.c.l.b16 %v3452
    %v3969 = vunpack.c.l.b16 %v3453
    %v3970 = vunpack.c.l.b16 %v3454
    %v3971 = vunpack.c.l.b16 %v3455
    %v3972 = vunpack.c.l.b16 %v3456
    %v3973 = vunpack.c.l.b16 %v3457
    %v3974 = vunpack.c.l.b16 %v3458
    %v3975 = vunpack.c.l.b16 %v3459
    %v3976 = vunpack.c.l.b16 %v3460
    %v3977 = vunpack.c.l.b16 %v3461
    %v3978 = vunpack.c.l.b16 %v3462
    %v3979 = vunpack.c.l.b16 %v3463
    %v3980 = vunpack.c.l.b16 %v3464
    %v3981 = vunpack.c.l.b16 %v3465
    %v3982 = vunpack.c.l.b16 %v3466
    %v3983 = vunpack.c.l.b16 %v3467
    %v3984 = vunpack.c.l.b16 %v3468
    %v3985 = vunpack.c.l.b16 %v3469
    %v3986 = vunpack.c.l.b16 %v3470
    %v3987 = vunpack.c.l.b16 %v3471
    %v3988 = vunpack.c.l.b16 %v3472
    %v3989 = vunpack.c.l.b16 %v3473
    %v3990 = vunpack.c.l.b16 %v3474
    %v3991 = vunpack.c.l.b16 %v3475
    %v3992 = vunpack.c.l.b16 %v3476
    %v3993 = vunpack.c.l.b16 %v3477
    %v3994 = vunpack.c.l.b16 %v3478
    %v3995 = vunpack.c.l.b16 %v3479
    %v3996 = vunpack.c.l.b16 %v3480
    %v3997 = vunpack.c.l.b16 %v3481
    %v3998 = vunpack.c.l.b16 %v3482
    %v3999 = vunpack.c.l.b16 %v3483
    %v4000 = vunpack.c.l.b16 %v3484
    %v4001 = vunpack.c.l.b16 %v3485
    %v4002 = vunpack.c.l.b16 %v3486
    %v4003 = vunpack.c.l.b16 %v3487
    %v4004 = vunpack.c.l.b16 %v3488
    %v4005 = vunpack.c.l.b16 %v3489
    %v4006 = vunpack.c.l.b16 %v3490
    %v4007 = vunpack.c.l.b16 %v3491
    %v4008 = vunpack.c.l.b16 %v3492
    %v4009 = vunpack.c.l.b16 %v3493
    %v4010 = vunpack.c.l.b16 %v3494
    %v4011 = vunpack.c.l.b16 %v3495
    %v4012 = vunpack.c.l.b16 %v3496
    %v4013 = vunpack.c.l.b16 %v3497
    %v4014 = vunpack.c.l.b16 %v3498
    %v4015 = vunpack.c.l.b16 %v3499
    %v4016 = vunpack.c.l.b16 %v3500
    %v4017 = vunpack.c.l.b16 %v3501
    %v4018 = vunpack.c.l.b16 %v3502
    %v4019 = vunpack.c.l.b16 %v3503
    %v4020 = vunpack.c.l.b16 %v3504
    %v4021 = vunpack.c.l.b16 %v3505
    %v4022 = vunpack.c.l.b16 %v3506
    %v4023 = vunpack.c.l.b16 %v3507
    %v4024 = vunpack.c.l.b16 %v3508
    %v4025 = vunpack.c.l.b16 %v3509
    %v4026 = vunpack.c.l.b16 %v3510
    %v4027 = vunpack.c.l.b16 %v3511
    %v4028 = vunpack.c.l.b16 %v3512
    %v4029 = vunpack.c.l.b16 %v3513
    %v4030 = vunpack.c.l.b16 %v3514
    %v4031 = vunpack.c.l.b16 %v3515
    %v4032 = vunpack.c.l.b16 %v3516
    %v4033 = vunpack.c.l.b16 %v3517
    %v4034 = vunpack.c.l.b16 %v3518
    %v4035 = vunpack.c.l.b16 %v3519
    %v4036 = vunpack.c.l.b16 %v3520
    %v4037 = vunpack.c.l.b16 %v3521
    %v4038 = vunpack.c.l.b16 %v3522
    %v4039 = vunpack.c.l.b16 %v3523
    %v4040 = vunpack.c.l.b16 %v3524
    %v4041 = vunpack.c.l.b16 %v3525
    %v4042 = vunpack.c.l.b16 %v3526
    %v4043 = vunpack.c.l.b16 %v3527
    %v4044 = vunpack.c.l.b16 %v3528
    %v4045 = vunpack.c.l.b16 %v3529
    %v4046 = vunpack.c.l.b16 %v3530
    %v4047 = vunpack.c.l.b16 %v3531
    %v4048 = vunpack.c.l.b16 %v3532
    %v4049 = vunpack.c.l.b16 %v3533
    %v4050 = vunpack.c.l.b16 %v3534
    %v4051 = vunpack.c.l.b16 %v3535
    %v4052 = vunpack.c.l.b16 %v3536
    %v4053 = vunpack.c.l.b16 %v3537
    %v4054 = vunpack.c.l.b16 %v3538
    %v4055 = vunpack.c.l.b16 %v3539
    %v4056 = vunpack.c.l.b16 %v3540
    %v4057 = vunpack.c.l.b16 %v3541
    %v4058 = vunpack.c.l.b16 %v3542
    %v4059 = vunpack.c.l.b16 %v3543
    %v4060 = vunpack.c.l.b16 %v3544
    %v4061 = vunpack.c.l.b16 %v3545
    %v4062 = vunpack.c.l.b16 %v3546
    %v4063 = vunpack.c.l.b16 %v3547
    %v4064 = vunpack.c.l.b16 %v3548
    %v4065 = vunpack.c.l.b16 %v3549
    %v4066 = vunpack.c.l.b16 %v3550
    %v4067 = vunpack.c.l.b16 %v3551
    %v4068 = vunpack.c.l.b16 %v3552
    %v4069 = vunpack.c.l.b16 %v3553
    %v4070 = vunpack.c.l.b16 %v3554
    %v4071 = vunpack.c.l.b16 %v3555
    %v4072 = vunpack.c.l.b16 %v3556
    %v4073 = vunpack.c.l.b16 %v3557
    %v4074 = vunpack.c.l.b16 %v3558
    %v4075 = vunpack.c.l.b16 %v3559
    %v4076 = vunpack.c.l.b16 %v3560
    %v4077 = vunpack.c.l.b16 %v3561
    %v4078 = vunpack.c.l.b16 %v3562
    %v4079 = vunpack.c.l.b16 %v3563
    %v4080 = vunpack.c.l.b16 %v3564
    %v4081 = vunpack.c.l.b16 %v3565
    %v4082 = vunpack.c.l.b16 %v3566
    %v4083 = vunpack.c.l.b16 %v3567
    %v4084 = vunpack.c.l.b16 %v3568
    %v4085 = vunpack.c.l.b16 %v3569
    %v4086 = vunpack.c.l.b16 %v3570
    %v4087 = vunpack.c.l.b16 %v3571
    %v4088 = vunpack.c.l.b16 %v3572
    %v4089 = vunpack.c.l.b16 %v3573
    %v4090 = vunpack.c.l.b16 %v3574
    %v4091 = vunpack.c.l.b16 %v3575
    %v4092 = vunpack.c.l.b16 %v3576
    %v4093 = vunpack.c.l.b16 %v3577
    %v4094 = vunpack.c.l.b16 %v3578
    %v4095 = vunpack.c.l.b16 %v3579
    %v4096 = vunpack.c.l.b16 %v3580
    %v4097 = vunpack.c.l.b16 %v3581
    %v4098 = vunpack.c.l.b16 %v3582
    %v4099 = vunpack.c.l.b16 %v3583
    %v4100 = vunpack.c.l.b16 %v3584
    %v4101 = vunpack.c.l.b16 %v3585
    %v4102 = vunpack.c.l.b16 %v3586
    %v4103 = vunpack.c.l.b16 %v3587
    %v4104 = vunpack.c.l.b16 %v3588
    %v4105 = vunpack.c.l.b16 %v3589
    %v4106 = vunpack.c.l.b16 %v3590
    %v4107 = vunpack.c.l.b16 %v3591
    %v4108 = vunpack.c.l.b16 %v3592
    %v4109 = vunpack.c.l.b16 %v3593
    %v4110 = vunpack.c.l.b16 %v3594
    %v4111 = vunpack.c.l.b16 %v3595
    %v4112 = vunpack.c.l.b16 %v3596
    %v4113 = vunpack.c.l.b16 %v3597
    %v4114 = vunpack.c.l.b16 %v3598
    %v4115 = vunpack.c.l.b16 %v3599
    %v4116 = vunpack.c.l.b16 %v3600
    %v4117 = vunpack.c.l.b16 %v3601
    %v4118 = vunpack.c.l.b16 %v3602
    %v4119 = vunpack.c.l.b16 %v3603
    %v4120 = vunpack.c.l.b16 %v3604
    %v4121 = vunpack.c.l.b16 %v3605
    %v4122 = vunpack.c.l.b16 %v3606
    %v4123 = vunpack.c.l.b16 %v3607
    %v4124 = vunpack.c.l.b16 %v3608
    %v4125 = vunpack.c.l.b16 %v3609
    %v4126 = vunpack.c.l.b16 %v3610
    %v4127 = vunpack.c.l.b16 %v3611
    %v4128 = vunpack.c.l.b16 %v3612
    %v4129 = vunpack.c.l.b16 %v3613
    %v4130 = vunpack.c.l.b16 %v3614
    %v4131 = vunpack.c.l.b16 %v3615
    %v4132 = vunpack.c.l.b16 %v3616
    %v4133 = vunpack.c.l.b16 %v3617
    %v4134 = vunpack.c.l.b16 %v3618
    %v4135 = vpack.c.b16 %v3880, %v3879
    %v4136 = vpack.c.b16 %v3882, %v3881
    %v4137 = vpack.c.b16 %v3884, %v3883
    %v4138 = vpack.c.b16 %v3886, %v3885
    %v4139 = vpack.c.b16 %v3888, %v3887
    %v4140 = vpack.c.b16 %v3890, %v3889
    %v4141 = vpack.c.b16 %v3892, %v3891
    %v4142 = vpack.c.b16 %v3894, %v3893
    %v4143 = vpack.c.b16 %v3896, %v3895
    %v4144 = vpack.c.b16 %v3898, %v3897
    %v4145 = vpack.c.b16 %v3900, %v3899
    %v4146 = vpack.c.b16 %v3902, %v3901
    %v4147 = vpack.c.b16 %v3904, %v3903
    %v4148 = vpack.c.b16 %v3906, %v3905
    %v4149 = vpack.c.b16 %v3908, %v3907
    %v4150 = vpack.c.b16 %v3910, %v3909
    %v4151 = vpack.c.b16 %v3912, %v3911
    %v4152 = vpack.c.b16 %v3914, %v3913
    %v4153 = vpack.c.b16 %v3916, %v3915
    %v4154 = vpack.c.b16 %v3918, %v3917
    %v4155 = vpack.c.b16 %v3920, %v3919
    %v4156 = vpack.c.b16 %v3922, %v3921
    %v4157 = vpack.c.b16 %v3924, %v3923
    %v4158 = vpack.c.b16 %v3926, %v3925
    %v4159 = vpack.c.b16 %v3928, %v3927
    %v4160 = vpack.c.b16 %v3930, %v3929
    %v4161 = vpack.c.b16 %v3932, %v3931
    %v4162 = vpack.c.b16 %v3934, %v3933
    %v4163 = vpack.c.b16 %v3936, %v3935
    %v4164 = vpack.c.b16 %v3938, %v3937
    %v4165 = vpack.c.b16 %v3940, %v3939
    %v4166 = vpack.c.b16 %v3942, %v3941
    %v4167 = vpack.c.b16 %v3944, %v3943
    %v4168 = vpack.c.b16 %v3946, %v3945
    %v4169 = vpack.c.b16 %v3948, %v3947
    %v4170 = vpack.c.b16 %v3950, %v3949
    %v4171 = vpack.c.b16 %v3952, %v3951
    %v4172 = vpack.c.b16 %v3954, %v3953
    %v4173 = vpack.c.b16 %v3956, %v3955
    %v4174 = vpack.c.b16 %v3958, %v3957
    %v4175 = vpack.c.b16 %v3960, %v3959
    %v4176 = vpack.c.b16 %v3962, %v3961
    %v4177 = vpack.c.b16 %v3964, %v3963
    %v4178 = vpack.c.b16 %v3966, %v3965
    %v4179 = vpack.c.b16 %v3968, %v3967
    %v4180 = vpack.c.b16 %v3970, %v3969
    %v4181 = vpack.c.b16 %v3972, %v3971
    %v4182 = vpack.c.b16 %v3974, %v3973
    %v4183 = vpack.c.b16 %v3976, %v3975
    %v4184 = vpack.c.b16 %v3978, %v3977
    %v4185 = vpack.c.b16 %v3980, %v3979
    %v4186 = vpack.c.b16 %v3982, %v3981
    %v4187 = vpack.c.b16 %v3984, %v3983
    %v4188 = vpack.c.b16 %v3986, %v3985
    %v4189 = vpack.c.b16 %v3988, %v3987
    %v4190 = vpack.c.b16 %v3990, %v3989
    %v4191 = vpack.c.b16 %v3992, %v3991
    %v4192 = vpack.c.b16 %v3994, %v3993
    %v4193 = vpack.c.b16 %v3996, %v3995
    %v4194 = vpack.c.b16 %v3998, %v3997
    %v4195 = vpack.c.b16 %v4000, %v3999
    %v4196 = vpack.c.b16 %v4002, %v4001
    %v4197 = vpack.c.b16 %v4004, %v4003
    %v4198 = vpack.c.b16 %v4006, %v4005
    %v4199 = vpack.c.b16 %v4008, %v4007
    %v4200 = vpack.c.b16 %v4010, %v4009
    %v4201 = vpack.c.b16 %v4012, %v4011
    %v4202 = vpack.c.b16 %v4014, %v4013
    %v4203 = vpack.c.b16 %v4016, %v4015
    %v4204 = vpack.c.b16 %v4018, %v4017
    %v4205 = vpack.c.b16 %v4020, %v4019
    %v4206 = vpack.c.b16 %v4022, %v4021
    %v4207 = vpack.c.b16 %v4024, %v4023
    %v4208 = vpack.c.b16 %v4026, %v4025
    %v4209 = vpack.c.b16 %v4028, %v4027
    %v4210 = vpack.c.b16 %v4030, %v4029
    %v4211 = vpack.c.b16 %v4032, %v4031
    %v4212 = vpack.c.b16 %v4034, %v4033
    %v4213 = vpack.c.b16 %v4036, %v4035
    %v4214 = vpack.c.b16 %v4038, %v4037
    %v4215 = vpack.c.b16 %v4040, %v4039
    %v4216 = vpack.c.b16 %v4042, %v4041
    %v4217 = vpack.c.b16 %v4044, %v4043
    %v4218 = vpack.c.b16 %v4046, %v4045
    %v4219 = vpack.c.b16 %v4048, %v4047
    %v4220 = vpack.c.b16 %v4050, %v4049
    %v4221 = vpack.c.b16 %v4052, %v4051
    %v4222 = vpack.c.b16 %v4054, %v4053
    %v4223 = vpack.c.b16 %v4056, %v4055
    %v4224 = vpack.c.b16 %v4058, %v4057
    %v4225 = vpack.c.b16 %v4060, %v4059
    %v4226 = vpack.c.b16 %v4062, %v4061
    %v4227 = vpack.c.b16 %v4064, %v4063
    %v4228 = vpack.c.b16 %v4066, %v4065
    %v4229 = vpack.c.b16 %v4068, %v4067
    %v4230 = vpack.c.b16 %v4070, %v4069
    %v4231 = vpack.c.b16 %v4072, %v4071
    %v4232 = vpack.c.b16 %v4074, %v4073
    %v4233 = vpack.c.b16 %v4076, %v4075
    %v4234 = vpack.c.b16 %v4078, %v4077
    %v4235 = vpack.c.b16 %v4080, %v4079
    %v4236 = vpack.c.b16 %v4082, %v4081
    %v4237 = vpack.c.b16 %v4084, %v4083
    %v4238 = vpack.c.b16 %v4086, %v4085
    %v4239 = vpack.c.b16 %v4088, %v4087
    %v4240 = vpack.c.b16 %v4090, %v4089
    %v4241 = vpack.c.b16 %v4092, %v4091
    %v4242 = vpack.c.b16 %v4094, %v4093
    %v4243 = vpack.c.b16 %v4096, %v4095
    %v4244 = vpack.c.b16 %v4098, %v4097
    %v4245 = vpack.c.b16 %v4100, %v4099
    %v4246 = vpack.c.b16 %v4102, %v4101
    %v4247 = vpack.c.b16 %v4104, %v4103
    %v4248 = vpack.c.b16 %v4106, %v4105
    %v4249 = vpack.c.b16 %v4108, %v4107
    %v4250 = vpack.c.b16 %v4110, %v4109
    %v4251 = vpack.c.b16 %v4112, %v4111
    %v4252 = vpack.c.b16 %v4114, %v4113
    %v4253 = vpack.c.b16 %v4116, %v4115
    %v4254 = vpack.c.b16 %v4118, %v4117
    %v4255 = vpack.c.b16 %v4120, %v4119
    %v4256 = vpack.c.b16 %v4122, %v4121
    %v4257 = vpack.c.b16 %v4124, %v4123
    %v4258 = vpack.c.b16 %v4126, %v4125
    %v4259 = vpack.c.b16 %v4128, %v4127
    %v4260 = vpack.c.b16 %v4130, %v4129
    %v4261 = vpack.c.b16 %v4132, %v4131
    %v4262 = vpack.c.b16 %v4134, %v4133
    %4391 = vmatpush.bf16.msra.mxu0 %v4142
    %4392 = vmatpush.bf16.msra.mxu0 %v4141
    %4393 = vmatpush.bf16.msra.mxu0 %v4140
    %4394 = vmatpush.bf16.msra.mxu0 %v4139
    %4395 = vmatpush.bf16.msra.mxu0 %v4138
    %4396 = vmatpush.bf16.msra.mxu0 %v4137
    %4397 = vmatpush.bf16.msra.mxu0 %v4136
    %4398 = vmatpush.bf16.msra.mxu0 %v4135
    %4399 = vmatmul.bf16.gmra.mxu0 %v3347
    %v4400 = vpop.f32.mrf.mxu0
    %v4401 = vadd.f32 %v3621, %v4400
    %v4402 = vpop.f32.mrf.mxu0
    %v4403 = vadd.f32 %v3621, %v4402
    %4404 = vdwg.mxu0
    %4405 = vmatpush.bf16.msra.mxu0 %v4150
    %4406 = vmatpush.bf16.msra.mxu0 %v4149
    %4407 = vmatpush.bf16.msra.mxu0 %v4148
    %4408 = vmatpush.bf16.msra.mxu0 %v4147
    %4409 = vmatpush.bf16.msra.mxu0 %v4146
    %4410 = vmatpush.bf16.msra.mxu0 %v4145
    %4411 = vmatpush.bf16.msra.mxu0 %v4144
    %4412 = vmatpush.bf16.msra.mxu0 %v4143
    %4413 = vmatmul.bf16.gmra.mxu0 %v3348
    %v4414 = vpop.f32.mrf.mxu0
    %v4415 = vadd.f32 %v4401, %v4414
    %v4416 = vpop.f32.mrf.mxu0
    %v4417 = vadd.f32 %v4403, %v4416
    %4418 = vdwg.mxu0
    %4419 = vmatpush.bf16.msra.mxu0 %v4158
    %4420 = vmatpush.bf16.msra.mxu0 %v4157
    %4421 = vmatpush.bf16.msra.mxu0 %v4156
    %4422 = vmatpush.bf16.msra.mxu0 %v4155
    %4423 = vmatpush.bf16.msra.mxu0 %v4154
    %4424 = vmatpush.bf16.msra.mxu0 %v4153
    %4425 = vmatpush.bf16.msra.mxu0 %v4152
    %4426 = vmatpush.bf16.msra.mxu0 %v4151
    %4427 = vmatmul.bf16.gmra.mxu0 %v3349
    %v4428 = vpop.f32.mrf.mxu0
    %v4429 = vadd.f32 %v4415, %v4428
    %v4430 = vpop.f32.mrf.mxu0
    %v4431 = vadd.f32 %v4417, %v4430
    %4432 = vdwg.mxu0
    %4433 = vmatpush.bf16.msra.mxu0 %v4166
    %4434 = vmatpush.bf16.msra.mxu0 %v4165
    %4435 = vmatpush.bf16.msra.mxu0 %v4164
    %4436 = vmatpush.bf16.msra.mxu0 %v4163
    %4437 = vmatpush.bf16.msra.mxu0 %v4162
    %4438 = vmatpush.bf16.msra.mxu0 %v4161
    %4439 = vmatpush.bf16.msra.mxu0 %v4160
    %4440 = vmatpush.bf16.msra.mxu0 %v4159
    %4441 = vmatmul.bf16.gmra.mxu0 %v3350
    %v4442 = vpop.f32.mrf.mxu0
    %v4443 = vadd.f32 %v4429, %v4442
    %v4444 = vpop.f32.mrf.mxu0
    %v4445 = vadd.f32 %v4431, %v4444
    %4446 = vdwg.mxu0
    %4447 = vmatpush.bf16.msra.mxu0 %v4174
    %4448 = vmatpush.bf16.msra.mxu0 %v4173
    %4449 = vmatpush.bf16.msra.mxu0 %v4172
    %4450 = vmatpush.bf16.msra.mxu0 %v4171
    %4451 = vmatpush.bf16.msra.mxu0 %v4170
    %4452 = vmatpush.bf16.msra.mxu0 %v4169
    %4453 = vmatpush.bf16.msra.mxu0 %v4168
    %4454 = vmatpush.bf16.msra.mxu0 %v4167
    %4455 = vmatmul.bf16.gmra.mxu0 %v3351
    %v4456 = vpop.f32.mrf.mxu0
    %v4457 = vadd.f32 %v4443, %v4456
    %v4458 = vpop.f32.mrf.mxu0
    %v4459 = vadd.f32 %v4445, %v4458
    %4460 = vdwg.mxu0
    %4461 = vmatpush.bf16.msra.mxu0 %v4182
    %4462 = vmatpush.bf16.msra.mxu0 %v4181
    %4463 = vmatpush.bf16.msra.mxu0 %v4180
    %4464 = vmatpush.bf16.msra.mxu0 %v4179
    %4465 = vmatpush.bf16.msra.mxu0 %v4178
    %4466 = vmatpush.bf16.msra.mxu0 %v4177
    %4467 = vmatpush.bf16.msra.mxu0 %v4176
    %4468 = vmatpush.bf16.msra.mxu0 %v4175
    %4469 = vmatmul.bf16.gmra.mxu0 %v3352
    %v4470 = vpop.f32.mrf.mxu0
    %v4471 = vadd.f32 %v4457, %v4470
    %v4472 = vpop.f32.mrf.mxu0
    %v4473 = vadd.f32 %v4459, %v4472
    %4474 = vdwg.mxu0
    %4475 = vmatpush.bf16.msra.mxu0 %v4190
    %4476 = vmatpush.bf16.msra.mxu0 %v4189
    %4477 = vmatpush.bf16.msra.mxu0 %v4188
    %4478 = vmatpush.bf16.msra.mxu0 %v4187
    %4479 = vmatpush.bf16.msra.mxu0 %v4186
    %4480 = vmatpush.bf16.msra.mxu0 %v4185
    %4481 = vmatpush.bf16.msra.mxu0 %v4184
    %4482 = vmatpush.bf16.msra.mxu0 %v4183
    %4483 = vmatmul.bf16.gmra.mxu0 %v3353
    %v4484 = vpop.f32.mrf.mxu0
    %v4485 = vadd.f32 %v4471, %v4484
    %v4486 = vpop.f32.mrf.mxu0
    %v4487 = vadd.f32 %v4473, %v4486
    %4488 = vdwg.mxu0
    %4489 = vmatpush.bf16.msra.mxu0 %v4198
    %4490 = vmatpush.bf16.msra.mxu0 %v4197
    %4491 = vmatpush.bf16.msra.mxu0 %v4196
    %4492 = vmatpush.bf16.msra.mxu0 %v4195
    %4493 = vmatpush.bf16.msra.mxu0 %v4194
    %4494 = vmatpush.bf16.msra.mxu0 %v4193
    %4495 = vmatpush.bf16.msra.mxu0 %v4192
    %4496 = vmatpush.bf16.msra.mxu0 %v4191
    %4497 = vmatmul.bf16.gmra.mxu0 %v3354
    %v4498 = vpop.f32.mrf.mxu0
    %v4499 = vadd.f32 %v4485, %v4498
    %v4500 = vpop.f32.mrf.mxu0
    %v4501 = vadd.f32 %v4487, %v4500
    %4502 = vdwg.mxu0
    %4503 = vmatpush.bf16.msra.mxu0 %v4206
    %4504 = vmatpush.bf16.msra.mxu0 %v4205
    %4505 = vmatpush.bf16.msra.mxu0 %v4204
    %4506 = vmatpush.bf16.msra.mxu0 %v4203
    %4507 = vmatpush.bf16.msra.mxu0 %v4202
    %4508 = vmatpush.bf16.msra.mxu0 %v4201
    %4509 = vmatpush.bf16.msra.mxu0 %v4200
    %4510 = vmatpush.bf16.msra.mxu0 %v4199
    %4511 = vmatmul.bf16.gmra.mxu0 %v3355
    %v4512 = vpop.f32.mrf.mxu0
    %v4513 = vadd.f32 %v4499, %v4512
    %v4514 = vpop.f32.mrf.mxu0
    %v4515 = vadd.f32 %v4501, %v4514
    %4516 = vdwg.mxu0
    %4517 = vmatpush.bf16.msra.mxu0 %v4214
    %4518 = vmatpush.bf16.msra.mxu0 %v4213
    %4519 = vmatpush.bf16.msra.mxu0 %v4212
    %4520 = vmatpush.bf16.msra.mxu0 %v4211
    %4521 = vmatpush.bf16.msra.mxu0 %v4210
    %4522 = vmatpush.bf16.msra.mxu0 %v4209
    %4523 = vmatpush.bf16.msra.mxu0 %v4208
    %4524 = vmatpush.bf16.msra.mxu0 %v4207
    %4525 = vmatmul.bf16.gmra.mxu0 %v3356
    %v4526 = vpop.f32.mrf.mxu0
    %v4527 = vadd.f32 %v4513, %v4526
    %v4528 = vpop.f32.mrf.mxu0
    %v4529 = vadd.f32 %v4515, %v4528
    %4530 = vdwg.mxu0
    %4531 = vmatpush.bf16.msra.mxu0 %v4222
    %4532 = vmatpush.bf16.msra.mxu0 %v4221
    %4533 = vmatpush.bf16.msra.mxu0 %v4220
    %4534 = vmatpush.bf16.msra.mxu0 %v4219
    %4535 = vmatpush.bf16.msra.mxu0 %v4218
    %4536 = vmatpush.bf16.msra.mxu0 %v4217
    %4537 = vmatpush.bf16.msra.mxu0 %v4216
    %4538 = vmatpush.bf16.msra.mxu0 %v4215
    %4539 = vmatmul.bf16.gmra.mxu0 %v3357
    %v4540 = vpop.f32.mrf.mxu0
    %v4541 = vadd.f32 %v4527, %v4540
    %v4542 = vpop.f32.mrf.mxu0
    %v4543 = vadd.f32 %v4529, %v4542
    %4544 = vdwg.mxu0
    %4545 = vmatpush.bf16.msra.mxu0 %v4230
    %4546 = vmatpush.bf16.msra.mxu0 %v4229
    %4547 = vmatpush.bf16.msra.mxu0 %v4228
    %4548 = vmatpush.bf16.msra.mxu0 %v4227
    %4549 = vmatpush.bf16.msra.mxu0 %v4226
    %4550 = vmatpush.bf16.msra.mxu0 %v4225
    %4551 = vmatpush.bf16.msra.mxu0 %v4224
    %4552 = vmatpush.bf16.msra.mxu0 %v4223
    %4553 = vmatmul.bf16.gmra.mxu0 %v3358
    %v4554 = vpop.f32.mrf.mxu0
    %v4555 = vadd.f32 %v4541, %v4554
    %v4556 = vpop.f32.mrf.mxu0
    %v4557 = vadd.f32 %v4543, %v4556
    %4558 = vdwg.mxu0
    %4559 = vmatpush.bf16.msra.mxu0 %v4238
    %4560 = vmatpush.bf16.msra.mxu0 %v4237
    %4561 = vmatpush.bf16.msra.mxu0 %v4236
    %4562 = vmatpush.bf16.msra.mxu0 %v4235
    %4563 = vmatpush.bf16.msra.mxu0 %v4234
    %4564 = vmatpush.bf16.msra.mxu0 %v4233
    %4565 = vmatpush.bf16.msra.mxu0 %v4232
    %4566 = vmatpush.bf16.msra.mxu0 %v4231
    %4567 = vmatmul.bf16.gmra.mxu0 %v3359
    %v4568 = vpop.f32.mrf.mxu0
    %v4569 = vadd.f32 %v4555, %v4568
    %v4570 = vpop.f32.mrf.mxu0
    %v4571 = vadd.f32 %v4557, %v4570
    %4572 = vdwg.mxu0
    %4573 = vmatpush.bf16.msra.mxu0 %v4246
    %4574 = vmatpush.bf16.msra.mxu0 %v4245
    %4575 = vmatpush.bf16.msra.mxu0 %v4244
    %4576 = vmatpush.bf16.msra.mxu0 %v4243
    %4577 = vmatpush.bf16.msra.mxu0 %v4242
    %4578 = vmatpush.bf16.msra.mxu0 %v4241
    %4579 = vmatpush.bf16.msra.mxu0 %v4240
    %4580 = vmatpush.bf16.msra.mxu0 %v4239
    %4581 = vmatmul.bf16.gmra.mxu0 %v3360
    %v4582 = vpop.f32.mrf.mxu0
    %v4583 = vadd.f32 %v4569, %v4582
    %v4584 = vpop.f32.mrf.mxu0
    %v4585 = vadd.f32 %v4571, %v4584
    %4586 = vdwg.mxu0
    %4587 = vmatpush.bf16.msra.mxu0 %v4254
    %4588 = vmatpush.bf16.msra.mxu0 %v4253
    %4589 = vmatpush.bf16.msra.mxu0 %v4252
    %4590 = vmatpush.bf16.msra.mxu0 %v4251
    %4591 = vmatpush.bf16.msra.mxu0 %v4250
    %4592 = vmatpush.bf16.msra.mxu0 %v4249
    %4593 = vmatpush.bf16.msra.mxu0 %v4248
    %4594 = vmatpush.bf16.msra.mxu0 %v4247
    %4595 = vmatmul.bf16.gmra.mxu0 %v3361
    %v4596 = vpop.f32.mrf.mxu0
    %v4597 = vadd.f32 %v4583, %v4596
    %v4598 = vpop.f32.mrf.mxu0
    %v4599 = vadd.f32 %v4585, %v4598
    %4600 = vdwg.mxu0
    %4601 = vmatpush.bf16.msra.mxu0 %v4262
    %4602 = vmatpush.bf16.msra.mxu0 %v4261
    %4603 = vmatpush.bf16.msra.mxu0 %v4260
    %4604 = vmatpush.bf16.msra.mxu0 %v4259
    %4605 = vmatpush.bf16.msra.mxu0 %v4258
    %4606 = vmatpush.bf16.msra.mxu0 %v4257
    %4607 = vmatpush.bf16.msra.mxu0 %v4256
    %4608 = vmatpush.bf16.msra.mxu0 %v4255
    %4609 = vmatmul.bf16.gmra.mxu0 %v3362
    %v4610 = vpop.f32.mrf.mxu0
    %v4611 = vadd.f32 %v4597, %v4610
    %v4612 = vpop.f32.mrf.mxu0
    %v4613 = vadd.f32 %v4599, %v4612
    %4614 = vdwg.mxu0
    %v4615 = vadd.f32 %v2657, %v4611
    %v4616 = vadd.f32 %v2658, %v4613
    %v4617 = vld [vmem:[#allocation25] sm:$0x1]
    %v4618 = vld [vmem:[#allocation27] sm:$0x1]
    %v4619 = vsel %vm1451, %v4615, 0.0
    %4620 = vadd.xlane.f32.xlu0 %v4619
    %v4621 = vpop.xlane.xlu0 %4620
    %v4622 = vsel %vm2124, %v4616, 0.0
    %4623 = vadd.xlane.f32.xlu0 %v4622
    %v4624 = vpop.xlane.xlu0 %4623
    %v4625 = vmul.f32 %v4621, %v2134
    %v4626 = vmul.f32 %v4624, %v2134
    %v4627 = vsub.f32 %v4615, %v4625
    %v4628 = vsub.f32 %v4616, %v4626
    %v4629 = vmul.f32 %v4627, %v4627
    %v4630 = vmul.f32 %v4628, %v4628
    %v4631 = vsel %vm1451, %v4629, 0.0
    %4632 = vadd.xlane.f32.xlu0 %v4631
    %v4633 = vpop.xlane.xlu0 %4632
    %v4634 = vsel %vm2124, %v4630, 0.0
    %4635 = vadd.xlane.f32.xlu0 %v4634
    %v4636 = vpop.xlane.xlu0 %4635
    %v4637 = vmul.f32 %v4633, %v2134
    %v4638 = vmul.f32 %v4636, %v2134
    %v4639 = vadd.f32 %v4637, 1e-05
    %v4640 = vadd.f32 %v4638, 1e-05
    %v4641 = vrsqrt.pop %v4639
    %v4642 = vmul.f32 %v4641, %v4639
    %v4643 = vmul.f32 %v4642, %v4641
    %v4644 = vmul.f32 0.5, %v4643
    %v4645 = vsub.f32 1.5, %v4644
    %v4646 = vmul.f32 %v4641, %v4645
    %vm4647 = vweird.f32 %v4639
    %vm4648 = vweird.f32 %v4641
    %vm4649 = vmor %vm4647, %vm4648
    %v4650 = vsel %vm4649, %v4641, %v4646
    %v4651 = vrsqrt.pop %v4640
    %v4652 = vmul.f32 %v4651, %v4640
    %v4653 = vmul.f32 %v4652, %v4651
    %v4654 = vmul.f32 0.5, %v4653
    %v4655 = vsub.f32 1.5, %v4654
    %v4656 = vmul.f32 %v4651, %v4655
    %vm4657 = vweird.f32 %v4640
    %vm4658 = vweird.f32 %v4651
    %vm4659 = vmor %vm4657, %vm4658
    %v4660 = vsel %vm4659, %v4651, %v4656
    %v4661 = vmul.f32 %v4627, %v4650
    %v4662 = vmul.f32 %v4628, %v4660
    %v4664 = vperm.slane %v4617, 0
    %v4666 = vmul.f32 %v4661, %v4664
    %v4667 = vmul.f32 %v4662, %v4664
    %v4669 = vperm.slane %v4618, 0
    %v4671 = vadd.f32 %v4666, %v4669
    %v4672 = vadd.f32 %v4667, %v4669
    %v4673 = vld [vmem:[#allocation31] sm:$0x3]
    %v4674 = vpack.c.bf16 %v4671, %v4671
    %v4675 = vld [vmem:[%s103] sm:$0xff]
    %v4676 = vld [vmem:[%s103 + $0x8] sm:$0xff]
    %v4677 = vld [vmem:[%s103 + $0x10] sm:$0xff]
    %v4678 = vld [vmem:[%s103 + $0x18] sm:$0xff]
    %v4679 = vld [vmem:[%s103 + $0x20] sm:$0xff]
    %v4680 = vld [vmem:[%s103 + $0x28] sm:$0xff]
    %v4681 = vld [vmem:[%s103 + $0x30] sm:$0xff]
    %v4682 = vld [vmem:[%s103 + $0x38] sm:$0xff]
    %v4691 = vunpack.c.l.b16 %v4675
    %v4692 = vunpack.c.h.b16 %v4675
    %v4693 = vunpack.c.l.b16 %v4676
    %v4694 = vunpack.c.h.b16 %v4676
    %v4695 = vunpack.c.l.b16 %v4677
    %v4696 = vunpack.c.h.b16 %v4677
    %v4697 = vunpack.c.l.b16 %v4678
    %v4698 = vunpack.c.h.b16 %v4678
    %v4699 = vunpack.c.l.b16 %v4679
    %v4700 = vunpack.c.h.b16 %v4679
    %v4701 = vunpack.c.l.b16 %v4680
    %v4702 = vunpack.c.h.b16 %v4680
    %v4703 = vunpack.c.l.b16 %v4681
    %v4704 = vunpack.c.h.b16 %v4681
    %v4705 = vunpack.c.l.b16 %v4682
    %v4706 = vunpack.c.h.b16 %v4682
    %v4707 = vpack.c.b16 %v4693, %v4691
    %v4708 = vpack.c.b16 %v4694, %v4692
    %v4709 = vpack.c.b16 %v4697, %v4695
    %v4710 = vpack.c.b16 %v4698, %v4696
    %v4711 = vpack.c.b16 %v4701, %v4699
    %v4712 = vpack.c.b16 %v4702, %v4700
    %v4713 = vpack.c.b16 %v4705, %v4703
    %v4714 = vpack.c.b16 %v4706, %v4704
    %v4724 = vsel %vm1451, %v4674, 0
    %4726 = vmatpush.bf16.msra.mxu0 0
    %4727 = vmatpush.bf16.msra.mxu0 0
    %4728 = vmatpush.bf16.msra.mxu0 0
    %4729 = vmatpush.bf16.msra.mxu0 0
    %4730 = vmatpush.bf16.msra.mxu0 %v4713
    %4731 = vmatpush.bf16.msra.mxu0 %v4711
    %4732 = vmatpush.bf16.msra.mxu0 %v4709
    %4733 = vmatpush.bf16.msra.mxu0 %v4707
    %4734 = vmatmul.bf16.gmra.mxu0 %v4724
    %v4735 = vpop.f32.mrf.mxu0
    %v4736 = vadd.f32 0.0, %v4735
    %v4737 = vpop.f32.mrf.mxu0
    %4738 = vdwg.mxu0
    %4739 = vmatpush.bf16.msra.mxu0 0
    %4740 = vmatpush.bf16.msra.mxu0 0
    %4741 = vmatpush.bf16.msra.mxu0 0
    %4742 = vmatpush.bf16.msra.mxu0 0
    %4743 = vmatpush.bf16.msra.mxu0 %v4714
    %4744 = vmatpush.bf16.msra.mxu0 %v4712
    %4745 = vmatpush.bf16.msra.mxu0 %v4710
    %4746 = vmatpush.bf16.msra.mxu0 %v4708
    %4747 = vmatmul.bf16.gmra.mxu0 %v4724
    %v4748 = vpop.f32.mrf.mxu0
    %v4749 = vadd.f32 0.0, %v4748
    %v4750 = vpop.f32.mrf.mxu0
    %4751 = vdwg.mxu0
    %v4753 = vperm.slane %v4673, 0
    %v4754 = vperm.slane %v4673, 1
    %v4757 = vadd.f32 %v4753, %v4736
    %v4758 = vadd.f32 %v4754, %v4749
    %s4759 = scalar_lea.vmem %s103, 64
    %v4760 = vld [vmem:[%s4759] sm:$0xff]
    %v4761 = vld [vmem:[%s4759 + $0x8] sm:$0xff]
    %v4762 = vld [vmem:[%s4759 + $0x10] sm:$0xff]
    %v4763 = vld [vmem:[%s4759 + $0x18] sm:$0xff]
    %v4764 = vld [vmem:[%s4759 + $0x20] sm:$0xff]
    %v4765 = vld [vmem:[%s4759 + $0x28] sm:$0xff]
    %v4766 = vld [vmem:[%s4759 + $0x30] sm:$0xff]
    %v4767 = vld [vmem:[%s4759 + $0x38] sm:$0xff]
    %v4769 = vrot.slane %v4674, 1
    %v4778 = vunpack.c.l.b16 %v4760
    %v4779 = vunpack.c.h.b16 %v4760
    %v4780 = vunpack.c.l.b16 %v4761
    %v4781 = vunpack.c.h.b16 %v4761
    %v4782 = vunpack.c.l.b16 %v4762
    %v4783 = vunpack.c.h.b16 %v4762
    %v4784 = vunpack.c.l.b16 %v4763
    %v4785 = vunpack.c.h.b16 %v4763
    %v4786 = vunpack.c.l.b16 %v4764
    %v4787 = vunpack.c.h.b16 %v4764
    %v4788 = vunpack.c.l.b16 %v4765
    %v4789 = vunpack.c.h.b16 %v4765
    %v4790 = vunpack.c.l.b16 %v4766
    %v4791 = vunpack.c.h.b16 %v4766
    %v4792 = vunpack.c.l.b16 %v4767
    %v4793 = vunpack.c.h.b16 %v4767
    %v4794 = vpack.c.b16 %v4780, %v4778
    %v4795 = vpack.c.b16 %v4781, %v4779
    %v4796 = vpack.c.b16 %v4784, %v4782
    %v4797 = vpack.c.b16 %v4785, %v4783
    %v4798 = vpack.c.b16 %v4788, %v4786
    %v4799 = vpack.c.b16 %v4789, %v4787
    %v4800 = vpack.c.b16 %v4792, %v4790
    %v4801 = vpack.c.b16 %v4793, %v4791
    %v4811 = vsel %vm1451, %v4769, 0
    %4813 = vmatpush.bf16.msra.mxu0 0
    %4814 = vmatpush.bf16.msra.mxu0 0
    %4815 = vmatpush.bf16.msra.mxu0 0
    %4816 = vmatpush.bf16.msra.mxu0 0
    %4817 = vmatpush.bf16.msra.mxu0 %v4800
    %4818 = vmatpush.bf16.msra.mxu0 %v4798
    %4819 = vmatpush.bf16.msra.mxu0 %v4796
    %4820 = vmatpush.bf16.msra.mxu0 %v4794
    %4821 = vmatmul.bf16.gmra.mxu0 %v4811
    %v4822 = vpop.f32.mrf.mxu0
    %v4823 = vadd.f32 0.0, %v4822
    %v4824 = vpop.f32.mrf.mxu0
    %4825 = vdwg.mxu0
    %4826 = vmatpush.bf16.msra.mxu0 0
    %4827 = vmatpush.bf16.msra.mxu0 0
    %4828 = vmatpush.bf16.msra.mxu0 0
    %4829 = vmatpush.bf16.msra.mxu0 0
    %4830 = vmatpush.bf16.msra.mxu0 %v4801
    %4831 = vmatpush.bf16.msra.mxu0 %v4799
    %4832 = vmatpush.bf16.msra.mxu0 %v4797
    %4833 = vmatpush.bf16.msra.mxu0 %v4795
    %4834 = vmatmul.bf16.gmra.mxu0 %v4811
    %v4835 = vpop.f32.mrf.mxu0
    %v4836 = vadd.f32 0.0, %v4835
    %v4837 = vpop.f32.mrf.mxu0
    %4838 = vdwg.mxu0
    %v4839 = vadd.f32 %v4757, %v4823
    %v4840 = vadd.f32 %v4758, %v4836
    %s4841 = scalar_lea.vmem %s103, 128
    %v4842 = vld [vmem:[%s4841] sm:$0xff]
    %v4843 = vld [vmem:[%s4841 + $0x8] sm:$0xff]
    %v4844 = vld [vmem:[%s4841 + $0x10] sm:$0xff]
    %v4845 = vld [vmem:[%s4841 + $0x18] sm:$0xff]
    %v4846 = vld [vmem:[%s4841 + $0x20] sm:$0xff]
    %v4847 = vld [vmem:[%s4841 + $0x28] sm:$0xff]
    %v4848 = vld [vmem:[%s4841 + $0x30] sm:$0xff]
    %v4849 = vld [vmem:[%s4841 + $0x38] sm:$0xff]
    %v4850 = vrot.slane %v4674, 2
    %v4859 = vunpack.c.l.b16 %v4842
    %v4860 = vunpack.c.h.b16 %v4842
    %v4861 = vunpack.c.l.b16 %v4843
    %v4862 = vunpack.c.h.b16 %v4843
    %v4863 = vunpack.c.l.b16 %v4844
    %v4864 = vunpack.c.h.b16 %v4844
    %v4865 = vunpack.c.l.b16 %v4845
    %v4866 = vunpack.c.h.b16 %v4845
    %v4867 = vunpack.c.l.b16 %v4846
    %v4868 = vunpack.c.h.b16 %v4846
    %v4869 = vunpack.c.l.b16 %v4847
    %v4870 = vunpack.c.h.b16 %v4847
    %v4871 = vunpack.c.l.b16 %v4848
    %v4872 = vunpack.c.h.b16 %v4848
    %v4873 = vunpack.c.l.b16 %v4849
    %v4874 = vunpack.c.h.b16 %v4849
    %v4875 = vpack.c.b16 %v4861, %v4859
    %v4876 = vpack.c.b16 %v4862, %v4860
    %v4877 = vpack.c.b16 %v4865, %v4863
    %v4878 = vpack.c.b16 %v4866, %v4864
    %v4879 = vpack.c.b16 %v4869, %v4867
    %v4880 = vpack.c.b16 %v4870, %v4868
    %v4881 = vpack.c.b16 %v4873, %v4871
    %v4882 = vpack.c.b16 %v4874, %v4872
    %v4892 = vsel %vm1451, %v4850, 0
    %4894 = vmatpush.bf16.msra.mxu0 0
    %4895 = vmatpush.bf16.msra.mxu0 0
    %4896 = vmatpush.bf16.msra.mxu0 0
    %4897 = vmatpush.bf16.msra.mxu0 0
    %4898 = vmatpush.bf16.msra.mxu0 %v4881
    %4899 = vmatpush.bf16.msra.mxu0 %v4879
    %4900 = vmatpush.bf16.msra.mxu0 %v4877
    %4901 = vmatpush.bf16.msra.mxu0 %v4875
    %4902 = vmatmul.bf16.gmra.mxu0 %v4892
    %v4903 = vpop.f32.mrf.mxu0
    %v4904 = vadd.f32 0.0, %v4903
    %v4905 = vpop.f32.mrf.mxu0
    %4906 = vdwg.mxu0
    %4907 = vmatpush.bf16.msra.mxu0 0
    %4908 = vmatpush.bf16.msra.mxu0 0
    %4909 = vmatpush.bf16.msra.mxu0 0
    %4910 = vmatpush.bf16.msra.mxu0 0
    %4911 = vmatpush.bf16.msra.mxu0 %v4882
    %4912 = vmatpush.bf16.msra.mxu0 %v4880
    %4913 = vmatpush.bf16.msra.mxu0 %v4878
    %4914 = vmatpush.bf16.msra.mxu0 %v4876
    %4915 = vmatmul.bf16.gmra.mxu0 %v4892
    %v4916 = vpop.f32.mrf.mxu0
    %v4917 = vadd.f32 0.0, %v4916
    %v4918 = vpop.f32.mrf.mxu0
    %4919 = vdwg.mxu0
    %v4920 = vadd.f32 %v4839, %v4904
    %v4921 = vadd.f32 %v4840, %v4917
    %s4922 = scalar_lea.vmem %s103, 192
    %v4923 = vld [vmem:[%s4922] sm:$0xff]
    %v4924 = vld [vmem:[%s4922 + $0x8] sm:$0xff]
    %v4925 = vld [vmem:[%s4922 + $0x10] sm:$0xff]
    %v4926 = vld [vmem:[%s4922 + $0x18] sm:$0xff]
    %v4927 = vld [vmem:[%s4922 + $0x20] sm:$0xff]
    %v4928 = vld [vmem:[%s4922 + $0x28] sm:$0xff]
    %v4929 = vld [vmem:[%s4922 + $0x30] sm:$0xff]
    %v4930 = vld [vmem:[%s4922 + $0x38] sm:$0xff]
    %v4931 = vrot.slane %v4674, 3
    %v4940 = vunpack.c.l.b16 %v4923
    %v4941 = vunpack.c.h.b16 %v4923
    %v4942 = vunpack.c.l.b16 %v4924
    %v4943 = vunpack.c.h.b16 %v4924
    %v4944 = vunpack.c.l.b16 %v4925
    %v4945 = vunpack.c.h.b16 %v4925
    %v4946 = vunpack.c.l.b16 %v4926
    %v4947 = vunpack.c.h.b16 %v4926
    %v4948 = vunpack.c.l.b16 %v4927
    %v4949 = vunpack.c.h.b16 %v4927
    %v4950 = vunpack.c.l.b16 %v4928
    %v4951 = vunpack.c.h.b16 %v4928
    %v4952 = vunpack.c.l.b16 %v4929
    %v4953 = vunpack.c.h.b16 %v4929
    %v4954 = vunpack.c.l.b16 %v4930
    %v4955 = vunpack.c.h.b16 %v4930
    %v4956 = vpack.c.b16 %v4942, %v4940
    %v4957 = vpack.c.b16 %v4943, %v4941
    %v4958 = vpack.c.b16 %v4946, %v4944
    %v4959 = vpack.c.b16 %v4947, %v4945
    %v4960 = vpack.c.b16 %v4950, %v4948
    %v4961 = vpack.c.b16 %v4951, %v4949
    %v4962 = vpack.c.b16 %v4954, %v4952
    %v4963 = vpack.c.b16 %v4955, %v4953
    %v4973 = vsel %vm1451, %v4931, 0
    %4975 = vmatpush.bf16.msra.mxu0 0
    %4976 = vmatpush.bf16.msra.mxu0 0
    %4977 = vmatpush.bf16.msra.mxu0 0
    %4978 = vmatpush.bf16.msra.mxu0 0
    %4979 = vmatpush.bf16.msra.mxu0 %v4962
    %4980 = vmatpush.bf16.msra.mxu0 %v4960
    %4981 = vmatpush.bf16.msra.mxu0 %v4958
    %4982 = vmatpush.bf16.msra.mxu0 %v4956
    %4983 = vmatmul.bf16.gmra.mxu0 %v4973
    %v4984 = vpop.f32.mrf.mxu0
    %v4985 = vadd.f32 0.0, %v4984
    %v4986 = vpop.f32.mrf.mxu0
    %4987 = vdwg.mxu0
    %4988 = vmatpush.bf16.msra.mxu0 0
    %4989 = vmatpush.bf16.msra.mxu0 0
    %4990 = vmatpush.bf16.msra.mxu0 0
    %4991 = vmatpush.bf16.msra.mxu0 0
    %4992 = vmatpush.bf16.msra.mxu0 %v4963
    %4993 = vmatpush.bf16.msra.mxu0 %v4961
    %4994 = vmatpush.bf16.msra.mxu0 %v4959
    %4995 = vmatpush.bf16.msra.mxu0 %v4957
    %4996 = vmatmul.bf16.gmra.mxu0 %v4973
    %v4997 = vpop.f32.mrf.mxu0
    %v4998 = vadd.f32 0.0, %v4997
    %v4999 = vpop.f32.mrf.mxu0
    %5000 = vdwg.mxu0
    %v5001 = vadd.f32 %v4920, %v4985
    %v5002 = vadd.f32 %v4921, %v4998
    %v5003 = vpack.c.bf16 %v4672, %v4672
    %s5004 = scalar_lea.vmem %s103, 256
    %v5005 = vld [vmem:[%s5004] sm:$0xff]
    %v5006 = vld [vmem:[%s5004 + $0x8] sm:$0xff]
    %v5007 = vld [vmem:[%s5004 + $0x10] sm:$0xff]
    %v5008 = vld [vmem:[%s5004 + $0x18] sm:$0xff]
    %v5009 = vld [vmem:[%s5004 + $0x20] sm:$0xff]
    %v5010 = vld [vmem:[%s5004 + $0x28] sm:$0xff]
    %v5011 = vld [vmem:[%s5004 + $0x30] sm:$0xff]
    %v5012 = vld [vmem:[%s5004 + $0x38] sm:$0xff]
    %v5021 = vunpack.c.l.b16 %v5005
    %v5022 = vunpack.c.h.b16 %v5005
    %v5023 = vunpack.c.l.b16 %v5006
    %v5024 = vunpack.c.h.b16 %v5006
    %v5025 = vunpack.c.l.b16 %v5007
    %v5026 = vunpack.c.h.b16 %v5007
    %v5027 = vunpack.c.l.b16 %v5008
    %v5028 = vunpack.c.h.b16 %v5008
    %v5029 = vunpack.c.l.b16 %v5009
    %v5030 = vunpack.c.h.b16 %v5009
    %v5031 = vunpack.c.l.b16 %v5010
    %v5032 = vunpack.c.h.b16 %v5010
    %v5033 = vunpack.c.l.b16 %v5011
    %v5034 = vunpack.c.h.b16 %v5011
    %v5035 = vunpack.c.l.b16 %v5012
    %v5036 = vunpack.c.h.b16 %v5012
    %v5037 = vpack.c.b16 %v5023, %v5021
    %v5038 = vpack.c.b16 %v5024, %v5022
    %v5039 = vpack.c.b16 %v5027, %v5025
    %v5040 = vpack.c.b16 %v5028, %v5026
    %v5041 = vpack.c.b16 %v5031, %v5029
    %v5042 = vpack.c.b16 %v5032, %v5030
    %v5043 = vpack.c.b16 %v5035, %v5033
    %v5044 = vpack.c.b16 %v5036, %v5034
    %v5054 = vsel %vm1451, %v5003, 0
    %5056 = vmatpush.bf16.msra.mxu0 0
    %5057 = vmatpush.bf16.msra.mxu0 0
    %5058 = vmatpush.bf16.msra.mxu0 0
    %5059 = vmatpush.bf16.msra.mxu0 0
    %5060 = vmatpush.bf16.msra.mxu0 %v5043
    %5061 = vmatpush.bf16.msra.mxu0 %v5041
    %5062 = vmatpush.bf16.msra.mxu0 %v5039
    %5063 = vmatpush.bf16.msra.mxu0 %v5037
    %5064 = vmatmul.bf16.gmra.mxu0 %v5054
    %v5065 = vpop.f32.mrf.mxu0
    %v5066 = vadd.f32 0.0, %v5065
    %v5067 = vpop.f32.mrf.mxu0
    %5068 = vdwg.mxu0
    %5069 = vmatpush.bf16.msra.mxu0 0
    %5070 = vmatpush.bf16.msra.mxu0 0
    %5071 = vmatpush.bf16.msra.mxu0 0
    %5072 = vmatpush.bf16.msra.mxu0 0
    %5073 = vmatpush.bf16.msra.mxu0 %v5044
    %5074 = vmatpush.bf16.msra.mxu0 %v5042
    %5075 = vmatpush.bf16.msra.mxu0 %v5040
    %5076 = vmatpush.bf16.msra.mxu0 %v5038
    %5077 = vmatmul.bf16.gmra.mxu0 %v5054
    %v5078 = vpop.f32.mrf.mxu0
    %v5079 = vadd.f32 0.0, %v5078
    %v5080 = vpop.f32.mrf.mxu0
    %5081 = vdwg.mxu0
    %v5082 = vadd.f32 %v5001, %v5066
    %v5083 = vadd.f32 %v5002, %v5079
    %s5084 = scalar_lea.vmem %s103, 320
    %v5085 = vld [vmem:[%s5084] sm:$0xff]
    %v5086 = vld [vmem:[%s5084 + $0x8] sm:$0xff]
    %v5087 = vld [vmem:[%s5084 + $0x10] sm:$0xff]
    %v5088 = vld [vmem:[%s5084 + $0x18] sm:$0xff]
    %v5089 = vld [vmem:[%s5084 + $0x20] sm:$0xff]
    %v5090 = vld [vmem:[%s5084 + $0x28] sm:$0xff]
    %v5091 = vld [vmem:[%s5084 + $0x30] sm:$0xff]
    %v5092 = vld [vmem:[%s5084 + $0x38] sm:$0xff]
    %v5094 = vrot.slane %v5003, 1
    %v5103 = vunpack.c.l.b16 %v5085
    %v5104 = vunpack.c.h.b16 %v5085
    %v5105 = vunpack.c.l.b16 %v5086
    %v5106 = vunpack.c.h.b16 %v5086
    %v5107 = vunpack.c.l.b16 %v5087
    %v5108 = vunpack.c.h.b16 %v5087
    %v5109 = vunpack.c.l.b16 %v5088
    %v5110 = vunpack.c.h.b16 %v5088
    %v5111 = vunpack.c.l.b16 %v5089
    %v5112 = vunpack.c.h.b16 %v5089
    %v5113 = vunpack.c.l.b16 %v5090
    %v5114 = vunpack.c.h.b16 %v5090
    %v5115 = vunpack.c.l.b16 %v5091
    %v5116 = vunpack.c.h.b16 %v5091
    %v5117 = vunpack.c.l.b16 %v5092
    %v5118 = vunpack.c.h.b16 %v5092
    %v5119 = vpack.c.b16 %v5105, %v5103
    %v5120 = vpack.c.b16 %v5106, %v5104
    %v5121 = vpack.c.b16 %v5109, %v5107
    %v5122 = vpack.c.b16 %v5110, %v5108
    %v5123 = vpack.c.b16 %v5113, %v5111
    %v5124 = vpack.c.b16 %v5114, %v5112
    %v5125 = vpack.c.b16 %v5117, %v5115
    %v5126 = vpack.c.b16 %v5118, %v5116
    %v5136 = vsel %vm1451, %v5094, 0
    %5138 = vmatpush.bf16.msra.mxu0 0
    %5139 = vmatpush.bf16.msra.mxu0 0
    %5140 = vmatpush.bf16.msra.mxu0 0
    %5141 = vmatpush.bf16.msra.mxu0 0
    %5142 = vmatpush.bf16.msra.mxu0 %v5125
    %5143 = vmatpush.bf16.msra.mxu0 %v5123
    %5144 = vmatpush.bf16.msra.mxu0 %v5121
    %5145 = vmatpush.bf16.msra.mxu0 %v5119
    %5146 = vmatmul.bf16.gmra.mxu0 %v5136
    %v5147 = vpop.f32.mrf.mxu0
    %v5148 = vadd.f32 0.0, %v5147
    %v5149 = vpop.f32.mrf.mxu0
    %5150 = vdwg.mxu0
    %5151 = vmatpush.bf16.msra.mxu0 0
    %5152 = vmatpush.bf16.msra.mxu0 0
    %5153 = vmatpush.bf16.msra.mxu0 0
    %5154 = vmatpush.bf16.msra.mxu0 0
    %5155 = vmatpush.bf16.msra.mxu0 %v5126
    %5156 = vmatpush.bf16.msra.mxu0 %v5124
    %5157 = vmatpush.bf16.msra.mxu0 %v5122
    %5158 = vmatpush.bf16.msra.mxu0 %v5120
    %5159 = vmatmul.bf16.gmra.mxu0 %v5136
    %v5160 = vpop.f32.mrf.mxu0
    %v5161 = vadd.f32 0.0, %v5160
    %v5162 = vpop.f32.mrf.mxu0
    %5163 = vdwg.mxu0
    %v5164 = vadd.f32 %v5082, %v5148
    %v5165 = vadd.f32 %v5083, %v5161
    %v5166 = vmax.f32 %v5164, 0.0
    %v5167 = vmax.f32 %v5165, 0.0
    %v5168 = vpack.c.bf16 %v5166, %v5166
    %v5169 = vpack.c.bf16 %v5167, %v5167
    %v5170 = vld [vmem:[%s107] sm:$0xf]
    %v5171 = vld [vmem:[%s107 + $0x4] sm:$0xf]
    %v5172 = vld [vmem:[%s107 + $0x8] sm:$0xf]
    %v5173 = vld [vmem:[%s107 + $0xc] sm:$0xf]
    %v5174 = vld [vmem:[%s107 + $0x10] sm:$0xf]
    %v5175 = vld [vmem:[%s107 + $0x14] sm:$0xf]
    %v5176 = vld [vmem:[%s107 + $0x18] sm:$0xf]
    %v5177 = vld [vmem:[%s107 + $0x1c] sm:$0xf]
    %v5178 = vld [vmem:[%s107 + $0x20] sm:$0xf]
    %v5179 = vld [vmem:[%s107 + $0x24] sm:$0xf]
    %v5180 = vld [vmem:[%s107 + $0x28] sm:$0xf]
    %v5181 = vld [vmem:[%s107 + $0x2c] sm:$0xf]
    %v5182 = vld [vmem:[%s107 + $0x30] sm:$0xf]
    %v5183 = vld [vmem:[%s107 + $0x34] sm:$0xf]
    %v5184 = vld [vmem:[%s107 + $0x38] sm:$0xf]
    %v5185 = vld [vmem:[%s107 + $0x3c] sm:$0xf]
    %v5186 = vld [vmem:[%s107 + $0x40] sm:$0xf]
    %v5187 = vld [vmem:[%s107 + $0x44] sm:$0xf]
    %v5188 = vld [vmem:[%s107 + $0x48] sm:$0xf]
    %v5189 = vld [vmem:[%s107 + $0x4c] sm:$0xf]
    %v5190 = vld [vmem:[%s107 + $0x50] sm:$0xf]
    %v5191 = vld [vmem:[%s107 + $0x54] sm:$0xf]
    %v5192 = vld [vmem:[%s107 + $0x58] sm:$0xf]
    %v5193 = vld [vmem:[%s107 + $0x5c] sm:$0xf]
    %v5194 = vld [vmem:[#allocation33] sm:$0x1]
    %v5196 = vperm.slane %v5194, 0
    %v5222 = vunpack.c.l.b16 %v5170
    %v5223 = vunpack.c.l.b16 %v5171
    %v5224 = vunpack.c.l.b16 %v5172
    %v5225 = vunpack.c.l.b16 %v5173
    %v5226 = vunpack.c.l.b16 %v5174
    %v5227 = vunpack.c.l.b16 %v5175
    %v5228 = vunpack.c.l.b16 %v5176
    %v5229 = vunpack.c.l.b16 %v5177
    %v5230 = vunpack.c.l.b16 %v5178
    %v5231 = vunpack.c.l.b16 %v5179
    %v5232 = vunpack.c.l.b16 %v5180
    %v5233 = vunpack.c.l.b16 %v5181
    %v5234 = vunpack.c.l.b16 %v5182
    %v5235 = vunpack.c.l.b16 %v5183
    %v5236 = vunpack.c.l.b16 %v5184
    %v5237 = vunpack.c.l.b16 %v5185
    %v5238 = vunpack.c.l.b16 %v5186
    %v5239 = vunpack.c.l.b16 %v5187
    %v5240 = vunpack.c.l.b16 %v5188
    %v5241 = vunpack.c.l.b16 %v5189
    %v5242 = vunpack.c.l.b16 %v5190
    %v5243 = vunpack.c.l.b16 %v5191
    %v5244 = vunpack.c.l.b16 %v5192
    %v5245 = vunpack.c.l.b16 %v5193
    %v5246 = vpack.c.b16 %v5223, %v5222
    %v5247 = vpack.c.b16 %v5225, %v5224
    %v5248 = vpack.c.b16 %v5227, %v5226
    %v5249 = vpack.c.b16 %v5229, %v5228
    %v5250 = vpack.c.b16 %v5231, %v5230
    %v5251 = vpack.c.b16 %v5233, %v5232
    %v5252 = vpack.c.b16 %v5235, %v5234
    %v5253 = vpack.c.b16 %v5237, %v5236
    %v5254 = vpack.c.b16 %v5239, %v5238
    %v5255 = vpack.c.b16 %v5241, %v5240
    %v5256 = vpack.c.b16 %v5243, %v5242
    %v5257 = vpack.c.b16 %v5245, %v5244
    %v5271 = vsel %vm1451, %v5169, 0
    %5273 = vmatpush.bf16.msra.mxu0 %v5253
    %5274 = vmatpush.bf16.msra.mxu0 %v5252
    %5275 = vmatpush.bf16.msra.mxu0 %v5251
    %5276 = vmatpush.bf16.msra.mxu0 %v5250
    %5277 = vmatpush.bf16.msra.mxu0 %v5249
    %5278 = vmatpush.bf16.msra.mxu0 %v5248
    %5279 = vmatpush.bf16.msra.mxu0 %v5247
    %5280 = vmatpush.bf16.msra.mxu0 %v5246
    %5281 = vmatmul.bf16.gmra.mxu0 %v5168
    %v5282 = vpop.f32.mrf.mxu0
    %v5283 = vadd.f32 %v5196, %v5282
    %v5284 = vpop.f32.mrf.mxu0
    %5285 = vdwg.mxu0
    %5286 = vmatpush.bf16.msra.mxu0 0
    %5287 = vmatpush.bf16.msra.mxu0 0
    %5288 = vmatpush.bf16.msra.mxu0 0
    %5289 = vmatpush.bf16.msra.mxu0 0
    %5290 = vmatpush.bf16.msra.mxu0 %v5257
    %5291 = vmatpush.bf16.msra.mxu0 %v5256
    %5292 = vmatpush.bf16.msra.mxu0 %v5255
    %5293 = vmatpush.bf16.msra.mxu0 %v5254
    %5294 = vmatmul.bf16.gmra.mxu0 %v5271
    %v5295 = vpop.f32.mrf.mxu0
    %v5296 = vadd.f32 %v5283, %v5295
    %v5297 = vpop.f32.mrf.mxu0
    %5298 = vdwg.mxu0
    %v5300 = vrot.slane %v5296, 2
    %v5302 = vsel %vm1412, %v1641, %v5300
    %5303 = vst [vmem:[%s111] sm:$0xff] %v1465
    %5304 = vst [vmem:[%s111 + $0x8] sm:$0xff] %v5302
    // Predicated region
    $region328: #{_lambda_.1} parent=1 // pred_check
      _
    $region329: #{_lambda_.1} parent=1 // pred_check_branch
      %5306 = sbr.rel (0) target = $region331
    $region330: #{_lambda_.1} parent=1 // pred_region
      _
    $region331: #{_lambda_.1} parent=1 // pred_fallthru
      _
    // Predicated region
    $region332: #{_lambda_.1} parent=1 // pred_check
      _
    $region333: #{_lambda_.1} parent=1 // pred_check_branch
      %5308 = sbr.rel (0) target = $region335
    $region334: #{_lambda_.1} parent=1 // pred_region
      _
    $region335: #{_lambda_.1} parent=1 // pred_fallthru
      _
    %5309 = vsyncpa [#allocation6], 1
    %5310 = vsyncpa [#allocation8], 1
    %5311 = vsyncpa [#allocation11], 1
    %5312 = vsyncpa [#allocation14], 1
    %5313 = vsyncpa [#allocation17], 1
    %5314 = vsyncpa [#allocation20], 1
    %5315 = vsyncpa [#allocation23], 1
    %5316 = vsyncpa [#allocation26], 1
    %5317 = vsyncpa [#allocation29], 1
    %5318 = vsyncpa [#allocation32], 1
  %5319 = vsyncmov [#allocation4]
  %s5320 = vpop.sfrf %5319
  %p5321 = scmp.eq.s32.totalorder %s5320, 0
  %p5322 = pneg %p5321
  %5324 = shalt.err (%p5322)
  %s5325 = scalar_lea.sflag [#allocation4], 1
  %5326 = vsyncmov %s5325
  %s5327 = vpop.sfrf %5326
  %p5328 = scmp.eq.s32.totalorder %s5327, 0
  %p5329 = pneg %p5328
  %5331 = shalt.err (%p5329)

</llo_original>
